<compile_context>
chip_gen: v7x
topology: tpu7x:2x2x1
jax: 0.10.0
libtpu: 0.0.40
codegen_flags: <defaults>
</compile_context>

<pallas_src>
import functools

import jax
import jax.numpy as jnp
from jax.experimental import pallas as pl
from jax.experimental.pallas import tpu as pltpu


# ----------------------------- in-kernel helpers ----------------------------


def _layernorm(x, g, b, eps=1e-5):
    mu = jnp.mean(x, axis=-1, keepdims=True)
    xc = x - mu
    var = jnp.mean(xc * xc, axis=-1, keepdims=True)
    return xc * jax.lax.rsqrt(var + eps) * g + b


def _encoder_layer(x, *, batch, seq, heads, ln1, wqkv, wo, ln2, w1, b1, w2, b2):
    """One pre-LN transformer encoder layer. x: (B*S, D) f32 resident activations."""
    n, d = x.shape
    dh = d // heads
    scale = dh ** -0.5

    # ---- multi-head self-attention -------------------------------------------
    # Full-width QKV projections; the q/k/v split is on the LEADING weight axis
    # (no lane slicing, no broadcast of activations over heads).
    xn = _layernorm(x, ln1[0:1, :], ln1[1:2, :]).astype(jnp.bfloat16)
    q = jnp.dot(xn, wqkv[0], preferred_element_type=jnp.float32) * scale
    k = jnp.dot(xn, wqkv[1], preferred_element_type=jnp.float32)
    v = jnp.dot(xn, wqkv[2], preferred_element_type=jnp.float32)

    # Batch stays a true batch dim: per-(batch, head) scores are (S, S), no
    # block-diagonal bias, no B^2 blowup.  Per-head slices are lane slices of width
    # dh (the score/PV contraction is dh-wide regardless of layout).
    q3 = q.astype(jnp.bfloat16).reshape(batch, seq, d)
    k3 = k.astype(jnp.bfloat16).reshape(batch, seq, d)
    v3 = v.astype(jnp.bfloat16).reshape(batch, seq, d)

    head_outs = []
    for h in range(heads):                      # static unroll; H is small
        sl = slice(h * dh, (h + 1) * dh)
        s = jnp.einsum('bqe,bke->bqk', q3[..., sl], k3[..., sl],
                       preferred_element_type=jnp.float32)          # (B, S, S)
        m = jnp.max(s, axis=-1, keepdims=True)
        e = jnp.exp(s - m)
        p = e * pl.reciprocal(jnp.sum(e, axis=-1, keepdims=True), approx=True)
        head_outs.append(jnp.einsum('bqk,bke->bqe', p.astype(jnp.bfloat16),
                                    v3[..., sl],
                                    preferred_element_type=jnp.float32))

    # Concat heads -> (N, D), then ONE full-width output projection: the head
    # reduction is accumulated by the MXU; no (H, N, D) f32 intermediate.
    o = jnp.concatenate(head_outs, axis=-1).reshape(n, d)
    x = x + jnp.dot(o.astype(jnp.bfloat16), wo, preferred_element_type=jnp.float32)

    # ---- feed-forward ----------------------------------------------------------
    xn2 = _layernorm(x, ln2[0:1, :], ln2[1:2, :]).astype(jnp.bfloat16)
    h1 = jnp.dot(xn2, w1, preferred_element_type=jnp.float32) + b1
    h1 = jax.nn.gelu(h1)   # TODO(synk): tanh approximation (PyTorch default is erf)
    ff = jnp.dot(h1.astype(jnp.bfloat16), w2, preferred_element_type=jnp.float32) + b2
    return x + ff


# --------------------------------- the kernel --------------------------------------


def voiceclip_kernel(
    xt_hbm, xs_hbm,
    t_ln1, t_wqkv, t_wo, t_ln2, t_w1, t_b1, t_w2, t_b2,
    s_ln1, s_wqkv, s_wo, s_ln2, s_w1, s_b1, s_w2, s_b2,
    wt_ref, ws_ref, temp_ref,
    sim_ref,
    xt_sc, xs_sc, dma_sem,
    *, batch, seq_t, seq_s, heads_t, heads_s):

    layer = pl.program_id(0)
    last = pl.num_programs(0) - 1

    # Pull the embedded inputs from HBM into the resident activation scratch once.
    @pl.when(layer == 0)
    def _init():
        ct = pltpu.make_async_copy(xt_hbm, xt_sc, dma_sem.at[0])
        cs = pltpu.make_async_copy(xs_hbm, xs_sc, dma_sem.at[1])
        ct.start()
        cs.start()
        ct.wait()
        cs.wait()

    xt_sc[...] = _encoder_layer(
        xt_sc[...], batch=batch, seq=seq_t, heads=heads_t,
        ln1=t_ln1[0], wqkv=t_wqkv[0], wo=t_wo[0], ln2=t_ln2[0],
        w1=t_w1[0], b1=t_b1[0], w2=t_w2[0], b2=t_b2[0])
    xs_sc[...] = _encoder_layer(
        xs_sc[...], batch=batch, seq=seq_s, heads=heads_s,
        ln1=s_ln1[0], wqkv=s_wqkv[0], wo=s_wo[0], ln2=s_ln2[0],
        w1=s_w1[0], b1=s_b1[0], w2=s_w2[0], b2=s_b2[0])

    # -------- CLIP head, fused into the last grid step --------
    @pl.when(layer == last)
    def _head():
        dt = xt_sc.shape[-1]
        ds = xs_sc.shape[-1]
        # masked_mean with the all-ones eval mask == plain mean over the seq axis.
        pooled_t = jnp.mean(xt_sc[...].reshape(batch, seq_t, dt), axis=1)   # (B, Dt)
        pooled_s = jnp.mean(xs_sc[...].reshape(batch, seq_s, ds), axis=1)   # (B, Ds)

        lat_t = jnp.dot(pooled_t.astype(jnp.bfloat16), wt_ref[...],
                        preferred_element_type=jnp.float32)                 # (B, Dl)
        lat_s = jnp.dot(pooled_s.astype(jnp.bfloat16), ws_ref[...],
                        preferred_element_type=jnp.float32)

        # F.normalize(p=2, dim=-1, eps=1e-12)
        lat_t = lat_t * jax.lax.rsqrt(
            jnp.maximum(jnp.sum(lat_t * lat_t, axis=-1, keepdims=True), 1e-24))
        lat_s = lat_s * jax.lax.rsqrt(
            jnp.maximum(jnp.sum(lat_s * lat_s, axis=-1, keepdims=True), 1e-24))

        # einsum('n d, n d -> n') * exp(temperature), as an elementwise row-dot.
        sim_ref[...] = (jnp.sum(lat_t * lat_s, axis=-1, keepdims=True)
                        * jnp.exp(temp_ref[0, 0]))


# ------------------------------- host-side wrappers ---------------------------------


def _stack_tower(layers, mm_dtype=jnp.bfloat16):
    """Stack per-layer params into (L, ...) arrays; q/k/v on a leading axis."""
    ln1 = jnp.stack([jnp.stack([l['ln1g'], l['ln1b']], axis=0) for l in layers])   # (L,2,D)
    ln2 = jnp.stack([jnp.stack([l['ln2g'], l['ln2b']], axis=0) for l in layers])   # (L,2,D)
    wqkv = jnp.stack([jnp.stack([l['wq'], l['wk'], l['wv']], axis=0)
                      for l in layers]).astype(mm_dtype)                            # (L,3,D,D)
    wo = jnp.stack([l['wo'] for l in layers]).astype(mm_dtype)                      # (L,D,D)
    w1 = jnp.stack([l['w1'] for l in layers]).astype(mm_dtype)                      # (L,D,4D)
    b1 = jnp.stack([l['b1'][None, :] for l in layers]).astype(jnp.float32)          # (L,1,4D)
    w2 = jnp.stack([l['w2'] for l in layers]).astype(mm_dtype)                      # (L,4D,D)
    b2 = jnp.stack([l['b2'][None, :] for l in layers]).astype(jnp.float32)          # (L,1,D)
    return dict(ln1=ln1, wqkv=wqkv, wo=wo, ln2=ln2, w1=w1, b1=b1, w2=w2, b2=b2)


def _vmem_budget_bytes(B, St, Dt, Ss, Ds, Dl):
    act = 4 * B * (St * Dt + Ss * Ds)                       # resident f32 activations
    per_layer = lambda D: 2 * 12 * D * D + 4 * 13 * D       # bf16 matrices + f32 ln/bias
    wts = 2 * (per_layer(Dt) + per_layer(Ds))                # 2-deep buffering, both towers
    head = 2 * 2 * Dl * (Dt + Ds)                            # latent projections (bf16)
    trans = (4 * (B * St * 7 * Dt + 3 * B * St * St)         # qkv + ff hidden + scores
             + 4 * (B * Ss * 7 * Ds + 3 * B * Ss * Ss))
    return act + wts + head + trans


def voiceclip_forward(text, speech_tokens, params, *, text_heads, speech_heads):
    """Eval-mode forward (training=False, return_loss=False) -> per-sample sim (B,)."""
    B, St = text.shape
    _, Ss = speech_tokens.shape
    Dt = params['text_emb'].shape[1]
    Ds = params['speech_emb'].shape[1]
    Dl = params['w_text_latent'].shape[1]

    # token + positional embedding (gathers stay in plain JAX), batch merged into rows
    x_t = params['text_emb'][text] + params['text_pos'][:St][None]
    x_s = params['speech_emb'][speech_tokens] + params['speech_pos'][:Ss][None]
    x_t = x_t.reshape(B * St, Dt).astype(jnp.float32)
    x_s = x_s.reshape(B * Ss, Ds).astype(jnp.float32)

    tw = _stack_tower(params['text_layers'])
    sw = _stack_tower(params['speech_layers'])
    depth = tw['wqkv'].shape[0]
    assert sw['wqkv'].shape[0] == depth

    wt = params['w_text_latent'].astype(jnp.bfloat16)
    ws = params['w_speech_latent'].astype(jnp.bfloat16)
    temp = params['temperature'].reshape(1, 1).astype(jnp.float32)

    def full2d(a):
        return pl.BlockSpec(a.shape, lambda l: (0, 0))

    def spec3(a):
        return pl.BlockSpec((1,) + a.shape[1:], lambda l: (l, 0, 0))

    def spec4(a):
        return pl.BlockSpec((1,) + a.shape[1:], lambda l: (l, 0, 0, 0))

    def tower_specs(w):
        return [spec3(w['ln1']), spec4(w['wqkv']), spec3(w['wo']), spec3(w['ln2']),
                spec3(w['w1']), spec3(w['b1']), spec3(w['w2']), spec3(w['b2'])]

    in_specs = ([pl.BlockSpec(memory_space=pl.ANY),        # x_t stays in HBM
                 pl.BlockSpec(memory_space=pl.ANY)]        # x_s stays in HBM
                + tower_specs(tw) + tower_specs(sw)
                + [full2d(wt), full2d(ws),
                   pl.BlockSpec(memory_space=pltpu.MemorySpace.SMEM)])

    kernel = functools.partial(
        voiceclip_kernel, batch=B, seq_t=St, seq_s=Ss,
        heads_t=text_heads, heads_s=speech_heads)

    vmem_limit = int(min(56 * 2**20,
                         max(32 * 2**20,
                             2 * _vmem_budget_bytes(B, St, Dt, Ss, Ds, Dl) + (4 << 20))))

    sim = pl.pallas_call(
        kernel,
        out_shape=jax.ShapeDtypeStruct((B, 1), jnp.float32),
        grid_spec=pltpu.PrefetchScalarGridSpec(
            num_scalar_prefetch=0,
            grid=(depth,),
            in_specs=in_specs,
            out_specs=pl.BlockSpec((B, 1), lambda l: (0, 0)),
            scratch_shapes=[pltpu.VMEM((B * St, Dt), jnp.float32),
                            pltpu.VMEM((B * Ss, Ds), jnp.float32),
                            pltpu.SemaphoreType.DMA((2,))],
        ),
        compiler_params=pltpu.CompilerParams(
            dimension_semantics=("arbitrary",),
            vmem_limit_bytes=vmem_limit),
    )(x_t, x_s,
      tw['ln1'], tw['wqkv'], tw['wo'], tw['ln2'], tw['w1'], tw['b1'], tw['w2'], tw['b2'],
      sw['ln1'], sw['wqkv'], sw['wo'], sw['ln2'], sw['w1'], sw['b1'], sw['w2'], sw['b2'],
      wt, ws, temp)
    return sim[:, 0]


# --------------------------------------- main ---------------------------------------


if __name__ == "__main__":
    # small config consistent with the module's constructor
    B = 2
    dim_text = dim_speech = dim_latent = 32
    heads = 4
    depth = 2
    text_seq_len = 8
    speech_seq_len = 16
    num_text_tokens = 256
    num_speech_tokens = 512

    key = jax.random.PRNGKey(0)
    keys = iter(jax.random.split(key, 256))

    def nrm(shape, std=0.02):
        return std * jax.random.normal(next(keys), shape, dtype=jnp.float32)

    def make_layer(d):
        return dict(
            ln1g=jnp.ones((d,), jnp.float32), ln1b=jnp.zeros((d,), jnp.float32),
            wq=nrm((d, d)), wk=nrm((d, d)), wv=nrm((d, d)), wo=nrm((d, d)),
            ln2g=jnp.ones((d,), jnp.float32), ln2b=jnp.zeros((d,), jnp.float32),
            w1=nrm((d, 4 * d)), b1=jnp.zeros((4 * d,), jnp.float32),
            w2=nrm((4 * d, d)), b2=jnp.zeros((d,), jnp.float32),
        )

    params = dict(
        text_emb=nrm((num_text_tokens, dim_text)),
        text_pos=nrm((text_seq_len, dim_text)),
        speech_emb=nrm((num_speech_tokens, dim_speech)),
        speech_pos=nrm((speech_seq_len, dim_speech)),
        text_layers=[make_layer(dim_text) for _ in range(depth)],
        speech_layers=[make_layer(dim_speech) for _ in range(depth)],
        w_text_latent=nrm((dim_text, dim_latent)),
        w_speech_latent=nrm((dim_speech, dim_latent)),
        temperature=jnp.array(1.0, jnp.float32),        # exp() applied in-kernel
    )

    text = jax.random.randint(next(keys), (B, text_seq_len), 0, num_text_tokens,
                              dtype=jnp.int32)
    speech_tokens = jax.random.randint(next(keys), (B, speech_seq_len), 0,
                                       num_speech_tokens, dtype=jnp.int32)

    fwd = jax.jit(functools.partial(voiceclip_forward,
                                    text_heads=heads, speech_heads=heads))
    sim = fwd(text, speech_tokens, params)
    sim = jax.block_until_ready(sim)
    assert sim.shape == (B,) and sim.dtype == jnp.float32
    assert bool(jnp.all(jnp.isfinite(sim)))
    print("KERNEL_OK")
</pallas_src>

<mosaic_0001>
module attributes {stable_mosaic.version = 11 : i64} {
  func.func @voiceclip_kernel(%arg0: i32, %arg1: memref<16x32xf32, #tpu.memory_space<any>>, %arg2: memref<32x32xf32, #tpu.memory_space<any>>, %arg3: memref<1x2x32xf32, #tpu.memory_space<vmem>>, %arg4: memref<1x3x32x32xbf16, #tpu.memory_space<vmem>>, %arg5: memref<1x32x32xbf16, #tpu.memory_space<vmem>>, %arg6: memref<1x2x32xf32, #tpu.memory_space<vmem>>, %arg7: memref<1x32x128xbf16, #tpu.memory_space<vmem>>, %arg8: memref<1x1x128xf32, #tpu.memory_space<vmem>>, %arg9: memref<1x128x32xbf16, #tpu.memory_space<vmem>>, %arg10: memref<1x1x32xf32, #tpu.memory_space<vmem>>, %arg11: memref<1x2x32xf32, #tpu.memory_space<vmem>>, %arg12: memref<1x3x32x32xbf16, #tpu.memory_space<vmem>>, %arg13: memref<1x32x32xbf16, #tpu.memory_space<vmem>>, %arg14: memref<1x2x32xf32, #tpu.memory_space<vmem>>, %arg15: memref<1x32x128xbf16, #tpu.memory_space<vmem>>, %arg16: memref<1x1x128xf32, #tpu.memory_space<vmem>>, %arg17: memref<1x128x32xbf16, #tpu.memory_space<vmem>>, %arg18: memref<1x1x32xf32, #tpu.memory_space<vmem>>, %arg19: memref<32x32xbf16, #tpu.memory_space<vmem>>, %arg20: memref<32x32xbf16, #tpu.memory_space<vmem>>, %arg21: memref<1x1xf32, #tpu.memory_space<smem>>, %arg22: memref<2x1xf32, #tpu.memory_space<vmem>>, %arg23: memref<16x32xf32, #tpu.memory_space<vmem>>, %arg24: memref<32x32xf32, #tpu.memory_space<vmem>>, %arg25: memref<2x!tpu.dma_semaphore, #tpu.memory_space<semaphore_mem>>) attributes {dimension_semantics = [#tpu.dimension_semantics<arbitrary>], iteration_bounds = array<i64: 2>, scalar_prefetch = 0 : i64, scratch_operands = 3 : i64, tpu.core_type = #tpu.core_type<tc>, window_params = [{}, {}, {transform_indices = @transform_2, window_bounds = array<i64: 1, 2, 32>}, {transform_indices = @transform_3, window_bounds = array<i64: 1, 3, 32, 32>}, {transform_indices = @transform_4, window_bounds = array<i64: 1, 32, 32>}, {transform_indices = @transform_5, window_bounds = array<i64: 1, 2, 32>}, {transform_indices = @transform_6, window_bounds = array<i64: 1, 32, 128>}, {transform_indices = @transform_7, window_bounds = array<i64: 1, 1, 128>}, {transform_indices = @transform_8, window_bounds = array<i64: 1, 128, 32>}, {transform_indices = @transform_9, window_bounds = array<i64: 1, 1, 32>}, {transform_indices = @transform_10, window_bounds = array<i64: 1, 2, 32>}, {transform_indices = @transform_11, window_bounds = array<i64: 1, 3, 32, 32>}, {transform_indices = @transform_12, window_bounds = array<i64: 1, 32, 32>}, {transform_indices = @transform_13, window_bounds = array<i64: 1, 2, 32>}, {transform_indices = @transform_14, window_bounds = array<i64: 1, 32, 128>}, {transform_indices = @transform_15, window_bounds = array<i64: 1, 1, 128>}, {transform_indices = @transform_16, window_bounds = array<i64: 1, 128, 32>}, {transform_indices = @transform_17, window_bounds = array<i64: 1, 1, 32>}, {pipeline_mode = #tpu.pipeline_mode<synchronous>, transform_indices = @transform_18, window_bounds = array<i64: 32, 32>}, {pipeline_mode = #tpu.pipeline_mode<synchronous>, transform_indices = @transform_19, window_bounds = array<i64: 32, 32>}, {transform_indices = @transform_20, window_bounds = array<i64: 1, 1>}, {pipeline_mode = #tpu.pipeline_mode<synchronous>, transform_indices = @transform_21, window_bounds = array<i64: 2, 1>}]} {
    %c0_i32 = arith.constant 0 : i32
    %0 = arith.cmpi eq, %arg0, %c0_i32 : i32
    %1 = arith.extui %0 : i1 to i32
    %c0_i32_0 = arith.constant 0 : i32
    %2 = arith.cmpi ne, %1, %c0_i32_0 : i32
    scf.if %2 {
      %c0_i32_132 = arith.constant 0 : i32
      %348 = tpu.memref_slice %arg25[%c0_i32_132] : memref<2x!tpu.dma_semaphore, #tpu.memory_space<semaphore_mem>> -> memref<1x!tpu.dma_semaphore, #tpu.memory_space<semaphore_mem>>
      %349 = tpu.memref_squeeze %348 : memref<1x!tpu.dma_semaphore, #tpu.memory_space<semaphore_mem>> -> memref<!tpu.dma_semaphore, #tpu.memory_space<semaphore_mem>>
      tpu.enqueue_dma source(%arg1 : memref<16x32xf32, #tpu.memory_space<any>>) target(%arg23 : memref<16x32xf32, #tpu.memory_space<vmem>>) target_semaphore(%349 : memref<!tpu.dma_semaphore, #tpu.memory_space<semaphore_mem>>)
      %c1_i32_133 = arith.constant 1 : i32
      %350 = tpu.memref_slice %arg25[%c1_i32_133] : memref<2x!tpu.dma_semaphore, #tpu.memory_space<semaphore_mem>> -> memref<1x!tpu.dma_semaphore, #tpu.memory_space<semaphore_mem>>
      %351 = tpu.memref_squeeze %350 : memref<1x!tpu.dma_semaphore, #tpu.memory_space<semaphore_mem>> -> memref<!tpu.dma_semaphore, #tpu.memory_space<semaphore_mem>>
      tpu.enqueue_dma source(%arg2 : memref<32x32xf32, #tpu.memory_space<any>>) target(%arg24 : memref<32x32xf32, #tpu.memory_space<vmem>>) target_semaphore(%351 : memref<!tpu.dma_semaphore, #tpu.memory_space<semaphore_mem>>)
      %c0_i32_134 = arith.constant 0 : i32
      %352 = tpu.memref_slice %arg25[%c0_i32_134] : memref<2x!tpu.dma_semaphore, #tpu.memory_space<semaphore_mem>> -> memref<1x!tpu.dma_semaphore, #tpu.memory_space<semaphore_mem>>
      %353 = tpu.memref_squeeze %352 : memref<1x!tpu.dma_semaphore, #tpu.memory_space<semaphore_mem>> -> memref<!tpu.dma_semaphore, #tpu.memory_space<semaphore_mem>>
      tpu.wait_dma2 semaphore(%353 : memref<!tpu.dma_semaphore, #tpu.memory_space<semaphore_mem>>) src(%arg1 : memref<16x32xf32, #tpu.memory_space<any>>) dst(%arg23 : memref<16x32xf32, #tpu.memory_space<vmem>>)
      %c1_i32_135 = arith.constant 1 : i32
      %354 = tpu.memref_slice %arg25[%c1_i32_135] : memref<2x!tpu.dma_semaphore, #tpu.memory_space<semaphore_mem>> -> memref<1x!tpu.dma_semaphore, #tpu.memory_space<semaphore_mem>>
      %355 = tpu.memref_squeeze %354 : memref<1x!tpu.dma_semaphore, #tpu.memory_space<semaphore_mem>> -> memref<!tpu.dma_semaphore, #tpu.memory_space<semaphore_mem>>
      tpu.wait_dma2 semaphore(%355 : memref<!tpu.dma_semaphore, #tpu.memory_space<semaphore_mem>>) src(%arg2 : memref<32x32xf32, #tpu.memory_space<any>>) dst(%arg24 : memref<32x32xf32, #tpu.memory_space<vmem>>)
    } else {
    }
    %c0 = arith.constant 0 : index
    %c0_1 = arith.constant 0 : index
    %3 = vector.load %arg23[%c0, %c0_1] : memref<16x32xf32, #tpu.memory_space<vmem>>, vector<16x32xf32>
    %c0_2 = arith.constant 0 : index
    %c0_3 = arith.constant 0 : index
    %c0_4 = arith.constant 0 : index
    %4 = vector.load %arg3[%c0_2, %c0_3, %c0_4] : memref<1x2x32xf32, #tpu.memory_space<vmem>>, vector<1x2x32xf32>
    %5 = vector.shape_cast %4 : vector<1x2x32xf32> to vector<2x32xf32>
    %c0_5 = arith.constant 0 : index
    %c0_6 = arith.constant 0 : index
    %c0_7 = arith.constant 0 : index
    %c0_8 = arith.constant 0 : index
    %6 = vector.load %arg4[%c0_5, %c0_6, %c0_7, %c0_8] : memref<1x3x32x32xbf16, #tpu.memory_space<vmem>>, vector<1x3x32x32xbf16>
    %7 = vector.shape_cast %6 : vector<1x3x32x32xbf16> to vector<3x32x32xbf16>
    %c0_9 = arith.constant 0 : index
    %c0_10 = arith.constant 0 : index
    %c0_11 = arith.constant 0 : index
    %8 = vector.load %arg5[%c0_9, %c0_10, %c0_11] : memref<1x32x32xbf16, #tpu.memory_space<vmem>>, vector<1x32x32xbf16>
    %9 = vector.shape_cast %8 : vector<1x32x32xbf16> to vector<32x32xbf16>
    %c0_12 = arith.constant 0 : index
    %c0_13 = arith.constant 0 : index
    %c0_14 = arith.constant 0 : index
    %10 = vector.load %arg6[%c0_12, %c0_13, %c0_14] : memref<1x2x32xf32, #tpu.memory_space<vmem>>, vector<1x2x32xf32>
    %11 = vector.shape_cast %10 : vector<1x2x32xf32> to vector<2x32xf32>
    %c0_15 = arith.constant 0 : index
    %c0_16 = arith.constant 0 : index
    %c0_17 = arith.constant 0 : index
    %12 = vector.load %arg7[%c0_15, %c0_16, %c0_17] : memref<1x32x128xbf16, #tpu.memory_space<vmem>>, vector<1x32x128xbf16>
    %13 = vector.shape_cast %12 : vector<1x32x128xbf16> to vector<32x128xbf16>
    %c0_18 = arith.constant 0 : index
    %c0_19 = arith.constant 0 : index
    %c0_20 = arith.constant 0 : index
    %14 = vector.load %arg8[%c0_18, %c0_19, %c0_20] : memref<1x1x128xf32, #tpu.memory_space<vmem>>, vector<1x1x128xf32>
    %15 = vector.shape_cast %14 : vector<1x1x128xf32> to vector<1x128xf32>
    %c0_21 = arith.constant 0 : index
    %c0_22 = arith.constant 0 : index
    %c0_23 = arith.constant 0 : index
    %16 = vector.load %arg9[%c0_21, %c0_22, %c0_23] : memref<1x128x32xbf16, #tpu.memory_space<vmem>>, vector<1x128x32xbf16>
    %17 = vector.shape_cast %16 : vector<1x128x32xbf16> to vector<128x32xbf16>
    %c0_24 = arith.constant 0 : index
    %c0_25 = arith.constant 0 : index
    %c0_26 = arith.constant 0 : index
    %18 = vector.load %arg10[%c0_24, %c0_25, %c0_26] : memref<1x1x32xf32, #tpu.memory_space<vmem>>, vector<1x1x32xf32>
    %19 = vector.shape_cast %18 : vector<1x1x32xf32> to vector<1x32xf32>
    %20 = vector.extract_strided_slice %5 {offsets = [0, 0], sizes = [1, 32], strides = [1, 1]} : vector<2x32xf32> to vector<1x32xf32>
    %21 = vector.extract_strided_slice %5 {offsets = [1, 0], sizes = [1, 32], strides = [1, 1]} : vector<2x32xf32> to vector<1x32xf32>
    %cst = arith.constant dense<0.000000e+00> : vector<16xf32>
    %22 = vector.multi_reduction <add>, %3, %cst [1] : vector<16x32xf32> to vector<16xf32>
    %23 = vector.shape_cast %22 : vector<16xf32> to vector<16x1xf32>
    %cst_27 = arith.constant 3.200000e+01 : f32
    %24 = vector.broadcast %cst_27 : f32 to vector<16x1xf32>
    %25 = arith.divf %23, %24 : vector<16x1xf32>
    %26 = vector.broadcast %25 : vector<16x1xf32> to vector<16x32xf32>
    %27 = arith.subf %3, %26 : vector<16x32xf32>
    %28 = arith.mulf %27, %27 : vector<16x32xf32>
    %cst_28 = arith.constant dense<0.000000e+00> : vector<16xf32>
    %29 = vector.multi_reduction <add>, %28, %cst_28 [1] : vector<16x32xf32> to vector<16xf32>
    %30 = vector.shape_cast %29 : vector<16xf32> to vector<16x1xf32>
    %cst_29 = arith.constant 3.200000e+01 : f32
    %31 = vector.broadcast %cst_29 : f32 to vector<16x1xf32>
    %32 = arith.divf %30, %31 : vector<16x1xf32>
    %cst_30 = arith.constant 9.99999974E-6 : f32
    %33 = vector.broadcast %cst_30 : f32 to vector<16x1xf32>
    %34 = arith.addf %32, %33 : vector<16x1xf32>
    %35 = math.rsqrt %34 : vector<16x1xf32>
    %36 = vector.broadcast %35 : vector<16x1xf32> to vector<16x32xf32>
    %37 = arith.mulf %27, %36 : vector<16x32xf32>
    %38 = vector.broadcast %20 : vector<1x32xf32> to vector<16x32xf32>
    %39 = arith.mulf %37, %38 : vector<16x32xf32>
    %40 = vector.broadcast %21 : vector<1x32xf32> to vector<16x32xf32>
    %41 = arith.addf %39, %40 : vector<16x32xf32>
    %42 = arith.truncf %41 : vector<16x32xf32> to vector<16x32xbf16>
    %43 = vector.extract_strided_slice %7 {offsets = [0, 0, 0], sizes = [1, 32, 32], strides = [1, 1, 1]} : vector<3x32x32xbf16> to vector<1x32x32xbf16>
    %44 = vector.shape_cast %43 : vector<1x32x32xbf16> to vector<32x32xbf16>
    %cst_31 = arith.constant dense<0.000000e+00> : vector<16x32xf32>
    %45 = tpu.matmul %42, %44, %cst_31 {dimension_numbers = #tpu.dot_dimension_numbers<[1], [0], [0], [1], [0, 0, 1, 1], [], []>} : vector<16x32xbf16>, vector<32x32xbf16>, vector<16x32xf32> -> vector<16x32xf32>
    %cst_32 = arith.constant 0.353553385 : f32
    %46 = vector.broadcast %cst_32 : f32 to vector<16x32xf32>
    %47 = arith.mulf %45, %46 : vector<16x32xf32>
    %48 = vector.extract_strided_slice %7 {offsets = [1, 0, 0], sizes = [1, 32, 32], strides = [1, 1, 1]} : vector<3x32x32xbf16> to vector<1x32x32xbf16>
    %49 = vector.shape_cast %48 : vector<1x32x32xbf16> to vector<32x32xbf16>
    %cst_33 = arith.constant dense<0.000000e+00> : vector<16x32xf32>
    %50 = tpu.matmul %42, %49, %cst_33 {dimension_numbers = #tpu.dot_dimension_numbers<[1], [0], [0], [1], [0, 0, 1, 1], [], []>} : vector<16x32xbf16>, vector<32x32xbf16>, vector<16x32xf32> -> vector<16x32xf32>
    %51 = vector.extract_strided_slice %7 {offsets = [2, 0, 0], sizes = [1, 32, 32], strides = [1, 1, 1]} : vector<3x32x32xbf16> to vector<1x32x32xbf16>
    %52 = vector.shape_cast %51 : vector<1x32x32xbf16> to vector<32x32xbf16>
    %cst_34 = arith.constant dense<0.000000e+00> : vector<16x32xf32>
    %53 = tpu.matmul %42, %52, %cst_34 {dimension_numbers = #tpu.dot_dimension_numbers<[1], [0], [0], [1], [0, 0, 1, 1], [], []>} : vector<16x32xbf16>, vector<32x32xbf16>, vector<16x32xf32> -> vector<16x32xf32>
    %54 = arith.truncf %47 : vector<16x32xf32> to vector<16x32xbf16>
    %55 = vector.shape_cast %54 : vector<16x32xbf16> to vector<2x8x32xbf16>
    %56 = arith.truncf %50 : vector<16x32xf32> to vector<16x32xbf16>
    %57 = vector.shape_cast %56 : vector<16x32xbf16> to vector<2x8x32xbf16>
    %58 = arith.truncf %53 : vector<16x32xf32> to vector<16x32xbf16>
    %59 = vector.shape_cast %58 : vector<16x32xbf16> to vector<2x8x32xbf16>
    %60 = vector.extract_strided_slice %55 {offsets = [0, 0, 0], sizes = [2, 8, 8], strides = [1, 1, 1]} : vector<2x8x32xbf16> to vector<2x8x8xbf16>
    %61 = vector.extract_strided_slice %57 {offsets = [0, 0, 0], sizes = [2, 8, 8], strides = [1, 1, 1]} : vector<2x8x32xbf16> to vector<2x8x8xbf16>
    "tpu.trace_start"() <{level = 10 : i32, message = "bqe,bke->bqk"}> : () -> ()
    %cst_35 = arith.constant dense<0.000000e+00> : vector<2x8x8xf32>
    %62 = tpu.matmul %60, %61, %cst_35 {dimension_numbers = #tpu.dot_dimension_numbers<[2], [2], [1], [1], [0, 0, 0, 1, 1, 1], [0], [0]>} : vector<2x8x8xbf16>, vector<2x8x8xbf16>, vector<2x8x8xf32> -> vector<2x8x8xf32>
    "tpu.trace_stop"() : () -> ()
    %cst_36 = arith.constant dense<0xFF800000> : vector<2x8xf32>
    %63 = vector.multi_reduction <maximumf>, %62, %cst_36 [2] : vector<2x8x8xf32> to vector<2x8xf32>
    %64 = vector.shape_cast %63 : vector<2x8xf32> to vector<2x8x1xf32>
    %65 = vector.broadcast %64 : vector<2x8x1xf32> to vector<2x8x8xf32>
    %66 = arith.subf %62, %65 : vector<2x8x8xf32>
    %67 = math.exp %66 : vector<2x8x8xf32>
    %cst_37 = arith.constant dense<0.000000e+00> : vector<2x8xf32>
    %68 = vector.multi_reduction <add>, %67, %cst_37 [2] : vector<2x8x8xf32> to vector<2x8xf32>
    %69 = vector.shape_cast %68 : vector<2x8xf32> to vector<2x8x1xf32>
    %70 = tpu.reciprocal %69 {approx = true} : vector<2x8x1xf32> -> vector<2x8x1xf32>
    %71 = vector.broadcast %70 : vector<2x8x1xf32> to vector<2x8x8xf32>
    %72 = arith.mulf %67, %71 : vector<2x8x8xf32>
    %73 = arith.truncf %72 : vector<2x8x8xf32> to vector<2x8x8xbf16>
    %74 = vector.extract_strided_slice %59 {offsets = [0, 0, 0], sizes = [2, 8, 8], strides = [1, 1, 1]} : vector<2x8x32xbf16> to vector<2x8x8xbf16>
    "tpu.trace_start"() <{level = 10 : i32, message = "bqk,bke->bqe"}> : () -> ()
    %cst_38 = arith.constant dense<0.000000e+00> : vector<2x8x8xf32>
    %75 = tpu.matmul %73, %74, %cst_38 {dimension_numbers = #tpu.dot_dimension_numbers<[2], [1], [1], [2], [0, 0, 0, 1, 1, 2], [0], [0]>} : vector<2x8x8xbf16>, vector<2x8x8xbf16>, vector<2x8x8xf32> -> vector<2x8x8xf32>
    "tpu.trace_stop"() : () -> ()
    %76 = vector.extract_strided_slice %55 {offsets = [0, 0, 8], sizes = [2, 8, 8], strides = [1, 1, 1]} : vector<2x8x32xbf16> to vector<2x8x8xbf16>
    %77 = vector.extract_strided_slice %57 {offsets = [0, 0, 8], sizes = [2, 8, 8], strides = [1, 1, 1]} : vector<2x8x32xbf16> to vector<2x8x8xbf16>
    "tpu.trace_start"() <{level = 10 : i32, message = "bqe,bke->bqk"}> : () -> ()
    %cst_39 = arith.constant dense<0.000000e+00> : vector<2x8x8xf32>
    %78 = tpu.matmul %76, %77, %cst_39 {dimension_numbers = #tpu.dot_dimension_numbers<[2], [2], [1], [1], [0, 0, 0, 1, 1, 1], [0], [0]>} : vector<2x8x8xbf16>, vector<2x8x8xbf16>, vector<2x8x8xf32> -> vector<2x8x8xf32>
    "tpu.trace_stop"() : () -> ()
    %cst_40 = arith.constant dense<0xFF800000> : vector<2x8xf32>
    %79 = vector.multi_reduction <maximumf>, %78, %cst_40 [2] : vector<2x8x8xf32> to vector<2x8xf32>
    %80 = vector.shape_cast %79 : vector<2x8xf32> to vector<2x8x1xf32>
    %81 = vector.broadcast %80 : vector<2x8x1xf32> to vector<2x8x8xf32>
    %82 = arith.subf %78, %81 : vector<2x8x8xf32>
    %83 = math.exp %82 : vector<2x8x8xf32>
    %cst_41 = arith.constant dense<0.000000e+00> : vector<2x8xf32>
    %84 = vector.multi_reduction <add>, %83, %cst_41 [2] : vector<2x8x8xf32> to vector<2x8xf32>
    %85 = vector.shape_cast %84 : vector<2x8xf32> to vector<2x8x1xf32>
    %86 = tpu.reciprocal %85 {approx = true} : vector<2x8x1xf32> -> vector<2x8x1xf32>
    %87 = vector.broadcast %86 : vector<2x8x1xf32> to vector<2x8x8xf32>
    %88 = arith.mulf %83, %87 : vector<2x8x8xf32>
    %89 = arith.truncf %88 : vector<2x8x8xf32> to vector<2x8x8xbf16>
    %90 = vector.extract_strided_slice %59 {offsets = [0, 0, 8], sizes = [2, 8, 8], strides = [1, 1, 1]} : vector<2x8x32xbf16> to vector<2x8x8xbf16>
    "tpu.trace_start"() <{level = 10 : i32, message = "bqk,bke->bqe"}> : () -> ()
    %cst_42 = arith.constant dense<0.000000e+00> : vector<2x8x8xf32>
    %91 = tpu.matmul %89, %90, %cst_42 {dimension_numbers = #tpu.dot_dimension_numbers<[2], [1], [1], [2], [0, 0, 0, 1, 1, 2], [0], [0]>} : vector<2x8x8xbf16>, vector<2x8x8xbf16>, vector<2x8x8xf32> -> vector<2x8x8xf32>
    "tpu.trace_stop"() : () -> ()
    %92 = vector.extract_strided_slice %55 {offsets = [0, 0, 16], sizes = [2, 8, 8], strides = [1, 1, 1]} : vector<2x8x32xbf16> to vector<2x8x8xbf16>
    %93 = vector.extract_strided_slice %57 {offsets = [0, 0, 16], sizes = [2, 8, 8], strides = [1, 1, 1]} : vector<2x8x32xbf16> to vector<2x8x8xbf16>
    "tpu.trace_start"() <{level = 10 : i32, message = "bqe,bke->bqk"}> : () -> ()
    %cst_43 = arith.constant dense<0.000000e+00> : vector<2x8x8xf32>
    %94 = tpu.matmul %92, %93, %cst_43 {dimension_numbers = #tpu.dot_dimension_numbers<[2], [2], [1], [1], [0, 0, 0, 1, 1, 1], [0], [0]>} : vector<2x8x8xbf16>, vector<2x8x8xbf16>, vector<2x8x8xf32> -> vector<2x8x8xf32>
    "tpu.trace_stop"() : () -> ()
    %cst_44 = arith.constant dense<0xFF800000> : vector<2x8xf32>
    %95 = vector.multi_reduction <maximumf>, %94, %cst_44 [2] : vector<2x8x8xf32> to vector<2x8xf32>
    %96 = vector.shape_cast %95 : vector<2x8xf32> to vector<2x8x1xf32>
    %97 = vector.broadcast %96 : vector<2x8x1xf32> to vector<2x8x8xf32>
    %98 = arith.subf %94, %97 : vector<2x8x8xf32>
    %99 = math.exp %98 : vector<2x8x8xf32>
    %cst_45 = arith.constant dense<0.000000e+00> : vector<2x8xf32>
    %100 = vector.multi_reduction <add>, %99, %cst_45 [2] : vector<2x8x8xf32> to vector<2x8xf32>
    %101 = vector.shape_cast %100 : vector<2x8xf32> to vector<2x8x1xf32>
    %102 = tpu.reciprocal %101 {approx = true} : vector<2x8x1xf32> -> vector<2x8x1xf32>
    %103 = vector.broadcast %102 : vector<2x8x1xf32> to vector<2x8x8xf32>
    %104 = arith.mulf %99, %103 : vector<2x8x8xf32>
    %105 = arith.truncf %104 : vector<2x8x8xf32> to vector<2x8x8xbf16>
    %106 = vector.extract_strided_slice %59 {offsets = [0, 0, 16], sizes = [2, 8, 8], strides = [1, 1, 1]} : vector<2x8x32xbf16> to vector<2x8x8xbf16>
    "tpu.trace_start"() <{level = 10 : i32, message = "bqk,bke->bqe"}> : () -> ()
    %cst_46 = arith.constant dense<0.000000e+00> : vector<2x8x8xf32>
    %107 = tpu.matmul %105, %106, %cst_46 {dimension_numbers = #tpu.dot_dimension_numbers<[2], [1], [1], [2], [0, 0, 0, 1, 1, 2], [0], [0]>} : vector<2x8x8xbf16>, vector<2x8x8xbf16>, vector<2x8x8xf32> -> vector<2x8x8xf32>
    "tpu.trace_stop"() : () -> ()
    %108 = vector.extract_strided_slice %55 {offsets = [0, 0, 24], sizes = [2, 8, 8], strides = [1, 1, 1]} : vector<2x8x32xbf16> to vector<2x8x8xbf16>
    %109 = vector.extract_strided_slice %57 {offsets = [0, 0, 24], sizes = [2, 8, 8], strides = [1, 1, 1]} : vector<2x8x32xbf16> to vector<2x8x8xbf16>
    "tpu.trace_start"() <{level = 10 : i32, message = "bqe,bke->bqk"}> : () -> ()
    %cst_47 = arith.constant dense<0.000000e+00> : vector<2x8x8xf32>
    %110 = tpu.matmul %108, %109, %cst_47 {dimension_numbers = #tpu.dot_dimension_numbers<[2], [2], [1], [1], [0, 0, 0, 1, 1, 1], [0], [0]>} : vector<2x8x8xbf16>, vector<2x8x8xbf16>, vector<2x8x8xf32> -> vector<2x8x8xf32>
    "tpu.trace_stop"() : () -> ()
    %cst_48 = arith.constant dense<0xFF800000> : vector<2x8xf32>
    %111 = vector.multi_reduction <maximumf>, %110, %cst_48 [2] : vector<2x8x8xf32> to vector<2x8xf32>
    %112 = vector.shape_cast %111 : vector<2x8xf32> to vector<2x8x1xf32>
    %113 = vector.broadcast %112 : vector<2x8x1xf32> to vector<2x8x8xf32>
    %114 = arith.subf %110, %113 : vector<2x8x8xf32>
    %115 = math.exp %114 : vector<2x8x8xf32>
    %cst_49 = arith.constant dense<0.000000e+00> : vector<2x8xf32>
    %116 = vector.multi_reduction <add>, %115, %cst_49 [2] : vector<2x8x8xf32> to vector<2x8xf32>
    %117 = vector.shape_cast %116 : vector<2x8xf32> to vector<2x8x1xf32>
    %118 = tpu.reciprocal %117 {approx = true} : vector<2x8x1xf32> -> vector<2x8x1xf32>
    %119 = vector.broadcast %118 : vector<2x8x1xf32> to vector<2x8x8xf32>
    %120 = arith.mulf %115, %119 : vector<2x8x8xf32>
    %121 = arith.truncf %120 : vector<2x8x8xf32> to vector<2x8x8xbf16>
    %122 = vector.extract_strided_slice %59 {offsets = [0, 0, 24], sizes = [2, 8, 8], strides = [1, 1, 1]} : vector<2x8x32xbf16> to vector<2x8x8xbf16>
    "tpu.trace_start"() <{level = 10 : i32, message = "bqk,bke->bqe"}> : () -> ()
    %cst_50 = arith.constant dense<0.000000e+00> : vector<2x8x8xf32>
    %123 = tpu.matmul %121, %122, %cst_50 {dimension_numbers = #tpu.dot_dimension_numbers<[2], [1], [1], [2], [0, 0, 0, 1, 1, 2], [0], [0]>} : vector<2x8x8xbf16>, vector<2x8x8xbf16>, vector<2x8x8xf32> -> vector<2x8x8xf32>
    "tpu.trace_stop"() : () -> ()
    %124 = tpu.concatenate %75, %91, %107, %123 in 2 : vector<2x8x8xf32>, vector<2x8x8xf32>, vector<2x8x8xf32>, vector<2x8x8xf32> -> vector<2x8x32xf32>
    %125 = vector.shape_cast %124 : vector<2x8x32xf32> to vector<16x32xf32>
    %126 = arith.truncf %125 : vector<16x32xf32> to vector<16x32xbf16>
    %cst_51 = arith.constant dense<0.000000e+00> : vector<16x32xf32>
    %127 = tpu.matmul %126, %9, %cst_51 {dimension_numbers = #tpu.dot_dimension_numbers<[1], [0], [0], [1], [0, 0, 1, 1], [], []>} : vector<16x32xbf16>, vector<32x32xbf16>, vector<16x32xf32> -> vector<16x32xf32>
    %128 = arith.addf %3, %127 : vector<16x32xf32>
    %129 = vector.extract_strided_slice %11 {offsets = [0, 0], sizes = [1, 32], strides = [1, 1]} : vector<2x32xf32> to vector<1x32xf32>
    %130 = vector.extract_strided_slice %11 {offsets = [1, 0], sizes = [1, 32], strides = [1, 1]} : vector<2x32xf32> to vector<1x32xf32>
    %cst_52 = arith.constant dense<0.000000e+00> : vector<16xf32>
    %131 = vector.multi_reduction <add>, %128, %cst_52 [1] : vector<16x32xf32> to vector<16xf32>
    %132 = vector.shape_cast %131 : vector<16xf32> to vector<16x1xf32>
    %cst_53 = arith.constant 3.200000e+01 : f32
    %133 = vector.broadcast %cst_53 : f32 to vector<16x1xf32>
    %134 = arith.divf %132, %133 : vector<16x1xf32>
    %135 = vector.broadcast %134 : vector<16x1xf32> to vector<16x32xf32>
    %136 = arith.subf %128, %135 : vector<16x32xf32>
    %137 = arith.mulf %136, %136 : vector<16x32xf32>
    %cst_54 = arith.constant dense<0.000000e+00> : vector<16xf32>
    %138 = vector.multi_reduction <add>, %137, %cst_54 [1] : vector<16x32xf32> to vector<16xf32>
    %139 = vector.shape_cast %138 : vector<16xf32> to vector<16x1xf32>
    %cst_55 = arith.constant 3.200000e+01 : f32
    %140 = vector.broadcast %cst_55 : f32 to vector<16x1xf32>
    %141 = arith.divf %139, %140 : vector<16x1xf32>
    %cst_56 = arith.constant 9.99999974E-6 : f32
    %142 = vector.broadcast %cst_56 : f32 to vector<16x1xf32>
    %143 = arith.addf %141, %142 : vector<16x1xf32>
    %144 = math.rsqrt %143 : vector<16x1xf32>
    %145 = vector.broadcast %144 : vector<16x1xf32> to vector<16x32xf32>
    %146 = arith.mulf %136, %145 : vector<16x32xf32>
    %147 = vector.broadcast %129 : vector<1x32xf32> to vector<16x32xf32>
    %148 = arith.mulf %146, %147 : vector<16x32xf32>
    %149 = vector.broadcast %130 : vector<1x32xf32> to vector<16x32xf32>
    %150 = arith.addf %148, %149 : vector<16x32xf32>
    %151 = arith.truncf %150 : vector<16x32xf32> to vector<16x32xbf16>
    %cst_57 = arith.constant dense<0.000000e+00> : vector<16x128xf32>
    %152 = tpu.matmul %151, %13, %cst_57 {dimension_numbers = #tpu.dot_dimension_numbers<[1], [0], [0], [1], [0, 0, 1, 1], [], []>} : vector<16x32xbf16>, vector<32x128xbf16>, vector<16x128xf32> -> vector<16x128xf32>
    %153 = vector.broadcast %15 : vector<1x128xf32> to vector<16x128xf32>
    %154 = arith.addf %152, %153 : vector<16x128xf32>
    %155 = arith.mulf %154, %154 : vector<16x128xf32>
    %156 = arith.mulf %154, %155 : vector<16x128xf32>
    %cst_58 = arith.constant 4.471500e-02 : f32
    %157 = vector.broadcast %cst_58 : f32 to vector<16x128xf32>
    %158 = arith.mulf %157, %156 : vector<16x128xf32>
    %159 = arith.addf %154, %158 : vector<16x128xf32>
    %cst_59 = arith.constant 0.797884583 : f32
    %160 = vector.broadcast %cst_59 : f32 to vector<16x128xf32>
    %161 = arith.mulf %160, %159 : vector<16x128xf32>
    %162 = math.tanh %161 : vector<16x128xf32>
    %cst_60 = arith.constant 1.000000e+00 : f32
    %163 = vector.broadcast %cst_60 : f32 to vector<16x128xf32>
    %164 = arith.addf %163, %162 : vector<16x128xf32>
    %cst_61 = arith.constant 5.000000e-01 : f32
    %165 = vector.broadcast %cst_61 : f32 to vector<16x128xf32>
    %166 = arith.mulf %165, %164 : vector<16x128xf32>
    %167 = arith.mulf %154, %166 : vector<16x128xf32>
    %168 = arith.truncf %167 : vector<16x128xf32> to vector<16x128xbf16>
    %cst_62 = arith.constant dense<0.000000e+00> : vector<16x32xf32>
    %169 = tpu.matmul %168, %17, %cst_62 {dimension_numbers = #tpu.dot_dimension_numbers<[1], [0], [0], [1], [0, 0, 1, 1], [], []>} : vector<16x128xbf16>, vector<128x32xbf16>, vector<16x32xf32> -> vector<16x32xf32>
    %170 = vector.broadcast %19 : vector<1x32xf32> to vector<16x32xf32>
    %171 = arith.addf %169, %170 : vector<16x32xf32>
    %172 = arith.addf %128, %171 : vector<16x32xf32>
    %c0_63 = arith.constant 0 : index
    %c0_64 = arith.constant 0 : index
    %173 = vector.load %arg23[%c0_63, %c0_64] : memref<16x32xf32, #tpu.memory_space<vmem>>, vector<16x32xf32>
    tpu.vector_store %arg23[%c0_63, %c0_64], %172 {strides = array<i32>} : memref<16x32xf32, #tpu.memory_space<vmem>>, vector<16x32xf32>,
    %c0_65 = arith.constant 0 : index
    %c0_66 = arith.constant 0 : index
    %174 = vector.load %arg24[%c0_65, %c0_66] : memref<32x32xf32, #tpu.memory_space<vmem>>, vector<32x32xf32>
    %c0_67 = arith.constant 0 : index
    %c0_68 = arith.constant 0 : index
    %c0_69 = arith.constant 0 : index
    %175 = vector.load %arg11[%c0_67, %c0_68, %c0_69] : memref<1x2x32xf32, #tpu.memory_space<vmem>>, vector<1x2x32xf32>
    %176 = vector.shape_cast %175 : vector<1x2x32xf32> to vector<2x32xf32>
    %c0_70 = arith.constant 0 : index
    %c0_71 = arith.constant 0 : index
    %c0_72 = arith.constant 0 : index
    %c0_73 = arith.constant 0 : index
    %177 = vector.load %arg12[%c0_70, %c0_71, %c0_72, %c0_73] : memref<1x3x32x32xbf16, #tpu.memory_space<vmem>>, vector<1x3x32x32xbf16>
    %178 = vector.shape_cast %177 : vector<1x3x32x32xbf16> to vector<3x32x32xbf16>
    %c0_74 = arith.constant 0 : index
    %c0_75 = arith.constant 0 : index
    %c0_76 = arith.constant 0 : index
    %179 = vector.load %arg13[%c0_74, %c0_75, %c0_76] : memref<1x32x32xbf16, #tpu.memory_space<vmem>>, vector<1x32x32xbf16>
    %180 = vector.shape_cast %179 : vector<1x32x32xbf16> to vector<32x32xbf16>
    %c0_77 = arith.constant 0 : index
    %c0_78 = arith.constant 0 : index
    %c0_79 = arith.constant 0 : index
    %181 = vector.load %arg14[%c0_77, %c0_78, %c0_79] : memref<1x2x32xf32, #tpu.memory_space<vmem>>, vector<1x2x32xf32>
    %182 = vector.shape_cast %181 : vector<1x2x32xf32> to vector<2x32xf32>
    %c0_80 = arith.constant 0 : index
    %c0_81 = arith.constant 0 : index
    %c0_82 = arith.constant 0 : index
    %183 = vector.load %arg15[%c0_80, %c0_81, %c0_82] : memref<1x32x128xbf16, #tpu.memory_space<vmem>>, vector<1x32x128xbf16>
    %184 = vector.shape_cast %183 : vector<1x32x128xbf16> to vector<32x128xbf16>
    %c0_83 = arith.constant 0 : index
    %c0_84 = arith.constant 0 : index
    %c0_85 = arith.constant 0 : index
    %185 = vector.load %arg16[%c0_83, %c0_84, %c0_85] : memref<1x1x128xf32, #tpu.memory_space<vmem>>, vector<1x1x128xf32>
    %186 = vector.shape_cast %185 : vector<1x1x128xf32> to vector<1x128xf32>
    %c0_86 = arith.constant 0 : index
    %c0_87 = arith.constant 0 : index
    %c0_88 = arith.constant 0 : index
    %187 = vector.load %arg17[%c0_86, %c0_87, %c0_88] : memref<1x128x32xbf16, #tpu.memory_space<vmem>>, vector<1x128x32xbf16>
    %188 = vector.shape_cast %187 : vector<1x128x32xbf16> to vector<128x32xbf16>
    %c0_89 = arith.constant 0 : index
    %c0_90 = arith.constant 0 : index
    %c0_91 = arith.constant 0 : index
    %189 = vector.load %arg18[%c0_89, %c0_90, %c0_91] : memref<1x1x32xf32, #tpu.memory_space<vmem>>, vector<1x1x32xf32>
    %190 = vector.shape_cast %189 : vector<1x1x32xf32> to vector<1x32xf32>
    %191 = vector.extract_strided_slice %176 {offsets = [0, 0], sizes = [1, 32], strides = [1, 1]} : vector<2x32xf32> to vector<1x32xf32>
    %192 = vector.extract_strided_slice %176 {offsets = [1, 0], sizes = [1, 32], strides = [1, 1]} : vector<2x32xf32> to vector<1x32xf32>
    %cst_92 = arith.constant dense<0.000000e+00> : vector<32xf32>
    %193 = vector.multi_reduction <add>, %174, %cst_92 [1] : vector<32x32xf32> to vector<32xf32>
    %194 = vector.shape_cast %193 : vector<32xf32> to vector<32x1xf32>
    %cst_93 = arith.constant 3.200000e+01 : f32
    %195 = vector.broadcast %cst_93 : f32 to vector<32x1xf32>
    %196 = arith.divf %194, %195 : vector<32x1xf32>
    %197 = vector.broadcast %196 : vector<32x1xf32> to vector<32x32xf32>
    %198 = arith.subf %174, %197 : vector<32x32xf32>
    %199 = arith.mulf %198, %198 : vector<32x32xf32>
    %cst_94 = arith.constant dense<0.000000e+00> : vector<32xf32>
    %200 = vector.multi_reduction <add>, %199, %cst_94 [1] : vector<32x32xf32> to vector<32xf32>
    %201 = vector.shape_cast %200 : vector<32xf32> to vector<32x1xf32>
    %cst_95 = arith.constant 3.200000e+01 : f32
    %202 = vector.broadcast %cst_95 : f32 to vector<32x1xf32>
    %203 = arith.divf %201, %202 : vector<32x1xf32>
    %cst_96 = arith.constant 9.99999974E-6 : f32
    %204 = vector.broadcast %cst_96 : f32 to vector<32x1xf32>
    %205 = arith.addf %203, %204 : vector<32x1xf32>
    %206 = math.rsqrt %205 : vector<32x1xf32>
    %207 = vector.broadcast %206 : vector<32x1xf32> to vector<32x32xf32>
    %208 = arith.mulf %198, %207 : vector<32x32xf32>
    %209 = vector.broadcast %191 : vector<1x32xf32> to vector<32x32xf32>
    %210 = arith.mulf %208, %209 : vector<32x32xf32>
    %211 = vector.broadcast %192 : vector<1x32xf32> to vector<32x32xf32>
    %212 = arith.addf %210, %211 : vector<32x32xf32>
    %213 = arith.truncf %212 : vector<32x32xf32> to vector<32x32xbf16>
    %214 = vector.extract_strided_slice %178 {offsets = [0, 0, 0], sizes = [1, 32, 32], strides = [1, 1, 1]} : vector<3x32x32xbf16> to vector<1x32x32xbf16>
    %215 = vector.shape_cast %214 : vector<1x32x32xbf16> to vector<32x32xbf16>
    %cst_97 = arith.constant dense<0.000000e+00> : vector<32x32xf32>
    %216 = tpu.matmul %213, %215, %cst_97 {dimension_numbers = #tpu.dot_dimension_numbers<[1], [0], [0], [1], [0, 0, 1, 1], [], []>} : vector<32x32xbf16>, vector<32x32xbf16>, vector<32x32xf32> -> vector<32x32xf32>
    %cst_98 = arith.constant 0.353553385 : f32
    %217 = vector.broadcast %cst_98 : f32 to vector<32x32xf32>
    %218 = arith.mulf %216, %217 : vector<32x32xf32>
    %219 = vector.extract_strided_slice %178 {offsets = [1, 0, 0], sizes = [1, 32, 32], strides = [1, 1, 1]} : vector<3x32x32xbf16> to vector<1x32x32xbf16>
    %220 = vector.shape_cast %219 : vector<1x32x32xbf16> to vector<32x32xbf16>
    %cst_99 = arith.constant dense<0.000000e+00> : vector<32x32xf32>
    %221 = tpu.matmul %213, %220, %cst_99 {dimension_numbers = #tpu.dot_dimension_numbers<[1], [0], [0], [1], [0, 0, 1, 1], [], []>} : vector<32x32xbf16>, vector<32x32xbf16>, vector<32x32xf32> -> vector<32x32xf32>
    %222 = vector.extract_strided_slice %178 {offsets = [2, 0, 0], sizes = [1, 32, 32], strides = [1, 1, 1]} : vector<3x32x32xbf16> to vector<1x32x32xbf16>
    %223 = vector.shape_cast %222 : vector<1x32x32xbf16> to vector<32x32xbf16>
    %cst_100 = arith.constant dense<0.000000e+00> : vector<32x32xf32>
    %224 = tpu.matmul %213, %223, %cst_100 {dimension_numbers = #tpu.dot_dimension_numbers<[1], [0], [0], [1], [0, 0, 1, 1], [], []>} : vector<32x32xbf16>, vector<32x32xbf16>, vector<32x32xf32> -> vector<32x32xf32>
    %225 = arith.truncf %218 : vector<32x32xf32> to vector<32x32xbf16>
    %226 = vector.shape_cast %225 : vector<32x32xbf16> to vector<2x16x32xbf16>
    %227 = arith.truncf %221 : vector<32x32xf32> to vector<32x32xbf16>
    %228 = vector.shape_cast %227 : vector<32x32xbf16> to vector<2x16x32xbf16>
    %229 = arith.truncf %224 : vector<32x32xf32> to vector<32x32xbf16>
    %230 = vector.shape_cast %229 : vector<32x32xbf16> to vector<2x16x32xbf16>
    %231 = vector.extract_strided_slice %226 {offsets = [0, 0, 0], sizes = [2, 16, 8], strides = [1, 1, 1]} : vector<2x16x32xbf16> to vector<2x16x8xbf16>
    %232 = vector.extract_strided_slice %228 {offsets = [0, 0, 0], sizes = [2, 16, 8], strides = [1, 1, 1]} : vector<2x16x32xbf16> to vector<2x16x8xbf16>
    "tpu.trace_start"() <{level = 10 : i32, message = "bqe,bke->bqk"}> : () -> ()
    %cst_101 = arith.constant dense<0.000000e+00> : vector<2x16x16xf32>
    %233 = tpu.matmul %231, %232, %cst_101 {dimension_numbers = #tpu.dot_dimension_numbers<[2], [2], [1], [1], [0, 0, 0, 1, 1, 1], [0], [0]>} : vector<2x16x8xbf16>, vector<2x16x8xbf16>, vector<2x16x16xf32> -> vector<2x16x16xf32>
    "tpu.trace_stop"() : () -> ()
    %cst_102 = arith.constant dense<0xFF800000> : vector<2x16xf32>
    %234 = vector.multi_reduction <maximumf>, %233, %cst_102 [2] : vector<2x16x16xf32> to vector<2x16xf32>
    %235 = vector.shape_cast %234 : vector<2x16xf32> to vector<2x16x1xf32>
    %236 = vector.broadcast %235 : vector<2x16x1xf32> to vector<2x16x16xf32>
    %237 = arith.subf %233, %236 : vector<2x16x16xf32>
    %238 = math.exp %237 : vector<2x16x16xf32>
    %cst_103 = arith.constant dense<0.000000e+00> : vector<2x16xf32>
    %239 = vector.multi_reduction <add>, %238, %cst_103 [2] : vector<2x16x16xf32> to vector<2x16xf32>
    %240 = vector.shape_cast %239 : vector<2x16xf32> to vector<2x16x1xf32>
    %241 = tpu.reciprocal %240 {approx = true} : vector<2x16x1xf32> -> vector<2x16x1xf32>
    %242 = vector.broadcast %241 : vector<2x16x1xf32> to vector<2x16x16xf32>
    %243 = arith.mulf %238, %242 : vector<2x16x16xf32>
    %244 = arith.truncf %243 : vector<2x16x16xf32> to vector<2x16x16xbf16>
    %245 = vector.extract_strided_slice %230 {offsets = [0, 0, 0], sizes = [2, 16, 8], strides = [1, 1, 1]} : vector<2x16x32xbf16> to vector<2x16x8xbf16>
    "tpu.trace_start"() <{level = 10 : i32, message = "bqk,bke->bqe"}> : () -> ()
    %cst_104 = arith.constant dense<0.000000e+00> : vector<2x16x8xf32>
    %246 = tpu.matmul %244, %245, %cst_104 {dimension_numbers = #tpu.dot_dimension_numbers<[2], [1], [1], [2], [0, 0, 0, 1, 1, 2], [0], [0]>} : vector<2x16x16xbf16>, vector<2x16x8xbf16>, vector<2x16x8xf32> -> vector<2x16x8xf32>
    "tpu.trace_stop"() : () -> ()
    %247 = vector.extract_strided_slice %226 {offsets = [0, 0, 8], sizes = [2, 16, 8], strides = [1, 1, 1]} : vector<2x16x32xbf16> to vector<2x16x8xbf16>
    %248 = vector.extract_strided_slice %228 {offsets = [0, 0, 8], sizes = [2, 16, 8], strides = [1, 1, 1]} : vector<2x16x32xbf16> to vector<2x16x8xbf16>
    "tpu.trace_start"() <{level = 10 : i32, message = "bqe,bke->bqk"}> : () -> ()
    %cst_105 = arith.constant dense<0.000000e+00> : vector<2x16x16xf32>
    %249 = tpu.matmul %247, %248, %cst_105 {dimension_numbers = #tpu.dot_dimension_numbers<[2], [2], [1], [1], [0, 0, 0, 1, 1, 1], [0], [0]>} : vector<2x16x8xbf16>, vector<2x16x8xbf16>, vector<2x16x16xf32> -> vector<2x16x16xf32>
    "tpu.trace_stop"() : () -> ()
    %cst_106 = arith.constant dense<0xFF800000> : vector<2x16xf32>
    %250 = vector.multi_reduction <maximumf>, %249, %cst_106 [2] : vector<2x16x16xf32> to vector<2x16xf32>
    %251 = vector.shape_cast %250 : vector<2x16xf32> to vector<2x16x1xf32>
    %252 = vector.broadcast %251 : vector<2x16x1xf32> to vector<2x16x16xf32>
    %253 = arith.subf %249, %252 : vector<2x16x16xf32>
    %254 = math.exp %253 : vector<2x16x16xf32>
    %cst_107 = arith.constant dense<0.000000e+00> : vector<2x16xf32>
    %255 = vector.multi_reduction <add>, %254, %cst_107 [2] : vector<2x16x16xf32> to vector<2x16xf32>
    %256 = vector.shape_cast %255 : vector<2x16xf32> to vector<2x16x1xf32>
    %257 = tpu.reciprocal %256 {approx = true} : vector<2x16x1xf32> -> vector<2x16x1xf32>
    %258 = vector.broadcast %257 : vector<2x16x1xf32> to vector<2x16x16xf32>
    %259 = arith.mulf %254, %258 : vector<2x16x16xf32>
    %260 = arith.truncf %259 : vector<2x16x16xf32> to vector<2x16x16xbf16>
    %261 = vector.extract_strided_slice %230 {offsets = [0, 0, 8], sizes = [2, 16, 8], strides = [1, 1, 1]} : vector<2x16x32xbf16> to vector<2x16x8xbf16>
    "tpu.trace_start"() <{level = 10 : i32, message = "bqk,bke->bqe"}> : () -> ()
    %cst_108 = arith.constant dense<0.000000e+00> : vector<2x16x8xf32>
    %262 = tpu.matmul %260, %261, %cst_108 {dimension_numbers = #tpu.dot_dimension_numbers<[2], [1], [1], [2], [0, 0, 0, 1, 1, 2], [0], [0]>} : vector<2x16x16xbf16>, vector<2x16x8xbf16>, vector<2x16x8xf32> -> vector<2x16x8xf32>
    "tpu.trace_stop"() : () -> ()
    %263 = vector.extract_strided_slice %226 {offsets = [0, 0, 16], sizes = [2, 16, 8], strides = [1, 1, 1]} : vector<2x16x32xbf16> to vector<2x16x8xbf16>
    %264 = vector.extract_strided_slice %228 {offsets = [0, 0, 16], sizes = [2, 16, 8], strides = [1, 1, 1]} : vector<2x16x32xbf16> to vector<2x16x8xbf16>
    "tpu.trace_start"() <{level = 10 : i32, message = "bqe,bke->bqk"}> : () -> ()
    %cst_109 = arith.constant dense<0.000000e+00> : vector<2x16x16xf32>
    %265 = tpu.matmul %263, %264, %cst_109 {dimension_numbers = #tpu.dot_dimension_numbers<[2], [2], [1], [1], [0, 0, 0, 1, 1, 1], [0], [0]>} : vector<2x16x8xbf16>, vector<2x16x8xbf16>, vector<2x16x16xf32> -> vector<2x16x16xf32>
    "tpu.trace_stop"() : () -> ()
    %cst_110 = arith.constant dense<0xFF800000> : vector<2x16xf32>
    %266 = vector.multi_reduction <maximumf>, %265, %cst_110 [2] : vector<2x16x16xf32> to vector<2x16xf32>
    %267 = vector.shape_cast %266 : vector<2x16xf32> to vector<2x16x1xf32>
    %268 = vector.broadcast %267 : vector<2x16x1xf32> to vector<2x16x16xf32>
    %269 = arith.subf %265, %268 : vector<2x16x16xf32>
    %270 = math.exp %269 : vector<2x16x16xf32>
    %cst_111 = arith.constant dense<0.000000e+00> : vector<2x16xf32>
    %271 = vector.multi_reduction <add>, %270, %cst_111 [2] : vector<2x16x16xf32> to vector<2x16xf32>
    %272 = vector.shape_cast %271 : vector<2x16xf32> to vector<2x16x1xf32>
    %273 = tpu.reciprocal %272 {approx = true} : vector<2x16x1xf32> -> vector<2x16x1xf32>
    %274 = vector.broadcast %273 : vector<2x16x1xf32> to vector<2x16x16xf32>
    %275 = arith.mulf %270, %274 : vector<2x16x16xf32>
    %276 = arith.truncf %275 : vector<2x16x16xf32> to vector<2x16x16xbf16>
    %277 = vector.extract_strided_slice %230 {offsets = [0, 0, 16], sizes = [2, 16, 8], strides = [1, 1, 1]} : vector<2x16x32xbf16> to vector<2x16x8xbf16>
    "tpu.trace_start"() <{level = 10 : i32, message = "bqk,bke->bqe"}> : () -> ()
    %cst_112 = arith.constant dense<0.000000e+00> : vector<2x16x8xf32>
    %278 = tpu.matmul %276, %277, %cst_112 {dimension_numbers = #tpu.dot_dimension_numbers<[2], [1], [1], [2], [0, 0, 0, 1, 1, 2], [0], [0]>} : vector<2x16x16xbf16>, vector<2x16x8xbf16>, vector<2x16x8xf32> -> vector<2x16x8xf32>
    "tpu.trace_stop"() : () -> ()
    %279 = vector.extract_strided_slice %226 {offsets = [0, 0, 24], sizes = [2, 16, 8], strides = [1, 1, 1]} : vector<2x16x32xbf16> to vector<2x16x8xbf16>
    %280 = vector.extract_strided_slice %228 {offsets = [0, 0, 24], sizes = [2, 16, 8], strides = [1, 1, 1]} : vector<2x16x32xbf16> to vector<2x16x8xbf16>
    "tpu.trace_start"() <{level = 10 : i32, message = "bqe,bke->bqk"}> : () -> ()
    %cst_113 = arith.constant dense<0.000000e+00> : vector<2x16x16xf32>
    %281 = tpu.matmul %279, %280, %cst_113 {dimension_numbers = #tpu.dot_dimension_numbers<[2], [2], [1], [1], [0, 0, 0, 1, 1, 1], [0], [0]>} : vector<2x16x8xbf16>, vector<2x16x8xbf16>, vector<2x16x16xf32> -> vector<2x16x16xf32>
    "tpu.trace_stop"() : () -> ()
    %cst_114 = arith.constant dense<0xFF800000> : vector<2x16xf32>
    %282 = vector.multi_reduction <maximumf>, %281, %cst_114 [2] : vector<2x16x16xf32> to vector<2x16xf32>
    %283 = vector.shape_cast %282 : vector<2x16xf32> to vector<2x16x1xf32>
    %284 = vector.broadcast %283 : vector<2x16x1xf32> to vector<2x16x16xf32>
    %285 = arith.subf %281, %284 : vector<2x16x16xf32>
    %286 = math.exp %285 : vector<2x16x16xf32>
    %cst_115 = arith.constant dense<0.000000e+00> : vector<2x16xf32>
    %287 = vector.multi_reduction <add>, %286, %cst_115 [2] : vector<2x16x16xf32> to vector<2x16xf32>
    %288 = vector.shape_cast %287 : vector<2x16xf32> to vector<2x16x1xf32>
    %289 = tpu.reciprocal %288 {approx = true} : vector<2x16x1xf32> -> vector<2x16x1xf32>
    %290 = vector.broadcast %289 : vector<2x16x1xf32> to vector<2x16x16xf32>
    %291 = arith.mulf %286, %290 : vector<2x16x16xf32>
    %292 = arith.truncf %291 : vector<2x16x16xf32> to vector<2x16x16xbf16>
    %293 = vector.extract_strided_slice %230 {offsets = [0, 0, 24], sizes = [2, 16, 8], strides = [1, 1, 1]} : vector<2x16x32xbf16> to vector<2x16x8xbf16>
    "tpu.trace_start"() <{level = 10 : i32, message = "bqk,bke->bqe"}> : () -> ()
    %cst_116 = arith.constant dense<0.000000e+00> : vector<2x16x8xf32>
    %294 = tpu.matmul %292, %293, %cst_116 {dimension_numbers = #tpu.dot_dimension_numbers<[2], [1], [1], [2], [0, 0, 0, 1, 1, 2], [0], [0]>} : vector<2x16x16xbf16>, vector<2x16x8xbf16>, vector<2x16x8xf32> -> vector<2x16x8xf32>
    "tpu.trace_stop"() : () -> ()
    %295 = tpu.concatenate %246, %262, %278, %294 in 2 : vector<2x16x8xf32>, vector<2x16x8xf32>, vector<2x16x8xf32>, vector<2x16x8xf32> -> vector<2x16x32xf32>
    %296 = vector.shape_cast %295 : vector<2x16x32xf32> to vector<32x32xf32>
    %297 = arith.truncf %296 : vector<32x32xf32> to vector<32x32xbf16>
    %cst_117 = arith.constant dense<0.000000e+00> : vector<32x32xf32>
    %298 = tpu.matmul %297, %180, %cst_117 {dimension_numbers = #tpu.dot_dimension_numbers<[1], [0], [0], [1], [0, 0, 1, 1], [], []>} : vector<32x32xbf16>, vector<32x32xbf16>, vector<32x32xf32> -> vector<32x32xf32>
    %299 = arith.addf %174, %298 : vector<32x32xf32>
    %300 = vector.extract_strided_slice %182 {offsets = [0, 0], sizes = [1, 32], strides = [1, 1]} : vector<2x32xf32> to vector<1x32xf32>
    %301 = vector.extract_strided_slice %182 {offsets = [1, 0], sizes = [1, 32], strides = [1, 1]} : vector<2x32xf32> to vector<1x32xf32>
    %cst_118 = arith.constant dense<0.000000e+00> : vector<32xf32>
    %302 = vector.multi_reduction <add>, %299, %cst_118 [1] : vector<32x32xf32> to vector<32xf32>
    %303 = vector.shape_cast %302 : vector<32xf32> to vector<32x1xf32>
    %cst_119 = arith.constant 3.200000e+01 : f32
    %304 = vector.broadcast %cst_119 : f32 to vector<32x1xf32>
    %305 = arith.divf %303, %304 : vector<32x1xf32>
    %306 = vector.broadcast %305 : vector<32x1xf32> to vector<32x32xf32>
    %307 = arith.subf %299, %306 : vector<32x32xf32>
    %308 = arith.mulf %307, %307 : vector<32x32xf32>
    %cst_120 = arith.constant dense<0.000000e+00> : vector<32xf32>
    %309 = vector.multi_reduction <add>, %308, %cst_120 [1] : vector<32x32xf32> to vector<32xf32>
    %310 = vector.shape_cast %309 : vector<32xf32> to vector<32x1xf32>
    %cst_121 = arith.constant 3.200000e+01 : f32
    %311 = vector.broadcast %cst_121 : f32 to vector<32x1xf32>
    %312 = arith.divf %310, %311 : vector<32x1xf32>
    %cst_122 = arith.constant 9.99999974E-6 : f32
    %313 = vector.broadcast %cst_122 : f32 to vector<32x1xf32>
    %314 = arith.addf %312, %313 : vector<32x1xf32>
    %315 = math.rsqrt %314 : vector<32x1xf32>
    %316 = vector.broadcast %315 : vector<32x1xf32> to vector<32x32xf32>
    %317 = arith.mulf %307, %316 : vector<32x32xf32>
    %318 = vector.broadcast %300 : vector<1x32xf32> to vector<32x32xf32>
    %319 = arith.mulf %317, %318 : vector<32x32xf32>
    %320 = vector.broadcast %301 : vector<1x32xf32> to vector<32x32xf32>
    %321 = arith.addf %319, %320 : vector<32x32xf32>
    %322 = arith.truncf %321 : vector<32x32xf32> to vector<32x32xbf16>
    %cst_123 = arith.constant dense<0.000000e+00> : vector<32x128xf32>
    %323 = tpu.matmul %322, %184, %cst_123 {dimension_numbers = #tpu.dot_dimension_numbers<[1], [0], [0], [1], [0, 0, 1, 1], [], []>} : vector<32x32xbf16>, vector<32x128xbf16>, vector<32x128xf32> -> vector<32x128xf32>
    %324 = vector.broadcast %186 : vector<1x128xf32> to vector<32x128xf32>
    %325 = arith.addf %323, %324 : vector<32x128xf32>
    %326 = arith.mulf %325, %325 : vector<32x128xf32>
    %327 = arith.mulf %325, %326 : vector<32x128xf32>
    %cst_124 = arith.constant 4.471500e-02 : f32
    %328 = vector.broadcast %cst_124 : f32 to vector<32x128xf32>
    %329 = arith.mulf %328, %327 : vector<32x128xf32>
    %330 = arith.addf %325, %329 : vector<32x128xf32>
    %cst_125 = arith.constant 0.797884583 : f32
    %331 = vector.broadcast %cst_125 : f32 to vector<32x128xf32>
    %332 = arith.mulf %331, %330 : vector<32x128xf32>
    %333 = math.tanh %332 : vector<32x128xf32>
    %cst_126 = arith.constant 1.000000e+00 : f32
    %334 = vector.broadcast %cst_126 : f32 to vector<32x128xf32>
    %335 = arith.addf %334, %333 : vector<32x128xf32>
    %cst_127 = arith.constant 5.000000e-01 : f32
    %336 = vector.broadcast %cst_127 : f32 to vector<32x128xf32>
    %337 = arith.mulf %336, %335 : vector<32x128xf32>
    %338 = arith.mulf %325, %337 : vector<32x128xf32>
    %339 = arith.truncf %338 : vector<32x128xf32> to vector<32x128xbf16>
    %cst_128 = arith.constant dense<0.000000e+00> : vector<32x32xf32>
    %340 = tpu.matmul %339, %188, %cst_128 {dimension_numbers = #tpu.dot_dimension_numbers<[1], [0], [0], [1], [0, 0, 1, 1], [], []>} : vector<32x128xbf16>, vector<128x32xbf16>, vector<32x32xf32> -> vector<32x32xf32>
    %341 = vector.broadcast %190 : vector<1x32xf32> to vector<32x32xf32>
    %342 = arith.addf %340, %341 : vector<32x32xf32>
    %343 = arith.addf %299, %342 : vector<32x32xf32>
    %c0_129 = arith.constant 0 : index
    %c0_130 = arith.constant 0 : index
    %344 = vector.load %arg24[%c0_129, %c0_130] : memref<32x32xf32, #tpu.memory_space<vmem>>, vector<32x32xf32>
    tpu.vector_store %arg24[%c0_129, %c0_130], %343 {strides = array<i32>} : memref<32x32xf32, #tpu.memory_space<vmem>>, vector<32x32xf32>,
    %c1_i32 = arith.constant 1 : i32
    %345 = arith.cmpi eq, %arg0, %c1_i32 : i32
    %346 = arith.extui %345 : i1 to i32
    %c0_i32_131 = arith.constant 0 : i32
    %347 = arith.cmpi ne, %346, %c0_i32_131 : i32
    scf.if %347 {
      %c0_132 = arith.constant 0 : index
      %c0_133 = arith.constant 0 : index
      %348 = vector.load %arg23[%c0_132, %c0_133] : memref<16x32xf32, #tpu.memory_space<vmem>>, vector<16x32xf32>
      %349 = vector.shape_cast %348 : vector<16x32xf32> to vector<2x8x32xf32>
      %cst_134 = arith.constant dense<0.000000e+00> : vector<2x32xf32>
      %350 = vector.multi_reduction <add>, %349, %cst_134 [1] : vector<2x8x32xf32> to vector<2x32xf32>
      %cst_135 = arith.constant 8.000000e+00 : f32
      %351 = vector.broadcast %cst_135 : f32 to vector<2x32xf32>
      %352 = arith.divf %350, %351 : vector<2x32xf32>
      %c0_136 = arith.constant 0 : index
      %c0_137 = arith.constant 0 : index
      %353 = vector.load %arg24[%c0_136, %c0_137] : memref<32x32xf32, #tpu.memory_space<vmem>>, vector<32x32xf32>
      %354 = vector.shape_cast %353 : vector<32x32xf32> to vector<2x16x32xf32>
      %cst_138 = arith.constant dense<0.000000e+00> : vector<2x32xf32>
      %355 = vector.multi_reduction <add>, %354, %cst_138 [1] : vector<2x16x32xf32> to vector<2x32xf32>
      %cst_139 = arith.constant 1.600000e+01 : f32
      %356 = vector.broadcast %cst_139 : f32 to vector<2x32xf32>
      %357 = arith.divf %355, %356 : vector<2x32xf32>
      %358 = arith.truncf %352 : vector<2x32xf32> to vector<2x32xbf16>
      %c0_140 = arith.constant 0 : index
      %c0_141 = arith.constant 0 : index
      %359 = vector.load %arg19[%c0_140, %c0_141] : memref<32x32xbf16, #tpu.memory_space<vmem>>, vector<32x32xbf16>
      %cst_142 = arith.constant dense<0.000000e+00> : vector<2x32xf32>
      %360 = tpu.matmul %358, %359, %cst_142 {dimension_numbers = #tpu.dot_dimension_numbers<[1], [0], [0], [1], [0, 0, 1, 1], [], []>} : vector<2x32xbf16>, vector<32x32xbf16>, vector<2x32xf32> -> vector<2x32xf32>
      %361 = arith.truncf %357 : vector<2x32xf32> to vector<2x32xbf16>
      %c0_143 = arith.constant 0 : index
      %c0_144 = arith.constant 0 : index
      %362 = vector.load %arg20[%c0_143, %c0_144] : memref<32x32xbf16, #tpu.memory_space<vmem>>, vector<32x32xbf16>
      %cst_145 = arith.constant dense<0.000000e+00> : vector<2x32xf32>
      %363 = tpu.matmul %361, %362, %cst_145 {dimension_numbers = #tpu.dot_dimension_numbers<[1], [0], [0], [1], [0, 0, 1, 1], [], []>} : vector<2x32xbf16>, vector<32x32xbf16>, vector<2x32xf32> -> vector<2x32xf32>
      %364 = arith.mulf %360, %360 : vector<2x32xf32>
      %cst_146 = arith.constant dense<0.000000e+00> : vector<2xf32>
      %365 = vector.multi_reduction <add>, %364, %cst_146 [1] : vector<2x32xf32> to vector<2xf32>
      %366 = vector.shape_cast %365 : vector<2xf32> to vector<2x1xf32>
      %cst_147 = arith.constant 1.000000e-24 : f32
      %367 = vector.broadcast %cst_147 : f32 to vector<2x1xf32>
      %368 = arith.maximumf %366, %367 : vector<2x1xf32>
      %369 = math.rsqrt %368 : vector<2x1xf32>
      %370 = vector.broadcast %369 : vector<2x1xf32> to vector<2x32xf32>
      %371 = arith.mulf %360, %370 : vector<2x32xf32>
      %372 = arith.mulf %363, %363 : vector<2x32xf32>
      %cst_148 = arith.constant dense<0.000000e+00> : vector<2xf32>
      %373 = vector.multi_reduction <add>, %372, %cst_148 [1] : vector<2x32xf32> to vector<2xf32>
      %374 = vector.shape_cast %373 : vector<2xf32> to vector<2x1xf32>
      %cst_149 = arith.constant 1.000000e-24 : f32
      %375 = vector.broadcast %cst_149 : f32 to vector<2x1xf32>
      %376 = arith.maximumf %374, %375 : vector<2x1xf32>
      %377 = math.rsqrt %376 : vector<2x1xf32>
      %378 = vector.broadcast %377 : vector<2x1xf32> to vector<2x32xf32>
      %379 = arith.mulf %363, %378 : vector<2x32xf32>
      %380 = arith.mulf %371, %379 : vector<2x32xf32>
      %cst_150 = arith.constant dense<0.000000e+00> : vector<2xf32>
      %381 = vector.multi_reduction <add>, %380, %cst_150 [1] : vector<2x32xf32> to vector<2xf32>
      %382 = vector.shape_cast %381 : vector<2xf32> to vector<2x1xf32>
      %c0_151 = arith.constant 0 : index
      %c0_152 = arith.constant 0 : index
      %383 = memref.load %arg21[%c0_151, %c0_152] : memref<1x1xf32, #tpu.memory_space<smem>>
      %384 = math.exp %383 : f32
      %385 = vector.broadcast %384 : f32 to vector<2x1xf32>
      %386 = arith.mulf %382, %385 : vector<2x1xf32>
      %c0_153 = arith.constant 0 : index
      %c0_154 = arith.constant 0 : index
      %387 = vector.load %arg22[%c0_153, %c0_154] : memref<2x1xf32, #tpu.memory_space<vmem>>, vector<2x1xf32>
      tpu.vector_store %arg22[%c0_153, %c0_154], %386 {strides = array<i32>} : memref<2x1xf32, #tpu.memory_space<vmem>>, vector<2x1xf32>,
    } else {
    }
    return
  }
  func.func @transform_2(%arg0: i32) -> (i32, i32, i32) {
    %c0_i32 = arith.constant 0 : i32
    %c0_i32_0 = arith.constant 0 : i32
    %c0_i32_1 = arith.constant 0 : i32
    return %arg0, %c0_i32, %c0_i32_0 : i32, i32, i32
  }
  func.func @transform_3(%arg0: i32) -> (i32, i32, i32, i32) {
    %c0_i32 = arith.constant 0 : i32
    %c0_i32_0 = arith.constant 0 : i32
    %c0_i32_1 = arith.constant 0 : i32
    %c0_i32_2 = arith.constant 0 : i32
    return %arg0, %c0_i32, %c0_i32_0, %c0_i32_1 : i32, i32, i32, i32
  }
  func.func @transform_4(%arg0: i32) -> (i32, i32, i32) {
    %c0_i32 = arith.constant 0 : i32
    %c0_i32_0 = arith.constant 0 : i32
    %c0_i32_1 = arith.constant 0 : i32
    return %arg0, %c0_i32, %c0_i32_0 : i32, i32, i32
  }
  func.func @transform_5(%arg0: i32) -> (i32, i32, i32) {
    %c0_i32 = arith.constant 0 : i32
    %c0_i32_0 = arith.constant 0 : i32
    %c0_i32_1 = arith.constant 0 : i32
    return %arg0, %c0_i32, %c0_i32_0 : i32, i32, i32
  }
  func.func @transform_6(%arg0: i32) -> (i32, i32, i32) {
    %c0_i32 = arith.constant 0 : i32
    %c0_i32_0 = arith.constant 0 : i32
    %c0_i32_1 = arith.constant 0 : i32
    return %arg0, %c0_i32, %c0_i32_0 : i32, i32, i32
  }
  func.func @transform_7(%arg0: i32) -> (i32, i32, i32) {
    %c0_i32 = arith.constant 0 : i32
    %c0_i32_0 = arith.constant 0 : i32
    %c0_i32_1 = arith.constant 0 : i32
    return %arg0, %c0_i32, %c0_i32_0 : i32, i32, i32
  }
  func.func @transform_8(%arg0: i32) -> (i32, i32, i32) {
    %c0_i32 = arith.constant 0 : i32
    %c0_i32_0 = arith.constant 0 : i32
    %c0_i32_1 = arith.constant 0 : i32
    return %arg0, %c0_i32, %c0_i32_0 : i32, i32, i32
  }
  func.func @transform_9(%arg0: i32) -> (i32, i32, i32) {
    %c0_i32 = arith.constant 0 : i32
    %c0_i32_0 = arith.constant 0 : i32
    %c0_i32_1 = arith.constant 0 : i32
    return %arg0, %c0_i32, %c0_i32_0 : i32, i32, i32
  }
  func.func @transform_10(%arg0: i32) -> (i32, i32, i32) {
    %c0_i32 = arith.constant 0 : i32
    %c0_i32_0 = arith.constant 0 : i32
    %c0_i32_1 = arith.constant 0 : i32
    return %arg0, %c0_i32, %c0_i32_0 : i32, i32, i32
  }
  func.func @transform_11(%arg0: i32) -> (i32, i32, i32, i32) {
    %c0_i32 = arith.constant 0 : i32
    %c0_i32_0 = arith.constant 0 : i32
    %c0_i32_1 = arith.constant 0 : i32
    %c0_i32_2 = arith.constant 0 : i32
    return %arg0, %c0_i32, %c0_i32_0, %c0_i32_1 : i32, i32, i32, i32
  }
  func.func @transform_12(%arg0: i32) -> (i32, i32, i32) {
    %c0_i32 = arith.constant 0 : i32
    %c0_i32_0 = arith.constant 0 : i32
    %c0_i32_1 = arith.constant 0 : i32
    return %arg0, %c0_i32, %c0_i32_0 : i32, i32, i32
  }
  func.func @transform_13(%arg0: i32) -> (i32, i32, i32) {
    %c0_i32 = arith.constant 0 : i32
    %c0_i32_0 = arith.constant 0 : i32
    %c0_i32_1 = arith.constant 0 : i32
    return %arg0, %c0_i32, %c0_i32_0 : i32, i32, i32
  }
  func.func @transform_14(%arg0: i32) -> (i32, i32, i32) {
    %c0_i32 = arith.constant 0 : i32
    %c0_i32_0 = arith.constant 0 : i32
    %c0_i32_1 = arith.constant 0 : i32
    return %arg0, %c0_i32, %c0_i32_0 : i32, i32, i32
  }
  func.func @transform_15(%arg0: i32) -> (i32, i32, i32) {
    %c0_i32 = arith.constant 0 : i32
    %c0_i32_0 = arith.constant 0 : i32
    %c0_i32_1 = arith.constant 0 : i32
    return %arg0, %c0_i32, %c0_i32_0 : i32, i32, i32
  }
  func.func @transform_16(%arg0: i32) -> (i32, i32, i32) {
    %c0_i32 = arith.constant 0 : i32
    %c0_i32_0 = arith.constant 0 : i32
    %c0_i32_1 = arith.constant 0 : i32
    return %arg0, %c0_i32, %c0_i32_0 : i32, i32, i32
  }
  func.func @transform_17(%arg0: i32) -> (i32, i32, i32) {
    %c0_i32 = arith.constant 0 : i32
    %c0_i32_0 = arith.constant 0 : i32
    %c0_i32_1 = arith.constant 0 : i32
    return %arg0, %c0_i32, %c0_i32_0 : i32, i32, i32
  }
  func.func @transform_18(%arg0: i32) -> (i32, i32) {
    %c0_i32 = arith.constant 0 : i32
    %c0_i32_0 = arith.constant 0 : i32
    %c0_i32_1 = arith.constant 0 : i32
    return %c0_i32, %c0_i32_0 : i32, i32
  }
  func.func @transform_19(%arg0: i32) -> (i32, i32) {
    %c0_i32 = arith.constant 0 : i32
    %c0_i32_0 = arith.constant 0 : i32
    %c0_i32_1 = arith.constant 0 : i32
    return %c0_i32, %c0_i32_0 : i32, i32
  }
  func.func @transform_20(%arg0: i32) -> (i32, i32) {
    %c0_i32 = arith.constant 0 : i32
    %c0_i32_0 = arith.constant 0 : i32
    %c0_i32_1 = arith.constant 0 : i32
    return %c0_i32, %c0_i32_0 : i32, i32
  }
  func.func @transform_21(%arg0: i32) -> (i32, i32) {
    %c0_i32 = arith.constant 0 : i32
    %c0_i32_0 = arith.constant 0 : i32
    %c0_i32_1 = arith.constant 0 : i32
    return %c0_i32, %c0_i32_0 : i32, i32
  }
}

</mosaic_0001>

<llo_original>
// kernel: voiceclip_forward.1
$region0: #{voiceclip_forward.1}
  #allocation0 [shape = 'u32[]', space=smem, size = 0x4, offset = 0x4, fixed_abs, tag = 'smem constant byte address 0x4 - core index']
  #allocation1 [shape = 'u32[144,128]{1,0:T(1,128)}', space=vmem, size = 0x12000, scoped, tag = 'internal scratch']
  #allocation2 [shape = 'f32[16,32]{1,0:T(8,128)}', space=vmem, size = 0x2000, scoped, tag = 'scratch operand']
  #allocation3 [shape = 'f32[32,32]{1,0:T(8,128)}', space=vmem, size = 0x4000, scoped, tag = 'scratch operand']
  #allocation4 [shape = 's32[2]{0}', space=sflag, size = 0x8, scoped, tag = 'scratch operand']
  #allocation5 [shape = 'f32[1,1]{1,0:T(1,128)S(6)}', space=smem, size = 0x200, scoped, tag = 'scoped memory for voiceclip_forward.1']
  #allocation6 [shape = 's32[]', space=sflag, size = 0x4, offset = 0, fixed_abs, tag = 'sflag constant byte address 0x0 - dummy sync flag']
  #allocation7 [shape = 's32[]', space=sflag, size = 0x4, offset = 0, fixed_abs, tag = 'sflag constant byte address 0x0 - dummy sync flag']
  %s0 = inlined_call_operand.vmem [shape: f32[16,32], index: 0, kind: input, shape index: {}]
  %s1 = inlined_call_operand.vmem [shape: f32[32,32], index: 1, kind: input, shape index: {}]
  %s2 = inlined_call_operand.vmem [shape: f32[2,2,32], index: 2, kind: input, shape index: {}]
  %s3 = inlined_call_operand.vmem [shape: bf16[2,3,32,32], index: 3, kind: input, shape index: {}]
  %s4 = inlined_call_operand.vmem [shape: bf16[2,32,32], index: 4, kind: input, shape index: {}]
  %s5 = inlined_call_operand.vmem [shape: f32[2,2,32], index: 5, kind: input, shape index: {}]
  %s6 = inlined_call_operand.vmem [shape: bf16[2,32,128], index: 6, kind: input, shape index: {}]
  %s7 = inlined_call_operand.vmem [shape: f32[2,1,128], index: 7, kind: input, shape index: {}]
  %s8 = inlined_call_operand.vmem [shape: bf16[2,128,32], index: 8, kind: input, shape index: {}]
  %s9 = inlined_call_operand.vmem [shape: f32[2,1,32], index: 9, kind: input, shape index: {}]
  %s10 = inlined_call_operand.vmem [shape: f32[2,2,32], index: 10, kind: input, shape index: {}]
  %s11 = inlined_call_operand.vmem [shape: bf16[2,3,32,32], index: 11, kind: input, shape index: {}]
  %s12 = inlined_call_operand.vmem [shape: bf16[2,32,32], index: 12, kind: input, shape index: {}]
  %s13 = inlined_call_operand.vmem [shape: f32[2,2,32], index: 13, kind: input, shape index: {}]
  %s14 = inlined_call_operand.vmem [shape: bf16[2,32,128], index: 14, kind: input, shape index: {}]
  %s15 = inlined_call_operand.vmem [shape: f32[2,1,128], index: 15, kind: input, shape index: {}]
  %s16 = inlined_call_operand.vmem [shape: bf16[2,128,32], index: 16, kind: input, shape index: {}]
  %s17 = inlined_call_operand.vmem [shape: f32[2,1,32], index: 17, kind: input, shape index: {}]
  %s18 = inlined_call_operand.vmem [shape: bf16[32,32], index: 18, kind: input, shape index: {}]
  %s19 = inlined_call_operand.vmem [shape: bf16[32,32], index: 19, kind: input, shape index: {}]
  %s20 = inlined_call_operand.<no memory space> [shape: f32[1,1], index: 20, kind: input, shape index: {}]
  %s21 = inlined_call_operand.vmem [shape: f32[2,1], index: 21, kind: output, shape index: {}]
  %s22 = sld [smem:[#allocation0]]
  $region185: #{voiceclip_forward.1} parent=0
    _
  %s24 = ssub.s32 1, %s22
  %s25 = scalar_select 0, %s24, %s22
  %26 = sst [smem:[#allocation5]] %s20
  loop: start=0, step=1, limit=4
  $region2: #{voiceclip_forward.1} parent=0 // loop_pre_header
    _
  $region3: #{voiceclip_forward.1} parent=0 // loop_header
    %s28 = sphi 0, %s32
    %p29 = scmp.ge.s32.totalorder %s28, 4
    %s38 = sphi 0, %s40
    %s41 = sphi 0, %s38
    %s42 = sphi 0, %s41
    %s58 = sphi 0, %s42
    %s64 = sphi 0, %s66
    %s67 = sphi 0, %s64
    %s68 = sphi 0, %s67
    %s84 = sphi 0, %s68
    %s90 = sphi 0, %s92
    %s93 = sphi 0, %s90
    %s94 = sphi 0, %s93
    %s110 = sphi 0, %s94
    %s116 = sphi 0, %s118
    %s119 = sphi 0, %s116
    %s120 = sphi 0, %s119
    %s136 = sphi 0, %s120
    %s142 = sphi 0, %s144
    %s145 = sphi 0, %s142
    %s146 = sphi 0, %s145
    %s162 = sphi 0, %s146
    %s168 = sphi 0, %s170
    %s171 = sphi 0, %s168
    %s172 = sphi 0, %s171
    %s188 = sphi 0, %s172
    %s194 = sphi 0, %s196
    %s197 = sphi 0, %s194
    %s198 = sphi 0, %s197
    %s214 = sphi 0, %s198
    %s220 = sphi 0, %s222
    %s223 = sphi 0, %s220
    %s224 = sphi 0, %s223
    %s240 = sphi 0, %s224
    %s246 = sphi 0, %s248
    %s249 = sphi 0, %s246
    %s250 = sphi 0, %s249
    %s266 = sphi 0, %s250
    %s272 = sphi 0, %s274
    %s275 = sphi 0, %s272
    %s276 = sphi 0, %s275
    %s292 = sphi 0, %s276
    %s298 = sphi 0, %s300
    %s301 = sphi 0, %s298
    %s302 = sphi 0, %s301
    %s318 = sphi 0, %s302
    %s324 = sphi 0, %s326
    %s327 = sphi 0, %s324
    %s328 = sphi 0, %s327
    %s344 = sphi 0, %s328
    %s350 = sphi 0, %s352
    %s353 = sphi 0, %s350
    %s354 = sphi 0, %s353
    %s370 = sphi 0, %s354
    %s376 = sphi 0, %s378
    %s379 = sphi 0, %s376
    %s380 = sphi 0, %s379
    %s396 = sphi 0, %s380
    %s402 = sphi 0, %s404
    %s405 = sphi 0, %s402
    %s406 = sphi 0, %s405
    %s422 = sphi 0, %s406
    %s428 = sphi 0, %s430
    %s431 = sphi 0, %s428
    %s432 = sphi 0, %s431
    %s448 = sphi 0, %s432
    %s452 = sphi 0, %s452
    %s454 = sphi 0, %s452
    %s455 = sphi 0, %s454
    %s469 = sphi 0, %s455
    %s473 = sphi 0, %s473
    %s475 = sphi 0, %s473
    %s476 = sphi 0, %s475
    %s490 = sphi 0, %s476
    %s494 = sphi 0, %s494
    %s496 = sphi 0, %s494
    %s497 = sphi 0, %s496
    %s511 = sphi 0, %s497
    %s515 = sphi 0, %s515
    %s517 = sphi 0, %s515
    %s518 = sphi 0, %s517
    %s532 = sphi 0, %s518
  $region4: #{voiceclip_forward.1} parent=0 // loop_header_branch
    %31 = sbr.rel (%p29) target = $region8
  $region5: #{voiceclip_forward.1} parent=0 // loop_body
    %s33 = ssub.s32 %s28, 1
    %s34 = ssub.s32 %s28, 2
    %s35 = sadd.s32 %s28, 1
    %s36 = ssub.s32 %s28, %s35
    %p37 = scmp.eq.s32.totalorder %s36, 0
    %s39 = sadd.s32 %s38, 1
    %s40 = scalar_select %p37, %s38, %s39
    %p43 = pneg %p37
    %p44 = scmp.eq.s32.totalorder %s28, 1
    %p45 = por %p43, %p44
    %p46 = scmp.ne.s32.totalorder %s38, %s41
    %p47 = scmp.eq.s32.totalorder %s28, 0
    %p48 = por %p46, %p47
    %p49 = scmp.ne.s32.totalorder %s38, %s41
    %p50 = scmp.eq.s32.totalorder %s33, 1
    %p51 = por %p49, %p50
    %p52 = scmp.ne.s32.totalorder %s41, %s42
    %p53 = scmp.eq.s32.totalorder %s33, 0
    %p54 = por %p52, %p53
    %p55 = scmp.ne.s32.totalorder %s41, %s42
    %p56 = scmp.eq.s32.totalorder %s34, 1
    %p57 = por %p55, %p56
    %p59 = scmp.ne.s32.totalorder %s42, %s58
    %p60 = scmp.eq.s32.totalorder %s34, 0
    %p61 = por %p59, %p60
    %s62 = ssub.s32 %s28, %s35
    %p63 = scmp.eq.s32.totalorder %s62, 0
    %s65 = sadd.s32 %s64, 1
    %s66 = scalar_select %p63, %s64, %s65
    %p69 = pneg %p63
    %p70 = scmp.eq.s32.totalorder %s28, 1
    %p71 = por %p69, %p70
    %p72 = scmp.ne.s32.totalorder %s64, %s67
    %p73 = scmp.eq.s32.totalorder %s28, 0
    %p74 = por %p72, %p73
    %p75 = scmp.ne.s32.totalorder %s64, %s67
    %p76 = scmp.eq.s32.totalorder %s33, 1
    %p77 = por %p75, %p76
    %p78 = scmp.ne.s32.totalorder %s67, %s68
    %p79 = scmp.eq.s32.totalorder %s33, 0
    %p80 = por %p78, %p79
    %p81 = scmp.ne.s32.totalorder %s67, %s68
    %p82 = scmp.eq.s32.totalorder %s34, 1
    %p83 = por %p81, %p82
    %p85 = scmp.ne.s32.totalorder %s68, %s84
    %p86 = scmp.eq.s32.totalorder %s34, 0
    %p87 = por %p85, %p86
    %s88 = ssub.s32 %s28, %s35
    %p89 = scmp.eq.s32.totalorder %s88, 0
    %s91 = sadd.s32 %s90, 1
    %s92 = scalar_select %p89, %s90, %s91
    %p95 = pneg %p89
    %p96 = scmp.eq.s32.totalorder %s28, 1
    %p97 = por %p95, %p96
    %p98 = scmp.ne.s32.totalorder %s90, %s93
    %p99 = scmp.eq.s32.totalorder %s28, 0
    %p100 = por %p98, %p99
    %p101 = scmp.ne.s32.totalorder %s90, %s93
    %p102 = scmp.eq.s32.totalorder %s33, 1
    %p103 = por %p101, %p102
    %p104 = scmp.ne.s32.totalorder %s93, %s94
    %p105 = scmp.eq.s32.totalorder %s33, 0
    %p106 = por %p104, %p105
    %p107 = scmp.ne.s32.totalorder %s93, %s94
    %p108 = scmp.eq.s32.totalorder %s34, 1
    %p109 = por %p107, %p108
    %p111 = scmp.ne.s32.totalorder %s94, %s110
    %p112 = scmp.eq.s32.totalorder %s34, 0
    %p113 = por %p111, %p112
    %s114 = ssub.s32 %s28, %s35
    %p115 = scmp.eq.s32.totalorder %s114, 0
    %s117 = sadd.s32 %s116, 1
    %s118 = scalar_select %p115, %s116, %s117
    %p121 = pneg %p115
    %p122 = scmp.eq.s32.totalorder %s28, 1
    %p123 = por %p121, %p122
    %p124 = scmp.ne.s32.totalorder %s116, %s119
    %p125 = scmp.eq.s32.totalorder %s28, 0
    %p126 = por %p124, %p125
    %p127 = scmp.ne.s32.totalorder %s116, %s119
    %p128 = scmp.eq.s32.totalorder %s33, 1
    %p129 = por %p127, %p128
    %p130 = scmp.ne.s32.totalorder %s119, %s120
    %p131 = scmp.eq.s32.totalorder %s33, 0
    %p132 = por %p130, %p131
    %p133 = scmp.ne.s32.totalorder %s119, %s120
    %p134 = scmp.eq.s32.totalorder %s34, 1
    %p135 = por %p133, %p134
    %p137 = scmp.ne.s32.totalorder %s120, %s136
    %p138 = scmp.eq.s32.totalorder %s34, 0
    %p139 = por %p137, %p138
    %s140 = ssub.s32 %s28, %s35
    %p141 = scmp.eq.s32.totalorder %s140, 0
    %s143 = sadd.s32 %s142, 1
    %s144 = scalar_select %p141, %s142, %s143
    %p147 = pneg %p141
    %p148 = scmp.eq.s32.totalorder %s28, 1
    %p149 = por %p147, %p148
    %p150 = scmp.ne.s32.totalorder %s142, %s145
    %p151 = scmp.eq.s32.totalorder %s28, 0
    %p152 = por %p150, %p151
    %p153 = scmp.ne.s32.totalorder %s142, %s145
    %p154 = scmp.eq.s32.totalorder %s33, 1
    %p155 = por %p153, %p154
    %p156 = scmp.ne.s32.totalorder %s145, %s146
    %p157 = scmp.eq.s32.totalorder %s33, 0
    %p158 = por %p156, %p157
    %p159 = scmp.ne.s32.totalorder %s145, %s146
    %p160 = scmp.eq.s32.totalorder %s34, 1
    %p161 = por %p159, %p160
    %p163 = scmp.ne.s32.totalorder %s146, %s162
    %p164 = scmp.eq.s32.totalorder %s34, 0
    %p165 = por %p163, %p164
    %s166 = ssub.s32 %s28, %s35
    %p167 = scmp.eq.s32.totalorder %s166, 0
    %s169 = sadd.s32 %s168, 1
    %s170 = scalar_select %p167, %s168, %s169
    %p173 = pneg %p167
    %p174 = scmp.eq.s32.totalorder %s28, 1
    %p175 = por %p173, %p174
    %p176 = scmp.ne.s32.totalorder %s168, %s171
    %p177 = scmp.eq.s32.totalorder %s28, 0
    %p178 = por %p176, %p177
    %p179 = scmp.ne.s32.totalorder %s168, %s171
    %p180 = scmp.eq.s32.totalorder %s33, 1
    %p181 = por %p179, %p180
    %p182 = scmp.ne.s32.totalorder %s171, %s172
    %p183 = scmp.eq.s32.totalorder %s33, 0
    %p184 = por %p182, %p183
    %p185 = scmp.ne.s32.totalorder %s171, %s172
    %p186 = scmp.eq.s32.totalorder %s34, 1
    %p187 = por %p185, %p186
    %p189 = scmp.ne.s32.totalorder %s172, %s188
    %p190 = scmp.eq.s32.totalorder %s34, 0
    %p191 = por %p189, %p190
    %s192 = ssub.s32 %s28, %s35
    %p193 = scmp.eq.s32.totalorder %s192, 0
    %s195 = sadd.s32 %s194, 1
    %s196 = scalar_select %p193, %s194, %s195
    %p199 = pneg %p193
    %p200 = scmp.eq.s32.totalorder %s28, 1
    %p201 = por %p199, %p200
    %p202 = scmp.ne.s32.totalorder %s194, %s197
    %p203 = scmp.eq.s32.totalorder %s28, 0
    %p204 = por %p202, %p203
    %p205 = scmp.ne.s32.totalorder %s194, %s197
    %p206 = scmp.eq.s32.totalorder %s33, 1
    %p207 = por %p205, %p206
    %p208 = scmp.ne.s32.totalorder %s197, %s198
    %p209 = scmp.eq.s32.totalorder %s33, 0
    %p210 = por %p208, %p209
    %p211 = scmp.ne.s32.totalorder %s197, %s198
    %p212 = scmp.eq.s32.totalorder %s34, 1
    %p213 = por %p211, %p212
    %p215 = scmp.ne.s32.totalorder %s198, %s214
    %p216 = scmp.eq.s32.totalorder %s34, 0
    %p217 = por %p215, %p216
    %s218 = ssub.s32 %s28, %s35
    %p219 = scmp.eq.s32.totalorder %s218, 0
    %s221 = sadd.s32 %s220, 1
    %s222 = scalar_select %p219, %s220, %s221
    %p225 = pneg %p219
    %p226 = scmp.eq.s32.totalorder %s28, 1
    %p227 = por %p225, %p226
    %p228 = scmp.ne.s32.totalorder %s220, %s223
    %p229 = scmp.eq.s32.totalorder %s28, 0
    %p230 = por %p228, %p229
    %p231 = scmp.ne.s32.totalorder %s220, %s223
    %p232 = scmp.eq.s32.totalorder %s33, 1
    %p233 = por %p231, %p232
    %p234 = scmp.ne.s32.totalorder %s223, %s224
    %p235 = scmp.eq.s32.totalorder %s33, 0
    %p236 = por %p234, %p235
    %p237 = scmp.ne.s32.totalorder %s223, %s224
    %p238 = scmp.eq.s32.totalorder %s34, 1
    %p239 = por %p237, %p238
    %p241 = scmp.ne.s32.totalorder %s224, %s240
    %p242 = scmp.eq.s32.totalorder %s34, 0
    %p243 = por %p241, %p242
    %s244 = ssub.s32 %s28, %s35
    %p245 = scmp.eq.s32.totalorder %s244, 0
    %s247 = sadd.s32 %s246, 1
    %s248 = scalar_select %p245, %s246, %s247
    %p251 = pneg %p245
    %p252 = scmp.eq.s32.totalorder %s28, 1
    %p253 = por %p251, %p252
    %p254 = scmp.ne.s32.totalorder %s246, %s249
    %p255 = scmp.eq.s32.totalorder %s28, 0
    %p256 = por %p254, %p255
    %p257 = scmp.ne.s32.totalorder %s246, %s249
    %p258 = scmp.eq.s32.totalorder %s33, 1
    %p259 = por %p257, %p258
    %p260 = scmp.ne.s32.totalorder %s249, %s250
    %p261 = scmp.eq.s32.totalorder %s33, 0
    %p262 = por %p260, %p261
    %p263 = scmp.ne.s32.totalorder %s249, %s250
    %p264 = scmp.eq.s32.totalorder %s34, 1
    %p265 = por %p263, %p264
    %p267 = scmp.ne.s32.totalorder %s250, %s266
    %p268 = scmp.eq.s32.totalorder %s34, 0
    %p269 = por %p267, %p268
    %s270 = ssub.s32 %s28, %s35
    %p271 = scmp.eq.s32.totalorder %s270, 0
    %s273 = sadd.s32 %s272, 1
    %s274 = scalar_select %p271, %s272, %s273
    %p277 = pneg %p271
    %p278 = scmp.eq.s32.totalorder %s28, 1
    %p279 = por %p277, %p278
    %p280 = scmp.ne.s32.totalorder %s272, %s275
    %p281 = scmp.eq.s32.totalorder %s28, 0
    %p282 = por %p280, %p281
    %p283 = scmp.ne.s32.totalorder %s272, %s275
    %p284 = scmp.eq.s32.totalorder %s33, 1
    %p285 = por %p283, %p284
    %p286 = scmp.ne.s32.totalorder %s275, %s276
    %p287 = scmp.eq.s32.totalorder %s33, 0
    %p288 = por %p286, %p287
    %p289 = scmp.ne.s32.totalorder %s275, %s276
    %p290 = scmp.eq.s32.totalorder %s34, 1
    %p291 = por %p289, %p290
    %p293 = scmp.ne.s32.totalorder %s276, %s292
    %p294 = scmp.eq.s32.totalorder %s34, 0
    %p295 = por %p293, %p294
    %s296 = ssub.s32 %s28, %s35
    %p297 = scmp.eq.s32.totalorder %s296, 0
    %s299 = sadd.s32 %s298, 1
    %s300 = scalar_select %p297, %s298, %s299
    %p303 = pneg %p297
    %p304 = scmp.eq.s32.totalorder %s28, 1
    %p305 = por %p303, %p304
    %p306 = scmp.ne.s32.totalorder %s298, %s301
    %p307 = scmp.eq.s32.totalorder %s28, 0
    %p308 = por %p306, %p307
    %p309 = scmp.ne.s32.totalorder %s298, %s301
    %p310 = scmp.eq.s32.totalorder %s33, 1
    %p311 = por %p309, %p310
    %p312 = scmp.ne.s32.totalorder %s301, %s302
    %p313 = scmp.eq.s32.totalorder %s33, 0
    %p314 = por %p312, %p313
    %p315 = scmp.ne.s32.totalorder %s301, %s302
    %p316 = scmp.eq.s32.totalorder %s34, 1
    %p317 = por %p315, %p316
    %p319 = scmp.ne.s32.totalorder %s302, %s318
    %p320 = scmp.eq.s32.totalorder %s34, 0
    %p321 = por %p319, %p320
    %s322 = ssub.s32 %s28, %s35
    %p323 = scmp.eq.s32.totalorder %s322, 0
    %s325 = sadd.s32 %s324, 1
    %s326 = scalar_select %p323, %s324, %s325
    %p329 = pneg %p323
    %p330 = scmp.eq.s32.totalorder %s28, 1
    %p331 = por %p329, %p330
    %p332 = scmp.ne.s32.totalorder %s324, %s327
    %p333 = scmp.eq.s32.totalorder %s28, 0
    %p334 = por %p332, %p333
    %p335 = scmp.ne.s32.totalorder %s324, %s327
    %p336 = scmp.eq.s32.totalorder %s33, 1
    %p337 = por %p335, %p336
    %p338 = scmp.ne.s32.totalorder %s327, %s328
    %p339 = scmp.eq.s32.totalorder %s33, 0
    %p340 = por %p338, %p339
    %p341 = scmp.ne.s32.totalorder %s327, %s328
    %p342 = scmp.eq.s32.totalorder %s34, 1
    %p343 = por %p341, %p342
    %p345 = scmp.ne.s32.totalorder %s328, %s344
    %p346 = scmp.eq.s32.totalorder %s34, 0
    %p347 = por %p345, %p346
    %s348 = ssub.s32 %s28, %s35
    %p349 = scmp.eq.s32.totalorder %s348, 0
    %s351 = sadd.s32 %s350, 1
    %s352 = scalar_select %p349, %s350, %s351
    %p355 = pneg %p349
    %p356 = scmp.eq.s32.totalorder %s28, 1
    %p357 = por %p355, %p356
    %p358 = scmp.ne.s32.totalorder %s350, %s353
    %p359 = scmp.eq.s32.totalorder %s28, 0
    %p360 = por %p358, %p359
    %p361 = scmp.ne.s32.totalorder %s350, %s353
    %p362 = scmp.eq.s32.totalorder %s33, 1
    %p363 = por %p361, %p362
    %p364 = scmp.ne.s32.totalorder %s353, %s354
    %p365 = scmp.eq.s32.totalorder %s33, 0
    %p366 = por %p364, %p365
    %p367 = scmp.ne.s32.totalorder %s353, %s354
    %p368 = scmp.eq.s32.totalorder %s34, 1
    %p369 = por %p367, %p368
    %p371 = scmp.ne.s32.totalorder %s354, %s370
    %p372 = scmp.eq.s32.totalorder %s34, 0
    %p373 = por %p371, %p372
    %s374 = ssub.s32 %s28, %s35
    %p375 = scmp.eq.s32.totalorder %s374, 0
    %s377 = sadd.s32 %s376, 1
    %s378 = scalar_select %p375, %s376, %s377
    %p381 = pneg %p375
    %p382 = scmp.eq.s32.totalorder %s28, 1
    %p383 = por %p381, %p382
    %p384 = scmp.ne.s32.totalorder %s376, %s379
    %p385 = scmp.eq.s32.totalorder %s28, 0
    %p386 = por %p384, %p385
    %p387 = scmp.ne.s32.totalorder %s376, %s379
    %p388 = scmp.eq.s32.totalorder %s33, 1
    %p389 = por %p387, %p388
    %p390 = scmp.ne.s32.totalorder %s379, %s380
    %p391 = scmp.eq.s32.totalorder %s33, 0
    %p392 = por %p390, %p391
    %p393 = scmp.ne.s32.totalorder %s379, %s380
    %p394 = scmp.eq.s32.totalorder %s34, 1
    %p395 = por %p393, %p394
    %p397 = scmp.ne.s32.totalorder %s380, %s396
    %p398 = scmp.eq.s32.totalorder %s34, 0
    %p399 = por %p397, %p398
    %s400 = ssub.s32 %s28, %s35
    %p401 = scmp.eq.s32.totalorder %s400, 0
    %s403 = sadd.s32 %s402, 1
    %s404 = scalar_select %p401, %s402, %s403
    %p407 = pneg %p401
    %p408 = scmp.eq.s32.totalorder %s28, 1
    %p409 = por %p407, %p408
    %p410 = scmp.ne.s32.totalorder %s402, %s405
    %p411 = scmp.eq.s32.totalorder %s28, 0
    %p412 = por %p410, %p411
    %p413 = scmp.ne.s32.totalorder %s402, %s405
    %p414 = scmp.eq.s32.totalorder %s33, 1
    %p415 = por %p413, %p414
    %p416 = scmp.ne.s32.totalorder %s405, %s406
    %p417 = scmp.eq.s32.totalorder %s33, 0
    %p418 = por %p416, %p417
    %p419 = scmp.ne.s32.totalorder %s405, %s406
    %p420 = scmp.eq.s32.totalorder %s34, 1
    %p421 = por %p419, %p420
    %p423 = scmp.ne.s32.totalorder %s406, %s422
    %p424 = scmp.eq.s32.totalorder %s34, 0
    %p425 = por %p423, %p424
    %s426 = ssub.s32 %s28, %s35
    %p427 = scmp.eq.s32.totalorder %s426, 0
    %s429 = sadd.s32 %s428, 1
    %s430 = scalar_select %p427, %s428, %s429
    %p433 = pneg %p427
    %p434 = scmp.eq.s32.totalorder %s28, 1
    %p435 = por %p433, %p434
    %p436 = scmp.ne.s32.totalorder %s428, %s431
    %p437 = scmp.eq.s32.totalorder %s28, 0
    %p438 = por %p436, %p437
    %p439 = scmp.ne.s32.totalorder %s428, %s431
    %p440 = scmp.eq.s32.totalorder %s33, 1
    %p441 = por %p439, %p440
    %p442 = scmp.ne.s32.totalorder %s431, %s432
    %p443 = scmp.eq.s32.totalorder %s33, 0
    %p444 = por %p442, %p443
    %p445 = scmp.ne.s32.totalorder %s431, %s432
    %p446 = scmp.eq.s32.totalorder %s34, 1
    %p447 = por %p445, %p446
    %p449 = scmp.ne.s32.totalorder %s432, %s448
    %p450 = scmp.eq.s32.totalorder %s34, 0
    %p451 = por %p449, %p450
    %s453 = sadd.s32 %s452, 1
    %p456 = scmp.eq.s32.totalorder %s28, 1
    %p457 = scmp.ne.s32.totalorder %s452, %s454
    %p458 = scmp.eq.s32.totalorder %s28, 0
    %p459 = por %p457, %p458
    %p460 = scmp.ne.s32.totalorder %s452, %s454
    %p461 = scmp.eq.s32.totalorder %s33, 1
    %p462 = por %p460, %p461
    %p463 = scmp.ne.s32.totalorder %s454, %s455
    %p464 = scmp.eq.s32.totalorder %s33, 0
    %p465 = por %p463, %p464
    %p466 = scmp.ne.s32.totalorder %s454, %s455
    %p467 = scmp.eq.s32.totalorder %s34, 1
    %p468 = por %p466, %p467
    %p470 = scmp.ne.s32.totalorder %s455, %s469
    %p471 = scmp.eq.s32.totalorder %s34, 0
    %p472 = por %p470, %p471
    %s474 = sadd.s32 %s473, 1
    %p477 = scmp.eq.s32.totalorder %s28, 1
    %p478 = scmp.ne.s32.totalorder %s473, %s475
    %p479 = scmp.eq.s32.totalorder %s28, 0
    %p480 = por %p478, %p479
    %p481 = scmp.ne.s32.totalorder %s473, %s475
    %p482 = scmp.eq.s32.totalorder %s33, 1
    %p483 = por %p481, %p482
    %p484 = scmp.ne.s32.totalorder %s475, %s476
    %p485 = scmp.eq.s32.totalorder %s33, 0
    %p486 = por %p484, %p485
    %p487 = scmp.ne.s32.totalorder %s475, %s476
    %p488 = scmp.eq.s32.totalorder %s34, 1
    %p489 = por %p487, %p488
    %p491 = scmp.ne.s32.totalorder %s476, %s490
    %p492 = scmp.eq.s32.totalorder %s34, 0
    %p493 = por %p491, %p492
    %s495 = sadd.s32 %s494, 1
    %p498 = scmp.eq.s32.totalorder %s28, 1
    %p499 = scmp.ne.s32.totalorder %s494, %s496
    %p500 = scmp.eq.s32.totalorder %s28, 0
    %p501 = por %p499, %p500
    %p502 = scmp.ne.s32.totalorder %s494, %s496
    %p503 = scmp.eq.s32.totalorder %s33, 1
    %p504 = por %p502, %p503
    %p505 = scmp.ne.s32.totalorder %s496, %s497
    %p506 = scmp.eq.s32.totalorder %s33, 0
    %p507 = por %p505, %p506
    %p508 = scmp.ne.s32.totalorder %s496, %s497
    %p509 = scmp.eq.s32.totalorder %s34, 1
    %p510 = por %p508, %p509
    %p512 = scmp.ne.s32.totalorder %s497, %s511
    %p513 = scmp.eq.s32.totalorder %s34, 0
    %p514 = por %p512, %p513
    %s516 = sadd.s32 %s515, 1
    %p519 = scmp.eq.s32.totalorder %s28, 1
    %p520 = scmp.ne.s32.totalorder %s515, %s517
    %p521 = scmp.eq.s32.totalorder %s28, 0
    %p522 = por %p520, %p521
    %p523 = scmp.ne.s32.totalorder %s515, %s517
    %p524 = scmp.eq.s32.totalorder %s33, 1
    %p525 = por %p523, %p524
    %p526 = scmp.ne.s32.totalorder %s517, %s518
    %p527 = scmp.eq.s32.totalorder %s33, 0
    %p528 = por %p526, %p527
    %p529 = scmp.ne.s32.totalorder %s517, %s518
    %p530 = scmp.eq.s32.totalorder %s34, 1
    %p531 = por %p529, %p530
    %p533 = scmp.ne.s32.totalorder %s518, %s532
    %p534 = scmp.eq.s32.totalorder %s34, 0
    %p535 = por %p533, %p534
    %p536 = scmp.le.s32.totalorder 1, %s28
    %p537 = scmp.lt.s32.totalorder %s28, 3
    %p538 = pnand %p536, %p537
    %p539 = pneg %p538
    // Predicated region
    $region9: #{voiceclip_forward.1} parent=5 // pred_check
      _
    $region10: #{voiceclip_forward.1} parent=5 // pred_check_branch
      %541 = sbr.rel (%p538) target = $region12
    $region11: #{voiceclip_forward.1} parent=5 // pred_region
      %s542 = ssub.s32 %s28, 1
      // Predicated region
      $region13: #{voiceclip_forward.1} parent=11 // pred_check
        %p543 = pneg %p465
      $region14: #{voiceclip_forward.1} parent=11 // pred_check_branch
        %545 = sbr.rel (%p543) target = $region16
      $region15: #{voiceclip_forward.1} parent=11 // pred_region
        _
      $region16: #{voiceclip_forward.1} parent=11 // pred_fallthru
        _
      // Predicated region
      $region17: #{voiceclip_forward.1} parent=11 // pred_check
        %p546 = pneg %p486
      $region18: #{voiceclip_forward.1} parent=11 // pred_check_branch
        %548 = sbr.rel (%p546) target = $region20
      $region19: #{voiceclip_forward.1} parent=11 // pred_region
        _
      $region20: #{voiceclip_forward.1} parent=11 // pred_fallthru
        _
      // Predicated region
      $region21: #{voiceclip_forward.1} parent=11 // pred_check
        %p549 = pneg %p507
      $region22: #{voiceclip_forward.1} parent=11 // pred_check_branch
        %551 = sbr.rel (%p549) target = $region24
      $region23: #{voiceclip_forward.1} parent=11 // pred_region
        _
      $region24: #{voiceclip_forward.1} parent=11 // pred_fallthru
        _
    $region12: #{voiceclip_forward.1} parent=5 // pred_fallthru
      _
    %p552 = scmp.lt.s32.totalorder %s28, 2
    // Predicated region
    $region25: #{voiceclip_forward.1} parent=5 // pred_check
      %p553 = pneg %p552
    $region26: #{voiceclip_forward.1} parent=5 // pred_check_branch
      %555 = sbr.rel (%p553) target = $region28
    $region27: #{voiceclip_forward.1} parent=5 // pred_region
      // Predicated region
      $region29: #{voiceclip_forward.1} parent=27 // pred_check
        %p556 = pneg %p48
      $region30: #{voiceclip_forward.1} parent=27 // pred_check_branch
        %558 = sbr.rel (%p556) target = $region32
      $region31: #{voiceclip_forward.1} parent=27 // pred_region
        %p559 = scmp.lt.s32.totalorder %s28, 1
        %s560 = scalar_select %p559, %s28, 1
        %s561 = smul.addr %s560, 2
        %s562 = scalar_lea.vmem %s2, %s561
      $region32: #{voiceclip_forward.1} parent=27 // pred_fallthru
        _
      // Predicated region
      $region33: #{voiceclip_forward.1} parent=27 // pred_check
        %p563 = pneg %p74
      $region34: #{voiceclip_forward.1} parent=27 // pred_check_branch
        %565 = sbr.rel (%p563) target = $region36
      $region35: #{voiceclip_forward.1} parent=27 // pred_region
        %p566 = scmp.lt.s32.totalorder %s28, 1
        %s567 = scalar_select %p566, %s28, 1
        %s568 = smul.addr %s567, 12
        %s569 = smul.addr %s568, 4
        %s570 = scalar_lea.vmem %s3, %s569
      $region36: #{voiceclip_forward.1} parent=27 // pred_fallthru
        _
      // Predicated region
      $region37: #{voiceclip_forward.1} parent=27 // pred_check
        %p571 = pneg %p100
      $region38: #{voiceclip_forward.1} parent=27 // pred_check_branch
        %573 = sbr.rel (%p571) target = $region40
      $region39: #{voiceclip_forward.1} parent=27 // pred_region
        %p574 = scmp.lt.s32.totalorder %s28, 1
        %s575 = scalar_select %p574, %s28, 1
        %s576 = smul.addr %s575, 4
        %s577 = smul.addr %s576, 4
        %s578 = scalar_lea.vmem %s4, %s577
      $region40: #{voiceclip_forward.1} parent=27 // pred_fallthru
        _
      // Predicated region
      $region41: #{voiceclip_forward.1} parent=27 // pred_check
        %p579 = pneg %p126
      $region42: #{voiceclip_forward.1} parent=27 // pred_check_branch
        %581 = sbr.rel (%p579) target = $region44
      $region43: #{voiceclip_forward.1} parent=27 // pred_region
        %p582 = scmp.lt.s32.totalorder %s28, 1
        %s583 = scalar_select %p582, %s28, 1
        %s584 = smul.addr %s583, 2
        %s585 = scalar_lea.vmem %s5, %s584
      $region44: #{voiceclip_forward.1} parent=27 // pred_fallthru
        _
      // Predicated region
      $region45: #{voiceclip_forward.1} parent=27 // pred_check
        %p586 = pneg %p152
      $region46: #{voiceclip_forward.1} parent=27 // pred_check_branch
        %588 = sbr.rel (%p586) target = $region48
      $region47: #{voiceclip_forward.1} parent=27 // pred_region
        %p589 = scmp.lt.s32.totalorder %s28, 1
        %s590 = scalar_select %p589, %s28, 1
        %s591 = smul.addr %s590, 4
        %s592 = smul.addr %s591, 4
        %s593 = scalar_lea.vmem %s6, %s592
      $region48: #{voiceclip_forward.1} parent=27 // pred_fallthru
        _
      // Predicated region
      $region49: #{voiceclip_forward.1} parent=27 // pred_check
        %p594 = pneg %p178
      $region50: #{voiceclip_forward.1} parent=27 // pred_check_branch
        %596 = sbr.rel (%p594) target = $region52
      $region51: #{voiceclip_forward.1} parent=27 // pred_region
        %p597 = scmp.lt.s32.totalorder %s28, 1
        %s598 = scalar_select %p597, %s28, 1
        %s599 = scalar_lea.vmem %s7, %s598
      $region52: #{voiceclip_forward.1} parent=27 // pred_fallthru
        _
      // Predicated region
      $region53: #{voiceclip_forward.1} parent=27 // pred_check
        %p600 = pneg %p204
      $region54: #{voiceclip_forward.1} parent=27 // pred_check_branch
        %602 = sbr.rel (%p600) target = $region56
      $region55: #{voiceclip_forward.1} parent=27 // pred_region
        %p603 = scmp.lt.s32.totalorder %s28, 1
        %s604 = scalar_select %p603, %s28, 1
        %s605 = smul.addr %s604, 16
        %s606 = smul.addr %s605, 4
        %s607 = scalar_lea.vmem %s8, %s606
      $region56: #{voiceclip_forward.1} parent=27 // pred_fallthru
        _
      // Predicated region
      $region57: #{voiceclip_forward.1} parent=27 // pred_check
        %p608 = pneg %p230
      $region58: #{voiceclip_forward.1} parent=27 // pred_check_branch
        %610 = sbr.rel (%p608) target = $region60
      $region59: #{voiceclip_forward.1} parent=27 // pred_region
        %p611 = scmp.lt.s32.totalorder %s28, 1
        %s612 = scalar_select %p611, %s28, 1
        %s613 = scalar_lea.vmem %s9, %s612
      $region60: #{voiceclip_forward.1} parent=27 // pred_fallthru
        _
      // Predicated region
      $region61: #{voiceclip_forward.1} parent=27 // pred_check
        %p614 = pneg %p256
      $region62: #{voiceclip_forward.1} parent=27 // pred_check_branch
        %616 = sbr.rel (%p614) target = $region64
      $region63: #{voiceclip_forward.1} parent=27 // pred_region
        %p617 = scmp.lt.s32.totalorder %s28, 1
        %s618 = scalar_select %p617, %s28, 1
        %s619 = smul.addr %s618, 2
        %s620 = scalar_lea.vmem %s10, %s619
      $region64: #{voiceclip_forward.1} parent=27 // pred_fallthru
        _
      // Predicated region
      $region65: #{voiceclip_forward.1} parent=27 // pred_check
        %p621 = pneg %p282
      $region66: #{voiceclip_forward.1} parent=27 // pred_check_branch
        %623 = sbr.rel (%p621) target = $region68
      $region67: #{voiceclip_forward.1} parent=27 // pred_region
        %p624 = scmp.lt.s32.totalorder %s28, 1
        %s625 = scalar_select %p624, %s28, 1
        %s626 = smul.addr %s625, 12
        %s627 = smul.addr %s626, 4
        %s628 = scalar_lea.vmem %s11, %s627
      $region68: #{voiceclip_forward.1} parent=27 // pred_fallthru
        _
      // Predicated region
      $region69: #{voiceclip_forward.1} parent=27 // pred_check
        %p629 = pneg %p308
      $region70: #{voiceclip_forward.1} parent=27 // pred_check_branch
        %631 = sbr.rel (%p629) target = $region72
      $region71: #{voiceclip_forward.1} parent=27 // pred_region
        %p632 = scmp.lt.s32.totalorder %s28, 1
        %s633 = scalar_select %p632, %s28, 1
        %s634 = smul.addr %s633, 4
        %s635 = smul.addr %s634, 4
        %s636 = scalar_lea.vmem %s12, %s635
      $region72: #{voiceclip_forward.1} parent=27 // pred_fallthru
        _
      // Predicated region
      $region73: #{voiceclip_forward.1} parent=27 // pred_check
        %p637 = pneg %p334
      $region74: #{voiceclip_forward.1} parent=27 // pred_check_branch
        %639 = sbr.rel (%p637) target = $region76
      $region75: #{voiceclip_forward.1} parent=27 // pred_region
        %p640 = scmp.lt.s32.totalorder %s28, 1
        %s641 = scalar_select %p640, %s28, 1
        %s642 = smul.addr %s641, 2
        %s643 = scalar_lea.vmem %s13, %s642
      $region76: #{voiceclip_forward.1} parent=27 // pred_fallthru
        _
      // Predicated region
      $region77: #{voiceclip_forward.1} parent=27 // pred_check
        %p644 = pneg %p360
      $region78: #{voiceclip_forward.1} parent=27 // pred_check_branch
        %646 = sbr.rel (%p644) target = $region80
      $region79: #{voiceclip_forward.1} parent=27 // pred_region
        %p647 = scmp.lt.s32.totalorder %s28, 1
        %s648 = scalar_select %p647, %s28, 1
        %s649 = smul.addr %s648, 4
        %s650 = smul.addr %s649, 4
        %s651 = scalar_lea.vmem %s14, %s650
      $region80: #{voiceclip_forward.1} parent=27 // pred_fallthru
        _
      // Predicated region
      $region81: #{voiceclip_forward.1} parent=27 // pred_check
        %p652 = pneg %p386
      $region82: #{voiceclip_forward.1} parent=27 // pred_check_branch
        %654 = sbr.rel (%p652) target = $region84
      $region83: #{voiceclip_forward.1} parent=27 // pred_region
        %p655 = scmp.lt.s32.totalorder %s28, 1
        %s656 = scalar_select %p655, %s28, 1
        %s657 = scalar_lea.vmem %s15, %s656
      $region84: #{voiceclip_forward.1} parent=27 // pred_fallthru
        _
      // Predicated region
      $region85: #{voiceclip_forward.1} parent=27 // pred_check
        %p658 = pneg %p412
      $region86: #{voiceclip_forward.1} parent=27 // pred_check_branch
        %660 = sbr.rel (%p658) target = $region88
      $region87: #{voiceclip_forward.1} parent=27 // pred_region
        %p661 = scmp.lt.s32.totalorder %s28, 1
        %s662 = scalar_select %p661, %s28, 1
        %s663 = smul.addr %s662, 16
        %s664 = smul.addr %s663, 4
        %s665 = scalar_lea.vmem %s16, %s664
      $region88: #{voiceclip_forward.1} parent=27 // pred_fallthru
        _
      // Predicated region
      $region89: #{voiceclip_forward.1} parent=27 // pred_check
        %p666 = pneg %p438
      $region90: #{voiceclip_forward.1} parent=27 // pred_check_branch
        %668 = sbr.rel (%p666) target = $region92
      $region91: #{voiceclip_forward.1} parent=27 // pred_region
        %p669 = scmp.lt.s32.totalorder %s28, 1
        %s670 = scalar_select %p669, %s28, 1
        %s671 = scalar_lea.vmem %s17, %s670
      $region92: #{voiceclip_forward.1} parent=27 // pred_fallthru
        _
    $region28: #{voiceclip_forward.1} parent=5 // pred_fallthru
      _
    %p672 = scmp.le.s32.totalorder 1, %s28
    %p673 = scmp.lt.s32.totalorder %s28, 3
    %p674 = pnand %p672, %p673
    %p675 = pneg %p674
    // Predicated region
    $region93: #{voiceclip_forward.1} parent=5 // pred_check
      _
    $region94: #{voiceclip_forward.1} parent=5 // pred_check_branch
      %677 = sbr.rel (%p674) target = $region96
    $region95: #{voiceclip_forward.1} parent=5 // pred_region
      %s678 = ssub.s32 %s28, 1
      %p679 = scmp.lt.s32.totalorder %s33, 1
      %s680 = scalar_select %p679, %s33, 1
      %s681 = smul.addr %s680, 2
      %s682 = scalar_lea.vmem %s2, %s681
      %p683 = pneg %p54
      %p684 = pneg %p51
      %p685 = scmp.lt.s32.totalorder %s33, 1
      %s686 = scalar_select %p685, %s33, 1
      %s687 = smul.addr %s686, 12
      %s688 = smul.addr %s687, 4
      %s689 = scalar_lea.vmem %s3, %s688
      %p690 = pneg %p80
      %p691 = pneg %p77
      %p692 = scmp.lt.s32.totalorder %s33, 1
      %s693 = scalar_select %p692, %s33, 1
      %s694 = smul.addr %s693, 4
      %s695 = smul.addr %s694, 4
      %s696 = scalar_lea.vmem %s4, %s695
      %p697 = pneg %p106
      %p698 = pneg %p103
      %p699 = scmp.lt.s32.totalorder %s33, 1
      %s700 = scalar_select %p699, %s33, 1
      %s701 = smul.addr %s700, 2
      %s702 = scalar_lea.vmem %s5, %s701
      %p703 = pneg %p132
      %p704 = pneg %p129
      %p705 = scmp.lt.s32.totalorder %s33, 1
      %s706 = scalar_select %p705, %s33, 1
      %s707 = smul.addr %s706, 4
      %s708 = smul.addr %s707, 4
      %s709 = scalar_lea.vmem %s6, %s708
      %p710 = pneg %p158
      %p711 = pneg %p155
      %p712 = scmp.lt.s32.totalorder %s33, 1
      %s713 = scalar_select %p712, %s33, 1
      %s714 = scalar_lea.vmem %s7, %s713
      %p715 = pneg %p184
      %p716 = pneg %p181
      %p717 = scmp.lt.s32.totalorder %s33, 1
      %s718 = scalar_select %p717, %s33, 1
      %s719 = smul.addr %s718, 16
      %s720 = smul.addr %s719, 4
      %s721 = scalar_lea.vmem %s8, %s720
      %p722 = pneg %p210
      %p723 = pneg %p207
      %p724 = scmp.lt.s32.totalorder %s33, 1
      %s725 = scalar_select %p724, %s33, 1
      %s726 = scalar_lea.vmem %s9, %s725
      %p727 = pneg %p236
      %p728 = pneg %p233
      %p729 = scmp.lt.s32.totalorder %s33, 1
      %s730 = scalar_select %p729, %s33, 1
      %s731 = smul.addr %s730, 2
      %s732 = scalar_lea.vmem %s10, %s731
      %p733 = pneg %p262
      %p734 = pneg %p259
      %p735 = scmp.lt.s32.totalorder %s33, 1
      %s736 = scalar_select %p735, %s33, 1
      %s737 = smul.addr %s736, 12
      %s738 = smul.addr %s737, 4
      %s739 = scalar_lea.vmem %s11, %s738
      %p740 = pneg %p288
      %p741 = pneg %p285
      %p742 = scmp.lt.s32.totalorder %s33, 1
      %s743 = scalar_select %p742, %s33, 1
      %s744 = smul.addr %s743, 4
      %s745 = smul.addr %s744, 4
      %s746 = scalar_lea.vmem %s12, %s745
      %p747 = pneg %p314
      %p748 = pneg %p311
      %p749 = scmp.lt.s32.totalorder %s33, 1
      %s750 = scalar_select %p749, %s33, 1
      %s751 = smul.addr %s750, 2
      %s752 = scalar_lea.vmem %s13, %s751
      %p753 = pneg %p340
      %p754 = pneg %p337
      %p755 = scmp.lt.s32.totalorder %s33, 1
      %s756 = scalar_select %p755, %s33, 1
      %s757 = smul.addr %s756, 4
      %s758 = smul.addr %s757, 4
      %s759 = scalar_lea.vmem %s14, %s758
      %p760 = pneg %p366
      %p761 = pneg %p363
      %p762 = scmp.lt.s32.totalorder %s33, 1
      %s763 = scalar_select %p762, %s33, 1
      %s764 = scalar_lea.vmem %s15, %s763
      %p765 = pneg %p392
      %p766 = pneg %p389
      %p767 = scmp.lt.s32.totalorder %s33, 1
      %s768 = scalar_select %p767, %s33, 1
      %s769 = smul.addr %s768, 16
      %s770 = smul.addr %s769, 4
      %s771 = scalar_lea.vmem %s16, %s770
      %p772 = pneg %p418
      %p773 = pneg %p415
      %p774 = scmp.lt.s32.totalorder %s33, 1
      %s775 = scalar_select %p774, %s33, 1
      %s776 = scalar_lea.vmem %s17, %s775
      %p777 = pneg %p444
      %p778 = pneg %p441
      %p779 = pneg %p465
      %p780 = pneg %p462
      %p781 = pneg %p486
      %p782 = pneg %p483
      %p783 = pneg %p507
      %p784 = pneg %p504
      %p785 = pneg %p528
      %p786 = pneg %p525
      %p787 = scmp.lt.s32.totalorder %s33, 1
      %s788 = scalar_select %p787, %s33, 1
      %s789 = smul.addr %s788, 2
      %s790 = scalar_lea.vmem %s2, %s789
      %p791 = scmp.lt.s32.totalorder %s33, 1
      %s792 = scalar_select %p791, %s33, 1
      %s793 = smul.addr %s792, 12
      %s794 = smul.addr %s793, 4
      %s795 = scalar_lea.vmem %s3, %s794
      %p796 = scmp.lt.s32.totalorder %s33, 1
      %s797 = scalar_select %p796, %s33, 1
      %s798 = smul.addr %s797, 4
      %s799 = smul.addr %s798, 4
      %s800 = scalar_lea.vmem %s4, %s799
      %p801 = scmp.lt.s32.totalorder %s33, 1
      %s802 = scalar_select %p801, %s33, 1
      %s803 = smul.addr %s802, 2
      %s804 = scalar_lea.vmem %s5, %s803
      %p805 = scmp.lt.s32.totalorder %s33, 1
      %s806 = scalar_select %p805, %s33, 1
      %s807 = smul.addr %s806, 4
      %s808 = smul.addr %s807, 4
      %s809 = scalar_lea.vmem %s6, %s808
      %p810 = scmp.lt.s32.totalorder %s33, 1
      %s811 = scalar_select %p810, %s33, 1
      %s812 = scalar_lea.vmem %s7, %s811
      %p813 = scmp.lt.s32.totalorder %s33, 1
      %s814 = scalar_select %p813, %s33, 1
      %s815 = smul.addr %s814, 16
      %s816 = smul.addr %s815, 4
      %s817 = scalar_lea.vmem %s8, %s816
      %p818 = scmp.lt.s32.totalorder %s33, 1
      %s819 = scalar_select %p818, %s33, 1
      %s820 = scalar_lea.vmem %s9, %s819
      %p821 = scmp.lt.s32.totalorder %s33, 1
      %s822 = scalar_select %p821, %s33, 1
      %s823 = smul.addr %s822, 2
      %s824 = scalar_lea.vmem %s10, %s823
      %p825 = scmp.lt.s32.totalorder %s33, 1
      %s826 = scalar_select %p825, %s33, 1
      %s827 = smul.addr %s826, 12
      %s828 = smul.addr %s827, 4
      %s829 = scalar_lea.vmem %s11, %s828
      %p830 = scmp.lt.s32.totalorder %s33, 1
      %s831 = scalar_select %p830, %s33, 1
      %s832 = smul.addr %s831, 4
      %s833 = smul.addr %s832, 4
      %s834 = scalar_lea.vmem %s12, %s833
      %p835 = scmp.lt.s32.totalorder %s33, 1
      %s836 = scalar_select %p835, %s33, 1
      %s837 = smul.addr %s836, 2
      %s838 = scalar_lea.vmem %s13, %s837
      %p839 = scmp.lt.s32.totalorder %s33, 1
      %s840 = scalar_select %p839, %s33, 1
      %s841 = smul.addr %s840, 4
      %s842 = smul.addr %s841, 4
      %s843 = scalar_lea.vmem %s14, %s842
      %p844 = scmp.lt.s32.totalorder %s33, 1
      %s845 = scalar_select %p844, %s33, 1
      %s846 = scalar_lea.vmem %s15, %s845
      %p847 = scmp.lt.s32.totalorder %s33, 1
      %s848 = scalar_select %p847, %s33, 1
      %s849 = smul.addr %s848, 16
      %s850 = smul.addr %s849, 4
      %s851 = scalar_lea.vmem %s16, %s850
      %p852 = scmp.lt.s32.totalorder %s33, 1
      %s853 = scalar_select %p852, %s33, 1
      %s854 = scalar_lea.vmem %s17, %s853
      %p856 = scmp.eq.s32.totalorder %s33, 0
      // Predicated region
      $region97: #{voiceclip_forward.1} parent=95 // pred_check
        %p857 = pneg %p856
      $region98: #{voiceclip_forward.1} parent=95 // pred_check_branch
        %859 = sbr.rel (%p857) target = $region100
      $region99: #{voiceclip_forward.1} parent=95 // pred_region
        %p861 = scmp.lt.u32.totalorder 16, 8
        %p862 = pneg %p861
        // Predicated region
        $region101: #{voiceclip_forward.1} parent=99 // pred_check
          _
        $region102: #{voiceclip_forward.1} parent=99 // pred_check_branch
          %864 = sbr.rel (%p861) target = $region104
        $region103: #{voiceclip_forward.1} parent=99 // pred_region
          %s879 = sand.u32 16, 7
          %p880 = scmp.eq.s32.totalorder %s879, 0
          // Predicated region
          $region116: #{voiceclip_forward.1} parent=103 // pred_check
            %p881 = pneg %p880
          $region117: #{voiceclip_forward.1} parent=103 // pred_check_branch
            %883 = sbr.rel (%p881) target = $region119
          $region118: #{voiceclip_forward.1} parent=103 // pred_region
            loop: start=0, step=1, limit=1
            $region120: #{voiceclip_forward.1} parent=118 // loop_pre_header
              _
            $region121: #{voiceclip_forward.1} parent=118 // loop_header
              %s885 = sphi 0, %s889
              %p886 = scmp.ge.s32.totalorder %s885, 1
              %s890 = sphi %s0, %s0
              %s891 = sphi [#allocation2], [#allocation2]
            $region122: #{voiceclip_forward.1} parent=118 // loop_header_branch
              %888 = sbr.rel (%p886) target = $region126
            $region123: #{voiceclip_forward.1} parent=118 // loop_body
              %v892 = vld [vmem:[%s890] sm:$0xff]
              %893 = vst [vmem:[%s891] sm:$0xff] %v892
              %v894 = vld [vmem:[%s890 + $0x8] sm:$0xff]
              %895 = vst [vmem:[%s891 + $0x8] sm:$0xff] %v894
            $region124: #{voiceclip_forward.1} parent=118 // loop_footer
              %s889 = sadd.s32 1, %s885
            $region125: #{voiceclip_forward.1} parent=118 // loop_footer_branch
              %884 = sbr.rel target = $region121
            $region126: #{voiceclip_forward.1} parent=118 // loop_exit
              _
          $region119: #{voiceclip_forward.1} parent=103 // pred_fallthru
            _
          %p896 = pneg %p880
          // Predicated region
          $region127: #{voiceclip_forward.1} parent=103 // pred_check
            _
          $region128: #{voiceclip_forward.1} parent=103 // pred_check_branch
            %898 = sbr.rel (%p880) target = $region130
          $region129: #{voiceclip_forward.1} parent=103 // pred_region
            %s899 = sand.u32 16, 7
          $region130: #{voiceclip_forward.1} parent=103 // pred_fallthru
            _
        $region104: #{voiceclip_forward.1} parent=99 // pred_fallthru
          _
        // Predicated region
        $region105: #{voiceclip_forward.1} parent=99 // pred_check
          %p865 = pneg %p861
        $region106: #{voiceclip_forward.1} parent=99 // pred_check_branch
          %867 = sbr.rel (%p865) target = $region108
        $region107: #{voiceclip_forward.1} parent=99 // pred_region
          %s868 = sshllo.u32 0, 16
          loop: start=0, step=1, limit=1
          $region109: #{voiceclip_forward.1} parent=107 // loop_pre_header
            _
          $region110: #{voiceclip_forward.1} parent=107 // loop_header
            %s870 = sphi 0, %s874
            %p871 = scmp.ge.s32.totalorder %s870, 1
            %s875 = sphi %s0, %s0
            %s876 = sphi [#allocation2], [#allocation2]
          $region111: #{voiceclip_forward.1} parent=107 // loop_header_branch
            %873 = sbr.rel (%p871) target = $region115
          $region112: #{voiceclip_forward.1} parent=107 // loop_body
            %v877 = vld [vmem:[%s875] sm:%s868]
            %878 = vst [vmem:[%s876] sm:%s868] %v877
          $region113: #{voiceclip_forward.1} parent=107 // loop_footer
            %s874 = sadd.s32 1, %s870
          $region114: #{voiceclip_forward.1} parent=107 // loop_footer_branch
            %869 = sbr.rel target = $region110
          $region115: #{voiceclip_forward.1} parent=107 // loop_exit
            _
        $region108: #{voiceclip_forward.1} parent=99 // pred_fallthru
          _
        // Predicated region
        $region131: #{voiceclip_forward.1} parent=99 // pred_check
          _
        $region132: #{voiceclip_forward.1} parent=99 // pred_check_branch
          %902 = sbr.rel (0) target = $region134
        $region133: #{voiceclip_forward.1} parent=99 // pred_region
          %903 = vsyncadd [#allocation4], 256
        $region134: #{voiceclip_forward.1} parent=99 // pred_fallthru
          _
        %s904 = scalar_lea.sflag [#allocation4], 1
        %p906 = scmp.lt.u32.totalorder 32, 8
        %p907 = pneg %p906
        // Predicated region
        $region135: #{voiceclip_forward.1} parent=99 // pred_check
          _
        $region136: #{voiceclip_forward.1} parent=99 // pred_check_branch
          %909 = sbr.rel (%p906) target = $region138
        $region137: #{voiceclip_forward.1} parent=99 // pred_region
          %s924 = sand.u32 32, 7
          %p925 = scmp.eq.s32.totalorder %s924, 0
          // Predicated region
          $region150: #{voiceclip_forward.1} parent=137 // pred_check
            %p926 = pneg %p925
          $region151: #{voiceclip_forward.1} parent=137 // pred_check_branch
            %928 = sbr.rel (%p926) target = $region153
          $region152: #{voiceclip_forward.1} parent=137 // pred_region
            loop: start=0, step=1, limit=1
            $region154: #{voiceclip_forward.1} parent=152 // loop_pre_header
              _
            $region155: #{voiceclip_forward.1} parent=152 // loop_header
              %s930 = sphi 0, %s934
              %p931 = scmp.ge.s32.totalorder %s930, 1
              %s935 = sphi %s1, %s1
              %s936 = sphi [#allocation3], [#allocation3]
            $region156: #{voiceclip_forward.1} parent=152 // loop_header_branch
              %933 = sbr.rel (%p931) target = $region160
            $region157: #{voiceclip_forward.1} parent=152 // loop_body
              %v937 = vld [vmem:[%s935] sm:$0xff]
              %938 = vst [vmem:[%s936] sm:$0xff] %v937
              %v939 = vld [vmem:[%s935 + $0x8] sm:$0xff]
              %940 = vst [vmem:[%s936 + $0x8] sm:$0xff] %v939
              %v941 = vld [vmem:[%s935 + $0x10] sm:$0xff]
              %942 = vst [vmem:[%s936 + $0x10] sm:$0xff] %v941
              %v943 = vld [vmem:[%s935 + $0x18] sm:$0xff]
              %944 = vst [vmem:[%s936 + $0x18] sm:$0xff] %v943
            $region158: #{voiceclip_forward.1} parent=152 // loop_footer
              %s934 = sadd.s32 1, %s930
            $region159: #{voiceclip_forward.1} parent=152 // loop_footer_branch
              %929 = sbr.rel target = $region155
            $region160: #{voiceclip_forward.1} parent=152 // loop_exit
              _
          $region153: #{voiceclip_forward.1} parent=137 // pred_fallthru
            _
          %p945 = pneg %p925
          // Predicated region
          $region161: #{voiceclip_forward.1} parent=137 // pred_check
            _
          $region162: #{voiceclip_forward.1} parent=137 // pred_check_branch
            %947 = sbr.rel (%p925) target = $region164
          $region163: #{voiceclip_forward.1} parent=137 // pred_region
            %s948 = sand.u32 32, 7
          $region164: #{voiceclip_forward.1} parent=137 // pred_fallthru
            _
        $region138: #{voiceclip_forward.1} parent=99 // pred_fallthru
          _
        // Predicated region
        $region139: #{voiceclip_forward.1} parent=99 // pred_check
          %p910 = pneg %p906
        $region140: #{voiceclip_forward.1} parent=99 // pred_check_branch
          %912 = sbr.rel (%p910) target = $region142
        $region141: #{voiceclip_forward.1} parent=99 // pred_region
          %s913 = sshllo.u32 0, 32
          loop: start=0, step=1, limit=1
          $region143: #{voiceclip_forward.1} parent=141 // loop_pre_header
            _
          $region144: #{voiceclip_forward.1} parent=141 // loop_header
            %s915 = sphi 0, %s919
            %p916 = scmp.ge.s32.totalorder %s915, 1
            %s920 = sphi %s1, %s1
            %s921 = sphi [#allocation3], [#allocation3]
          $region145: #{voiceclip_forward.1} parent=141 // loop_header_branch
            %918 = sbr.rel (%p916) target = $region149
          $region146: #{voiceclip_forward.1} parent=141 // loop_body
            %v922 = vld [vmem:[%s920] sm:%s913]
            %923 = vst [vmem:[%s921] sm:%s913] %v922
          $region147: #{voiceclip_forward.1} parent=141 // loop_footer
            %s919 = sadd.s32 1, %s915
          $region148: #{voiceclip_forward.1} parent=141 // loop_footer_branch
            %914 = sbr.rel target = $region144
          $region149: #{voiceclip_forward.1} parent=141 // loop_exit
            _
        $region142: #{voiceclip_forward.1} parent=99 // pred_fallthru
          _
        // Predicated region
        $region165: #{voiceclip_forward.1} parent=99 // pred_check
          _
        $region166: #{voiceclip_forward.1} parent=99 // pred_check_branch
          %951 = sbr.rel (0) target = $region168
        $region167: #{voiceclip_forward.1} parent=99 // pred_region
          %952 = vsyncadd %s904, 512
        $region168: #{voiceclip_forward.1} parent=99 // pred_fallthru
          _
        %s953 = smul.u32 16, 1
        %s954 = sshll.u32 %s953, 4
        %955 = dma.done [#allocation4], %s954
        %s956 = smul.u32 32, 1
        %s957 = sshll.u32 %s956, 4
        %958 = dma.done %s904, %s957
      $region100: #{voiceclip_forward.1} parent=95 // pred_fallthru
        _
      %v959 = vld [vmem:[#allocation2] sm:$0xff]
      %v960 = vld [vmem:[#allocation2 + $0x8] sm:$0xff]
      %v961 = vld [vmem:[%s790] sm:$0x3]
      %v962 = vld [vmem:[%s795] sm:$0xf]
      %v963 = vld [vmem:[%s795 + $0x4] sm:$0xf]
      %v964 = vld [vmem:[%s795 + $0x8] sm:$0xf]
      %v965 = vld [vmem:[%s795 + $0xc] sm:$0xf]
      %v966 = vld [vmem:[%s795 + $0x10] sm:$0xf]
      %v967 = vld [vmem:[%s795 + $0x14] sm:$0xf]
      %v968 = vld [vmem:[%s795 + $0x18] sm:$0xf]
      %v969 = vld [vmem:[%s795 + $0x1c] sm:$0xf]
      %v970 = vld [vmem:[%s795 + $0x20] sm:$0xf]
      %v971 = vld [vmem:[%s795 + $0x24] sm:$0xf]
      %v972 = vld [vmem:[%s795 + $0x28] sm:$0xf]
      %v973 = vld [vmem:[%s795 + $0x2c] sm:$0xf]
      %v974 = vld [vmem:[%s800] sm:$0xf]
      %v975 = vld [vmem:[%s800 + $0x4] sm:$0xf]
      %v976 = vld [vmem:[%s800 + $0x8] sm:$0xf]
      %v977 = vld [vmem:[%s800 + $0xc] sm:$0xf]
      %v978 = vld [vmem:[%s804] sm:$0x3]
      %v979 = vld [vmem:[%s809] sm:$0xf]
      %v980 = vld [vmem:[%s809 + $0x4] sm:$0xf]
      %v981 = vld [vmem:[%s809 + $0x8] sm:$0xf]
      %v982 = vld [vmem:[%s809 + $0xc] sm:$0xf]
      %v983 = vld [vmem:[%s812] sm:$0x1]
      %v984 = vld [vmem:[%s817] sm:$0xf]
      %v985 = vld [vmem:[%s817 + $0x4] sm:$0xf]
      %v986 = vld [vmem:[%s817 + $0x8] sm:$0xf]
      %v987 = vld [vmem:[%s817 + $0xc] sm:$0xf]
      %v988 = vld [vmem:[%s817 + $0x10] sm:$0xf]
      %v989 = vld [vmem:[%s817 + $0x14] sm:$0xf]
      %v990 = vld [vmem:[%s817 + $0x18] sm:$0xf]
      %v991 = vld [vmem:[%s817 + $0x1c] sm:$0xf]
      %v992 = vld [vmem:[%s817 + $0x20] sm:$0xf]
      %v993 = vld [vmem:[%s817 + $0x24] sm:$0xf]
      %v994 = vld [vmem:[%s817 + $0x28] sm:$0xf]
      %v995 = vld [vmem:[%s817 + $0x2c] sm:$0xf]
      %v996 = vld [vmem:[%s817 + $0x30] sm:$0xf]
      %v997 = vld [vmem:[%s817 + $0x34] sm:$0xf]
      %v998 = vld [vmem:[%s817 + $0x38] sm:$0xf]
      %v999 = vld [vmem:[%s817 + $0x3c] sm:$0xf]
      %v1000 = vld [vmem:[%s820] sm:$0x1]
      %vm1001 = vcmask 261120
      %v1002 = vsel %vm1001, %v959, 0.0
      %1003 = vadd.xlane.f32.xlu0 %v1002
      %v1004 = vpop.xlane.xlu0 %1003
      %v1005 = vsel %vm1001, %v960, 0.0
      %1006 = vadd.xlane.f32.xlu0 %v1005
      %v1007 = vpop.xlane.xlu0 %1006
      %v1008 = vrcp.pop 32.0
      %v1009 = vmul.f32 %v1004, %v1008
      %v1010 = vmul.f32 %v1007, %v1008
      %v1011 = vsub.f32 %v959, %v1009
      %v1012 = vsub.f32 %v960, %v1010
      %v1013 = vmul.f32 %v1011, %v1011
      %v1014 = vmul.f32 %v1012, %v1012
      %v1015 = vsel %vm1001, %v1013, 0.0
      %1016 = vadd.xlane.f32.xlu0 %v1015
      %v1017 = vpop.xlane.xlu0 %1016
      %v1018 = vsel %vm1001, %v1014, 0.0
      %1019 = vadd.xlane.f32.xlu0 %v1018
      %v1020 = vpop.xlane.xlu0 %1019
      %v1021 = vmul.f32 %v1017, %v1008
      %v1022 = vmul.f32 %v1020, %v1008
      %v1023 = vadd.f32 %v1021, 1e-05
      %v1024 = vadd.f32 %v1022, 1e-05
      %v1025 = vrsqrt.pop %v1023
      %v1026 = vrsqrt.pop %v1024
      %v1027 = vmul.f32 %v1011, %v1025
      %v1028 = vmul.f32 %v1012, %v1026
      %v1029 = vlaneseq
      %v1030 = vshrl.u32 %v1029, 7
      %v1031 = vsub.s32 0, %v1030
      %v1032 = vrot.slane %v961, %v1031
      %v1033 = vmul.f32 %v1027, %v1032
      %v1034 = vmul.f32 %v1028, %v1032
      %v1035 = vlaneseq
      %v1036 = vshrl.u32 %v1035, 7
      %v1037 = vsub.s32 1, %v1036
      %v1038 = vrot.slane %v961, %v1037
      %v1039 = vadd.f32 %v1033, %v1038
      %v1040 = vadd.f32 %v1034, %v1038
      %v1041 = vpack.c.bf16 %v1040, %v1039
      %v1046 = vunpack.c.l.b16 %v962
      %v1047 = vunpack.c.l.b16 %v963
      %v1048 = vunpack.c.l.b16 %v964
      %v1049 = vunpack.c.l.b16 %v965
      %v1050 = vpack.c.b16 %v1047, %v1046
      %v1051 = vpack.c.b16 %v1049, %v1048
      %v1055 = vsel %vm1001, %v1041, 0
      %1057 = vmatprep.subr.bf16.mxu0 0
      %1058 = vmatpush1.bf16.msra.mxu0 %v1050
      %1059 = vmatprep.subr.bf16.mxu0 0
      %1060 = vmatpush1.bf16.msra.mxu0 %v1051
      %1061 = vmatprep.subr.bf16.mxu0 0
      %1062 = vmatpush1.bf16.msra.mxu0 0
      %1063 = vmatprep.subr.bf16.mxu0 0
      %1064 = vmatpush1.bf16.msra.mxu0 0
      %1065 = vmatprep.subr.bf16.mxu0 0
      %1066 = vmatpush1.bf16.msra.mxu0 0
      %1067 = vmatprep.subr.bf16.mxu0 0
      %1068 = vmatpush1.bf16.msra.mxu0 0
      %1069 = vmatprep.subr.bf16.mxu0 0
      %1070 = vmatpush1.bf16.msra.mxu0 0
      %1071 = vmatprep.subr.bf16.mxu0 0
      %1072 = vmatpush1.bf16.msra.mxu0 0
      %1073 = vmatprep.subr.bf16.mxu0 0
      %1074 = vmatpush1.bf16.msra.mxu0 0
      %1075 = vmatprep.subr.bf16.mxu0 0
      %1076 = vmatpush1.bf16.msra.mxu0 0
      %1077 = vmatprep.subr.bf16.mxu0 0
      %1078 = vmatpush1.bf16.msra.mxu0 0
      %1079 = vmatprep.subr.bf16.mxu0 0
      %1080 = vmatpush1.bf16.msra.mxu0 0
      %1081 = vmatprep.subr.bf16.mxu0 0
      %1082 = vmatpush1.bf16.msra.mxu0 0
      %1083 = vmatprep.subr.bf16.mxu0 0
      %1084 = vmatpush1.bf16.msra.mxu0 0
      %1085 = vmatprep.subr.bf16.mxu0 0
      %1086 = vmatpush1.bf16.msra.mxu0 0
      %1087 = vmatprep.subr.bf16.mxu0 0
      %1088 = vmatpush1.bf16.msra.mxu0 0
      %1089 = vmatprep.mubr.bf16.mxu0 0
      %1090 = vmatmul.mubr.bf16.gmra.mrb[0].mxu0 %v1055
      %v1091 = vpop.f32.mrb[0].mxu0
      %v1092 = vadd.f32 0.0, %v1091
      %v1093 = vpop.f32.mrb[0].mxu0
      %v1094 = vpop.f32.mrb[0].mxu0
      %v1095 = vadd.f32 0.0, %v1094
      %v1096 = vpop.f32.mrb[0].mxu0
      %1097 = vdwg.mxu0
      %v1098 = vmul.f32 %v1092, 0.35355338
      %v1099 = vmul.f32 %v1095, 0.35355338
      %v1104 = vunpack.c.l.b16 %v966
      %v1105 = vunpack.c.l.b16 %v967
      %v1106 = vunpack.c.l.b16 %v968
      %v1107 = vunpack.c.l.b16 %v969
      %v1108 = vpack.c.b16 %v1105, %v1104
      %v1109 = vpack.c.b16 %v1107, %v1106
      %1112 = vmatprep.subr.bf16.mxu0 0
      %1113 = vmatpush1.bf16.msra.mxu0 %v1108
      %1114 = vmatprep.subr.bf16.mxu0 0
      %1115 = vmatpush1.bf16.msra.mxu0 %v1109
      %1116 = vmatprep.subr.bf16.mxu0 0
      %1117 = vmatpush1.bf16.msra.mxu0 0
      %1118 = vmatprep.subr.bf16.mxu0 0
      %1119 = vmatpush1.bf16.msra.mxu0 0
      %1120 = vmatprep.subr.bf16.mxu0 0
      %1121 = vmatpush1.bf16.msra.mxu0 0
      %1122 = vmatprep.subr.bf16.mxu0 0
      %1123 = vmatpush1.bf16.msra.mxu0 0
      %1124 = vmatprep.subr.bf16.mxu0 0
      %1125 = vmatpush1.bf16.msra.mxu0 0
      %1126 = vmatprep.subr.bf16.mxu0 0
      %1127 = vmatpush1.bf16.msra.mxu0 0
      %1128 = vmatprep.subr.bf16.mxu0 0
      %1129 = vmatpush1.bf16.msra.mxu0 0
      %1130 = vmatprep.subr.bf16.mxu0 0
      %1131 = vmatpush1.bf16.msra.mxu0 0
      %1132 = vmatprep.subr.bf16.mxu0 0
      %1133 = vmatpush1.bf16.msra.mxu0 0
      %1134 = vmatprep.subr.bf16.mxu0 0
      %1135 = vmatpush1.bf16.msra.mxu0 0
      %1136 = vmatprep.subr.bf16.mxu0 0
      %1137 = vmatpush1.bf16.msra.mxu0 0
      %1138 = vmatprep.subr.bf16.mxu0 0
      %1139 = vmatpush1.bf16.msra.mxu0 0
      %1140 = vmatprep.subr.bf16.mxu0 0
      %1141 = vmatpush1.bf16.msra.mxu0 0
      %1142 = vmatprep.subr.bf16.mxu0 0
      %1143 = vmatpush1.bf16.msra.mxu0 0
      %1144 = vmatprep.mubr.bf16.mxu0 0
      %1145 = vmatmul.mubr.bf16.gmra.mrb[0].mxu0 %v1055
      %v1146 = vpop.f32.mrb[0].mxu0
      %v1147 = vadd.f32 0.0, %v1146
      %v1148 = vpop.f32.mrb[0].mxu0
      %v1149 = vpop.f32.mrb[0].mxu0
      %v1150 = vadd.f32 0.0, %v1149
      %v1151 = vpop.f32.mrb[0].mxu0
      %1152 = vdwg.mxu0
      %v1157 = vunpack.c.l.b16 %v970
      %v1158 = vunpack.c.l.b16 %v971
      %v1159 = vunpack.c.l.b16 %v972
      %v1160 = vunpack.c.l.b16 %v973
      %v1161 = vpack.c.b16 %v1158, %v1157
      %v1162 = vpack.c.b16 %v1160, %v1159
      %1165 = vmatprep.subr.bf16.mxu0 0
      %1166 = vmatpush1.bf16.msra.mxu0 %v1161
      %1167 = vmatprep.subr.bf16.mxu0 0
      %1168 = vmatpush1.bf16.msra.mxu0 %v1162
      %1169 = vmatprep.subr.bf16.mxu0 0
      %1170 = vmatpush1.bf16.msra.mxu0 0
      %1171 = vmatprep.subr.bf16.mxu0 0
      %1172 = vmatpush1.bf16.msra.mxu0 0
      %1173 = vmatprep.subr.bf16.mxu0 0
      %1174 = vmatpush1.bf16.msra.mxu0 0
      %1175 = vmatprep.subr.bf16.mxu0 0
      %1176 = vmatpush1.bf16.msra.mxu0 0
      %1177 = vmatprep.subr.bf16.mxu0 0
      %1178 = vmatpush1.bf16.msra.mxu0 0
      %1179 = vmatprep.subr.bf16.mxu0 0
      %1180 = vmatpush1.bf16.msra.mxu0 0
      %1181 = vmatprep.subr.bf16.mxu0 0
      %1182 = vmatpush1.bf16.msra.mxu0 0
      %1183 = vmatprep.subr.bf16.mxu0 0
      %1184 = vmatpush1.bf16.msra.mxu0 0
      %1185 = vmatprep.subr.bf16.mxu0 0
      %1186 = vmatpush1.bf16.msra.mxu0 0
      %1187 = vmatprep.subr.bf16.mxu0 0
      %1188 = vmatpush1.bf16.msra.mxu0 0
      %1189 = vmatprep.subr.bf16.mxu0 0
      %1190 = vmatpush1.bf16.msra.mxu0 0
      %1191 = vmatprep.subr.bf16.mxu0 0
      %1192 = vmatpush1.bf16.msra.mxu0 0
      %1193 = vmatprep.subr.bf16.mxu0 0
      %1194 = vmatpush1.bf16.msra.mxu0 0
      %1195 = vmatprep.subr.bf16.mxu0 0
      %1196 = vmatpush1.bf16.msra.mxu0 0
      %1197 = vmatprep.mubr.bf16.mxu0 0
      %1198 = vmatmul.mubr.bf16.gmra.mrb[0].mxu0 %v1055
      %v1199 = vpop.f32.mrb[0].mxu0
      %v1200 = vadd.f32 0.0, %v1199
      %v1201 = vpop.f32.mrb[0].mxu0
      %v1202 = vpop.f32.mrb[0].mxu0
      %v1203 = vadd.f32 0.0, %v1202
      %v1204 = vpop.f32.mrb[0].mxu0
      %1205 = vdwg.mxu0
      %v1206 = vpack.c.bf16 %v1099, %v1098
      %v1208 = vunpack.c.l.b16 %v1206
      %v1209 = vunpack.c.h.b16 %v1206
      %v1210 = vpack.c.b16 %v1208, %v1208
      %v1211 = vpack.c.b16 %v1209, %v1209
      %v1212 = vpack.c.bf16 %v1150, %v1147
      %v1214 = vunpack.c.l.b16 %v1212
      %v1215 = vunpack.c.h.b16 %v1212
      %v1216 = vpack.c.b16 %v1214, %v1214
      %v1217 = vpack.c.b16 %v1215, %v1215
      %v1218 = vpack.c.bf16 %v1203, %v1200
      %v1220 = vunpack.c.l.b16 %v1218
      %v1221 = vunpack.c.h.b16 %v1218
      %v1222 = vpack.c.b16 %v1220, %v1220
      %v1223 = vpack.c.b16 %v1221, %v1221
      %vm1224 = vcmask 64512
      %v1226 = vsel %vm1224, %v1210, 0
      %v1229 = vsel %vm1224, %v1216, 0
      %1231 = vmatprep.subr.bf16.mxu0 0
      %1232 = vmatpush1.bf16.xpose.msra.mxu0 %v1229
      %1233 = vmatprep.subr.bf16.mxu0 0
      %1234 = vmatpush1.bf16.xpose.msra.mxu0 0
      %1235 = vmatprep.subr.bf16.mxu0 0
      %1236 = vmatpush1.bf16.xpose.msra.mxu0 0
      %1237 = vmatprep.subr.bf16.mxu0 0
      %1238 = vmatpush1.bf16.xpose.msra.mxu0 0
      %1239 = vmatprep.subr.bf16.mxu0 0
      %1240 = vmatpush1.bf16.xpose.msra.mxu0 0
      %1241 = vmatprep.subr.bf16.mxu0 0
      %1242 = vmatpush1.bf16.xpose.msra.mxu0 0
      %1243 = vmatprep.subr.bf16.mxu0 0
      %1244 = vmatpush1.bf16.xpose.msra.mxu0 0
      %1245 = vmatprep.subr.bf16.mxu0 0
      %1246 = vmatpush1.bf16.xpose.msra.mxu0 0
      %1247 = vmatprep.subr.bf16.mxu0 0
      %1248 = vmatpush1.bf16.xpose.msra.mxu0 0
      %1249 = vmatprep.subr.bf16.mxu0 0
      %1250 = vmatpush1.bf16.xpose.msra.mxu0 0
      %1251 = vmatprep.subr.bf16.mxu0 0
      %1252 = vmatpush1.bf16.xpose.msra.mxu0 0
      %1253 = vmatprep.subr.bf16.mxu0 0
      %1254 = vmatpush1.bf16.xpose.msra.mxu0 0
      %1255 = vmatprep.subr.bf16.mxu0 0
      %1256 = vmatpush1.bf16.xpose.msra.mxu0 0
      %1257 = vmatprep.subr.bf16.mxu0 0
      %1258 = vmatpush1.bf16.xpose.msra.mxu0 0
      %1259 = vmatprep.subr.bf16.mxu0 0
      %1260 = vmatpush1.bf16.xpose.msra.mxu0 0
      %1261 = vmatprep.subr.bf16.mxu0 0
      %1262 = vmatpush1.bf16.xpose.msra.mxu0 0
      %1263 = vmatprep.mubr.bf16.mxu0 0
      %1264 = vmatmul.mubr.bf16.gmra.mrb[0].mxu0 %v1226
      %v1265 = vpop.f32.mrb[0].mxu0
      %v1266 = vadd.f32 0.0, %v1265
      %v1267 = vpop.f32.mrb[0].mxu0
      %v1268 = vpop.f32.mrb[0].mxu0
      %v1269 = vpop.f32.mrb[0].mxu0
      %1270 = vdwg.mxu0
      %v1272 = vsel %vm1224, %v1211, 0
      %v1275 = vsel %vm1224, %v1217, 0
      %1277 = vmatprep.subr.bf16.mxu0 0
      %1278 = vmatpush1.bf16.xpose.msra.mxu0 %v1275
      %1279 = vmatprep.subr.bf16.mxu0 0
      %1280 = vmatpush1.bf16.xpose.msra.mxu0 0
      %1281 = vmatprep.subr.bf16.mxu0 0
      %1282 = vmatpush1.bf16.xpose.msra.mxu0 0
      %1283 = vmatprep.subr.bf16.mxu0 0
      %1284 = vmatpush1.bf16.xpose.msra.mxu0 0
      %1285 = vmatprep.subr.bf16.mxu0 0
      %1286 = vmatpush1.bf16.xpose.msra.mxu0 0
      %1287 = vmatprep.subr.bf16.mxu0 0
      %1288 = vmatpush1.bf16.xpose.msra.mxu0 0
      %1289 = vmatprep.subr.bf16.mxu0 0
      %1290 = vmatpush1.bf16.xpose.msra.mxu0 0
      %1291 = vmatprep.subr.bf16.mxu0 0
      %1292 = vmatpush1.bf16.xpose.msra.mxu0 0
      %1293 = vmatprep.subr.bf16.mxu0 0
      %1294 = vmatpush1.bf16.xpose.msra.mxu0 0
      %1295 = vmatprep.subr.bf16.mxu0 0
      %1296 = vmatpush1.bf16.xpose.msra.mxu0 0
      %1297 = vmatprep.subr.bf16.mxu0 0
      %1298 = vmatpush1.bf16.xpose.msra.mxu0 0
      %1299 = vmatprep.subr.bf16.mxu0 0
      %1300 = vmatpush1.bf16.xpose.msra.mxu0 0
      %1301 = vmatprep.subr.bf16.mxu0 0
      %1302 = vmatpush1.bf16.xpose.msra.mxu0 0
      %1303 = vmatprep.subr.bf16.mxu0 0
      %1304 = vmatpush1.bf16.xpose.msra.mxu0 0
      %1305 = vmatprep.subr.bf16.mxu0 0
      %1306 = vmatpush1.bf16.xpose.msra.mxu0 0
      %1307 = vmatprep.subr.bf16.mxu0 0
      %1308 = vmatpush1.bf16.xpose.msra.mxu0 0
      %1309 = vmatprep.mubr.bf16.mxu0 0
      %1310 = vmatmul.mubr.bf16.gmra.mrb[0].mxu0 %v1272
      %v1311 = vpop.f32.mrb[0].mxu0
      %v1312 = vadd.f32 0.0, %v1311
      %v1313 = vpop.f32.mrb[0].mxu0
      %v1314 = vpop.f32.mrb[0].mxu0
      %v1315 = vpop.f32.mrb[0].mxu0
      %1316 = vdwg.mxu0
      %v1317 = vsel %vm1224, %v1266, -inf
      %1318 = vmax.xlane.f32.xlu0 %v1317
      %v1319 = vpop.xlane.xlu0 %1318
      %v1320 = vsel %vm1224, %v1312, -inf
      %1321 = vmax.xlane.f32.xlu0 %v1320
      %v1322 = vpop.xlane.xlu0 %1321
      %v1323 = vsub.f32 %v1266, %v1319
      %v1324 = vsub.f32 %v1312, %v1322
      %v1325 = vmul.f32 %v1323, 1.442695
      %v1326 = vpow.pop %v1325
      %v1327 = vmul.f32 %v1324, 1.442695
      %v1328 = vpow.pop %v1327
      %v1329 = vsel %vm1224, %v1326, 0.0
      %1330 = vadd.xlane.f32.xlu0 %v1329
      %v1331 = vpop.xlane.xlu0 %1330
      %v1332 = vsel %vm1224, %v1328, 0.0
      %1333 = vadd.xlane.f32.xlu0 %v1332
      %v1334 = vpop.xlane.xlu0 %1333
      %v1335 = vrcp.pop %v1331
      %v1336 = vrcp.pop %v1334
      %v1337 = vmul.f32 %v1326, %v1335
      %v1338 = vmul.f32 %v1328, %v1336
      %v1339 = vpack.c.bf16 %v1337, %v1337
      %v1340 = vpack.c.bf16 %v1338, %v1338
      %v1342 = vsel %vm1224, %v1339, 0
      %vm1344 = vcmask 1043456
      %v1346 = vsel %vm1344, %v1222, 0
      %1348 = vmatprep.subr.bf16.mxu0 0
      %1349 = vmatpush1.bf16.msra.mxu0 %v1346
      %1350 = vmatprep.subr.bf16.mxu0 0
      %1351 = vmatpush1.bf16.msra.mxu0 0
      %1352 = vmatprep.subr.bf16.mxu0 0
      %1353 = vmatpush1.bf16.msra.mxu0 0
      %1354 = vmatprep.subr.bf16.mxu0 0
      %1355 = vmatpush1.bf16.msra.mxu0 0
      %1356 = vmatprep.subr.bf16.mxu0 0
      %1357 = vmatpush1.bf16.msra.mxu0 0
      %1358 = vmatprep.subr.bf16.mxu0 0
      %1359 = vmatpush1.bf16.msra.mxu0 0
      %1360 = vmatprep.subr.bf16.mxu0 0
      %1361 = vmatpush1.bf16.msra.mxu0 0
      %1362 = vmatprep.subr.bf16.mxu0 0
      %1363 = vmatpush1.bf16.msra.mxu0 0
      %1364 = vmatprep.subr.bf16.mxu0 0
      %1365 = vmatpush1.bf16.msra.mxu0 0
      %1366 = vmatprep.subr.bf16.mxu0 0
      %1367 = vmatpush1.bf16.msra.mxu0 0
      %1368 = vmatprep.subr.bf16.mxu0 0
      %1369 = vmatpush1.bf16.msra.mxu0 0
      %1370 = vmatprep.subr.bf16.mxu0 0
      %1371 = vmatpush1.bf16.msra.mxu0 0
      %1372 = vmatprep.subr.bf16.mxu0 0
      %1373 = vmatpush1.bf16.msra.mxu0 0
      %1374 = vmatprep.subr.bf16.mxu0 0
      %1375 = vmatpush1.bf16.msra.mxu0 0
      %1376 = vmatprep.subr.bf16.mxu0 0
      %1377 = vmatpush1.bf16.msra.mxu0 0
      %1378 = vmatprep.subr.bf16.mxu0 0
      %1379 = vmatpush1.bf16.msra.mxu0 0
      %1380 = vmatprep.mubr.bf16.mxu0 0
      %1381 = vmatmul.mubr.bf16.gmra.mrb[0].mxu0 %v1342
      %v1382 = vpop.f32.mrb[0].mxu0
      %v1383 = vadd.f32 0.0, %v1382
      %v1384 = vpop.f32.mrb[0].mxu0
      %v1385 = vpop.f32.mrb[0].mxu0
      %v1386 = vpop.f32.mrb[0].mxu0
      %1387 = vdwg.mxu0
      %v1389 = vsel %vm1224, %v1340, 0
      %v1392 = vsel %vm1344, %v1223, 0
      %1394 = vmatprep.subr.bf16.mxu0 0
      %1395 = vmatpush1.bf16.msra.mxu0 %v1392
      %1396 = vmatprep.subr.bf16.mxu0 0
      %1397 = vmatpush1.bf16.msra.mxu0 0
      %1398 = vmatprep.subr.bf16.mxu0 0
      %1399 = vmatpush1.bf16.msra.mxu0 0
      %1400 = vmatprep.subr.bf16.mxu0 0
      %1401 = vmatpush1.bf16.msra.mxu0 0
      %1402 = vmatprep.subr.bf16.mxu0 0
      %1403 = vmatpush1.bf16.msra.mxu0 0
      %1404 = vmatprep.subr.bf16.mxu0 0
      %1405 = vmatpush1.bf16.msra.mxu0 0
      %1406 = vmatprep.subr.bf16.mxu0 0
      %1407 = vmatpush1.bf16.msra.mxu0 0
      %1408 = vmatprep.subr.bf16.mxu0 0
      %1409 = vmatpush1.bf16.msra.mxu0 0
      %1410 = vmatprep.subr.bf16.mxu0 0
      %1411 = vmatpush1.bf16.msra.mxu0 0
      %1412 = vmatprep.subr.bf16.mxu0 0
      %1413 = vmatpush1.bf16.msra.mxu0 0
      %1414 = vmatprep.subr.bf16.mxu0 0
      %1415 = vmatpush1.bf16.msra.mxu0 0
      %1416 = vmatprep.subr.bf16.mxu0 0
      %1417 = vmatpush1.bf16.msra.mxu0 0
      %1418 = vmatprep.subr.bf16.mxu0 0
      %1419 = vmatpush1.bf16.msra.mxu0 0
      %1420 = vmatprep.subr.bf16.mxu0 0
      %1421 = vmatpush1.bf16.msra.mxu0 0
      %1422 = vmatprep.subr.bf16.mxu0 0
      %1423 = vmatpush1.bf16.msra.mxu0 0
      %1424 = vmatprep.subr.bf16.mxu0 0
      %1425 = vmatpush1.bf16.msra.mxu0 0
      %1426 = vmatprep.mubr.bf16.mxu0 0
      %1427 = vmatmul.mubr.bf16.gmra.mrb[0].mxu0 %v1389
      %v1428 = vpop.f32.mrb[0].mxu0
      %v1429 = vadd.f32 0.0, %v1428
      %v1430 = vpop.f32.mrb[0].mxu0
      %v1431 = vpop.f32.mrb[0].mxu0
      %v1432 = vpop.f32.mrb[0].mxu0
      %1433 = vdwg.mxu0
      %1434 = vrot.lane.b32.xlu0 %v1210, 120
      %v1435 = vpop.permute.xlu0 %1434
      %1436 = vrot.lane.b32.xlu0 %v1216, 120
      %v1437 = vpop.permute.xlu0 %1436
      %v1439 = vsel %vm1224, %v1435, 0
      %v1442 = vsel %vm1224, %v1437, 0
      %1444 = vmatprep.subr.bf16.mxu0 0
      %1445 = vmatpush1.bf16.xpose.msra.mxu0 %v1442
      %1446 = vmatprep.subr.bf16.mxu0 0
      %1447 = vmatpush1.bf16.xpose.msra.mxu0 0
      %1448 = vmatprep.subr.bf16.mxu0 0
      %1449 = vmatpush1.bf16.xpose.msra.mxu0 0
      %1450 = vmatprep.subr.bf16.mxu0 0
      %1451 = vmatpush1.bf16.xpose.msra.mxu0 0
      %1452 = vmatprep.subr.bf16.mxu0 0
      %1453 = vmatpush1.bf16.xpose.msra.mxu0 0
      %1454 = vmatprep.subr.bf16.mxu0 0
      %1455 = vmatpush1.bf16.xpose.msra.mxu0 0
      %1456 = vmatprep.subr.bf16.mxu0 0
      %1457 = vmatpush1.bf16.xpose.msra.mxu0 0
      %1458 = vmatprep.subr.bf16.mxu0 0
      %1459 = vmatpush1.bf16.xpose.msra.mxu0 0
      %1460 = vmatprep.subr.bf16.mxu0 0
      %1461 = vmatpush1.bf16.xpose.msra.mxu0 0
      %1462 = vmatprep.subr.bf16.mxu0 0
      %1463 = vmatpush1.bf16.xpose.msra.mxu0 0
      %1464 = vmatprep.subr.bf16.mxu0 0
      %1465 = vmatpush1.bf16.xpose.msra.mxu0 0
      %1466 = vmatprep.subr.bf16.mxu0 0
      %1467 = vmatpush1.bf16.xpose.msra.mxu0 0
      %1468 = vmatprep.subr.bf16.mxu0 0
      %1469 = vmatpush1.bf16.xpose.msra.mxu0 0
      %1470 = vmatprep.subr.bf16.mxu0 0
      %1471 = vmatpush1.bf16.xpose.msra.mxu0 0
      %1472 = vmatprep.subr.bf16.mxu0 0
      %1473 = vmatpush1.bf16.xpose.msra.mxu0 0
      %1474 = vmatprep.subr.bf16.mxu0 0
      %1475 = vmatpush1.bf16.xpose.msra.mxu0 0
      %1476 = vmatprep.mubr.bf16.mxu0 0
      %1477 = vmatmul.mubr.bf16.gmra.mrb[0].mxu0 %v1439
      %v1478 = vpop.f32.mrb[0].mxu0
      %v1479 = vadd.f32 0.0, %v1478
      %v1480 = vpop.f32.mrb[0].mxu0
      %v1481 = vpop.f32.mrb[0].mxu0
      %v1482 = vpop.f32.mrb[0].mxu0
      %1483 = vdwg.mxu0
      %1484 = vrot.lane.b32.xlu0 %v1211, 120
      %v1485 = vpop.permute.xlu0 %1484
      %1486 = vrot.lane.b32.xlu0 %v1217, 120
      %v1487 = vpop.permute.xlu0 %1486
      %v1489 = vsel %vm1224, %v1485, 0
      %v1492 = vsel %vm1224, %v1487, 0
      %1494 = vmatprep.subr.bf16.mxu0 0
      %1495 = vmatpush1.bf16.xpose.msra.mxu0 %v1492
      %1496 = vmatprep.subr.bf16.mxu0 0
      %1497 = vmatpush1.bf16.xpose.msra.mxu0 0
      %1498 = vmatprep.subr.bf16.mxu0 0
      %1499 = vmatpush1.bf16.xpose.msra.mxu0 0
      %1500 = vmatprep.subr.bf16.mxu0 0
      %1501 = vmatpush1.bf16.xpose.msra.mxu0 0
      %1502 = vmatprep.subr.bf16.mxu0 0
      %1503 = vmatpush1.bf16.xpose.msra.mxu0 0
      %1504 = vmatprep.subr.bf16.mxu0 0
      %1505 = vmatpush1.bf16.xpose.msra.mxu0 0
      %1506 = vmatprep.subr.bf16.mxu0 0
      %1507 = vmatpush1.bf16.xpose.msra.mxu0 0
      %1508 = vmatprep.subr.bf16.mxu0 0
      %1509 = vmatpush1.bf16.xpose.msra.mxu0 0
      %1510 = vmatprep.subr.bf16.mxu0 0
      %1511 = vmatpush1.bf16.xpose.msra.mxu0 0
      %1512 = vmatprep.subr.bf16.mxu0 0
      %1513 = vmatpush1.bf16.xpose.msra.mxu0 0
      %1514 = vmatprep.subr.bf16.mxu0 0
      %1515 = vmatpush1.bf16.xpose.msra.mxu0 0
      %1516 = vmatprep.subr.bf16.mxu0 0
      %1517 = vmatpush1.bf16.xpose.msra.mxu0 0
      %1518 = vmatprep.subr.bf16.mxu0 0
      %1519 = vmatpush1.bf16.xpose.msra.mxu0 0
      %1520 = vmatprep.subr.bf16.mxu0 0
      %1521 = vmatpush1.bf16.xpose.msra.mxu0 0
      %1522 = vmatprep.subr.bf16.mxu0 0
      %1523 = vmatpush1.bf16.xpose.msra.mxu0 0
      %1524 = vmatprep.subr.bf16.mxu0 0
      %1525 = vmatpush1.bf16.xpose.msra.mxu0 0
      %1526 = vmatprep.mubr.bf16.mxu0 0
      %1527 = vmatmul.mubr.bf16.gmra.mrb[0].mxu0 %v1489
      %v1528 = vpop.f32.mrb[0].mxu0
      %v1529 = vadd.f32 0.0, %v1528
      %v1530 = vpop.f32.mrb[0].mxu0
      %v1531 = vpop.f32.mrb[0].mxu0
      %v1532 = vpop.f32.mrb[0].mxu0
      %1533 = vdwg.mxu0
      %v1534 = vsel %vm1224, %v1479, -inf
      %1535 = vmax.xlane.f32.xlu0 %v1534
      %v1536 = vpop.xlane.xlu0 %1535
      %v1537 = vsel %vm1224, %v1529, -inf
      %1538 = vmax.xlane.f32.xlu0 %v1537
      %v1539 = vpop.xlane.xlu0 %1538
      %v1540 = vsub.f32 %v1479, %v1536
      %v1541 = vsub.f32 %v1529, %v1539
      %v1542 = vmul.f32 %v1540, 1.442695
      %v1543 = vpow.pop %v1542
      %v1544 = vmul.f32 %v1541, 1.442695
      %v1545 = vpow.pop %v1544
      %v1546 = vsel %vm1224, %v1543, 0.0
      %1547 = vadd.xlane.f32.xlu0 %v1546
      %v1548 = vpop.xlane.xlu0 %1547
      %v1549 = vsel %vm1224, %v1545, 0.0
      %1550 = vadd.xlane.f32.xlu0 %v1549
      %v1551 = vpop.xlane.xlu0 %1550
      %v1552 = vrcp.pop %v1548
      %v1553 = vrcp.pop %v1551
      %v1554 = vmul.f32 %v1543, %v1552
      %v1555 = vmul.f32 %v1545, %v1553
      %v1556 = vpack.c.bf16 %v1554, %v1554
      %v1557 = vpack.c.bf16 %v1555, %v1555
      %1558 = vrot.lane.b32.xlu0 %v1222, 120
      %v1559 = vpop.permute.xlu0 %1558
      %v1561 = vsel %vm1224, %v1556, 0
      %v1564 = vsel %vm1344, %v1559, 0
      %1566 = vmatprep.subr.bf16.mxu0 0
      %1567 = vmatpush1.bf16.msra.mxu0 %v1564
      %1568 = vmatprep.subr.bf16.mxu0 0
      %1569 = vmatpush1.bf16.msra.mxu0 0
      %1570 = vmatprep.subr.bf16.mxu0 0
      %1571 = vmatpush1.bf16.msra.mxu0 0
      %1572 = vmatprep.subr.bf16.mxu0 0
      %1573 = vmatpush1.bf16.msra.mxu0 0
      %1574 = vmatprep.subr.bf16.mxu0 0
      %1575 = vmatpush1.bf16.msra.mxu0 0
      %1576 = vmatprep.subr.bf16.mxu0 0
      %1577 = vmatpush1.bf16.msra.mxu0 0
      %1578 = vmatprep.subr.bf16.mxu0 0
      %1579 = vmatpush1.bf16.msra.mxu0 0
      %1580 = vmatprep.subr.bf16.mxu0 0
      %1581 = vmatpush1.bf16.msra.mxu0 0
      %1582 = vmatprep.subr.bf16.mxu0 0
      %1583 = vmatpush1.bf16.msra.mxu0 0
      %1584 = vmatprep.subr.bf16.mxu0 0
      %1585 = vmatpush1.bf16.msra.mxu0 0
      %1586 = vmatprep.subr.bf16.mxu0 0
      %1587 = vmatpush1.bf16.msra.mxu0 0
      %1588 = vmatprep.subr.bf16.mxu0 0
      %1589 = vmatpush1.bf16.msra.mxu0 0
      %1590 = vmatprep.subr.bf16.mxu0 0
      %1591 = vmatpush1.bf16.msra.mxu0 0
      %1592 = vmatprep.subr.bf16.mxu0 0
      %1593 = vmatpush1.bf16.msra.mxu0 0
      %1594 = vmatprep.subr.bf16.mxu0 0
      %1595 = vmatpush1.bf16.msra.mxu0 0
      %1596 = vmatprep.subr.bf16.mxu0 0
      %1597 = vmatpush1.bf16.msra.mxu0 0
      %1598 = vmatprep.mubr.bf16.mxu0 0
      %1599 = vmatmul.mubr.bf16.gmra.mrb[0].mxu0 %v1561
      %v1600 = vpop.f32.mrb[0].mxu0
      %v1601 = vadd.f32 0.0, %v1600
      %v1602 = vpop.f32.mrb[0].mxu0
      %v1603 = vpop.f32.mrb[0].mxu0
      %v1604 = vpop.f32.mrb[0].mxu0
      %1605 = vdwg.mxu0
      %1606 = vrot.lane.b32.xlu0 %v1223, 120
      %v1607 = vpop.permute.xlu0 %1606
      %v1609 = vsel %vm1224, %v1557, 0
      %v1612 = vsel %vm1344, %v1607, 0
      %1614 = vmatprep.subr.bf16.mxu0 0
      %1615 = vmatpush1.bf16.msra.mxu0 %v1612
      %1616 = vmatprep.subr.bf16.mxu0 0
      %1617 = vmatpush1.bf16.msra.mxu0 0
      %1618 = vmatprep.subr.bf16.mxu0 0
      %1619 = vmatpush1.bf16.msra.mxu0 0
      %1620 = vmatprep.subr.bf16.mxu0 0
      %1621 = vmatpush1.bf16.msra.mxu0 0
      %1622 = vmatprep.subr.bf16.mxu0 0
      %1623 = vmatpush1.bf16.msra.mxu0 0
      %1624 = vmatprep.subr.bf16.mxu0 0
      %1625 = vmatpush1.bf16.msra.mxu0 0
      %1626 = vmatprep.subr.bf16.mxu0 0
      %1627 = vmatpush1.bf16.msra.mxu0 0
      %1628 = vmatprep.subr.bf16.mxu0 0
      %1629 = vmatpush1.bf16.msra.mxu0 0
      %1630 = vmatprep.subr.bf16.mxu0 0
      %1631 = vmatpush1.bf16.msra.mxu0 0
      %1632 = vmatprep.subr.bf16.mxu0 0
      %1633 = vmatpush1.bf16.msra.mxu0 0
      %1634 = vmatprep.subr.bf16.mxu0 0
      %1635 = vmatpush1.bf16.msra.mxu0 0
      %1636 = vmatprep.subr.bf16.mxu0 0
      %1637 = vmatpush1.bf16.msra.mxu0 0
      %1638 = vmatprep.subr.bf16.mxu0 0
      %1639 = vmatpush1.bf16.msra.mxu0 0
      %1640 = vmatprep.subr.bf16.mxu0 0
      %1641 = vmatpush1.bf16.msra.mxu0 0
      %1642 = vmatprep.subr.bf16.mxu0 0
      %1643 = vmatpush1.bf16.msra.mxu0 0
      %1644 = vmatprep.subr.bf16.mxu0 0
      %1645 = vmatpush1.bf16.msra.mxu0 0
      %1646 = vmatprep.mubr.bf16.mxu0 0
      %1647 = vmatmul.mubr.bf16.gmra.mrb[0].mxu0 %v1609
      %v1648 = vpop.f32.mrb[0].mxu0
      %v1649 = vadd.f32 0.0, %v1648
      %v1650 = vpop.f32.mrb[0].mxu0
      %v1651 = vpop.f32.mrb[0].mxu0
      %v1652 = vpop.f32.mrb[0].mxu0
      %1653 = vdwg.mxu0
      %1654 = vrot.lane.b32.xlu0 %v1210, 112
      %v1655 = vpop.permute.xlu0 %1654
      %1656 = vrot.lane.b32.xlu0 %v1216, 112
      %v1657 = vpop.permute.xlu0 %1656
      %v1659 = vsel %vm1224, %v1655, 0
      %v1662 = vsel %vm1224, %v1657, 0
      %1664 = vmatprep.subr.bf16.mxu0 0
      %1665 = vmatpush1.bf16.xpose.msra.mxu0 %v1662
      %1666 = vmatprep.subr.bf16.mxu0 0
      %1667 = vmatpush1.bf16.xpose.msra.mxu0 0
      %1668 = vmatprep.subr.bf16.mxu0 0
      %1669 = vmatpush1.bf16.xpose.msra.mxu0 0
      %1670 = vmatprep.subr.bf16.mxu0 0
      %1671 = vmatpush1.bf16.xpose.msra.mxu0 0
      %1672 = vmatprep.subr.bf16.mxu0 0
      %1673 = vmatpush1.bf16.xpose.msra.mxu0 0
      %1674 = vmatprep.subr.bf16.mxu0 0
      %1675 = vmatpush1.bf16.xpose.msra.mxu0 0
      %1676 = vmatprep.subr.bf16.mxu0 0
      %1677 = vmatpush1.bf16.xpose.msra.mxu0 0
      %1678 = vmatprep.subr.bf16.mxu0 0
      %1679 = vmatpush1.bf16.xpose.msra.mxu0 0
      %1680 = vmatprep.subr.bf16.mxu0 0
      %1681 = vmatpush1.bf16.xpose.msra.mxu0 0
      %1682 = vmatprep.subr.bf16.mxu0 0
      %1683 = vmatpush1.bf16.xpose.msra.mxu0 0
      %1684 = vmatprep.subr.bf16.mxu0 0
      %1685 = vmatpush1.bf16.xpose.msra.mxu0 0
      %1686 = vmatprep.subr.bf16.mxu0 0
      %1687 = vmatpush1.bf16.xpose.msra.mxu0 0
      %1688 = vmatprep.subr.bf16.mxu0 0
      %1689 = vmatpush1.bf16.xpose.msra.mxu0 0
      %1690 = vmatprep.subr.bf16.mxu0 0
      %1691 = vmatpush1.bf16.xpose.msra.mxu0 0
      %1692 = vmatprep.subr.bf16.mxu0 0
      %1693 = vmatpush1.bf16.xpose.msra.mxu0 0
      %1694 = vmatprep.subr.bf16.mxu0 0
      %1695 = vmatpush1.bf16.xpose.msra.mxu0 0
      %1696 = vmatprep.mubr.bf16.mxu0 0
      %1697 = vmatmul.mubr.bf16.gmra.mrb[0].mxu0 %v1659
      %v1698 = vpop.f32.mrb[0].mxu0
      %v1699 = vadd.f32 0.0, %v1698
      %v1700 = vpop.f32.mrb[0].mxu0
      %v1701 = vpop.f32.mrb[0].mxu0
      %v1702 = vpop.f32.mrb[0].mxu0
      %1703 = vdwg.mxu0
      %1704 = vrot.lane.b32.xlu0 %v1211, 112
      %v1705 = vpop.permute.xlu0 %1704
      %1706 = vrot.lane.b32.xlu0 %v1217, 112
      %v1707 = vpop.permute.xlu0 %1706
      %v1709 = vsel %vm1224, %v1705, 0
      %v1712 = vsel %vm1224, %v1707, 0
      %1714 = vmatprep.subr.bf16.mxu0 0
      %1715 = vmatpush1.bf16.xpose.msra.mxu0 %v1712
      %1716 = vmatprep.subr.bf16.mxu0 0
      %1717 = vmatpush1.bf16.xpose.msra.mxu0 0
      %1718 = vmatprep.subr.bf16.mxu0 0
      %1719 = vmatpush1.bf16.xpose.msra.mxu0 0
      %1720 = vmatprep.subr.bf16.mxu0 0
      %1721 = vmatpush1.bf16.xpose.msra.mxu0 0
      %1722 = vmatprep.subr.bf16.mxu0 0
      %1723 = vmatpush1.bf16.xpose.msra.mxu0 0
      %1724 = vmatprep.subr.bf16.mxu0 0
      %1725 = vmatpush1.bf16.xpose.msra.mxu0 0
      %1726 = vmatprep.subr.bf16.mxu0 0
      %1727 = vmatpush1.bf16.xpose.msra.mxu0 0
      %1728 = vmatprep.subr.bf16.mxu0 0
      %1729 = vmatpush1.bf16.xpose.msra.mxu0 0
      %1730 = vmatprep.subr.bf16.mxu0 0
      %1731 = vmatpush1.bf16.xpose.msra.mxu0 0
      %1732 = vmatprep.subr.bf16.mxu0 0
      %1733 = vmatpush1.bf16.xpose.msra.mxu0 0
      %1734 = vmatprep.subr.bf16.mxu0 0
      %1735 = vmatpush1.bf16.xpose.msra.mxu0 0
      %1736 = vmatprep.subr.bf16.mxu0 0
      %1737 = vmatpush1.bf16.xpose.msra.mxu0 0
      %1738 = vmatprep.subr.bf16.mxu0 0
      %1739 = vmatpush1.bf16.xpose.msra.mxu0 0
      %1740 = vmatprep.subr.bf16.mxu0 0
      %1741 = vmatpush1.bf16.xpose.msra.mxu0 0
      %1742 = vmatprep.subr.bf16.mxu0 0
      %1743 = vmatpush1.bf16.xpose.msra.mxu0 0
      %1744 = vmatprep.subr.bf16.mxu0 0
      %1745 = vmatpush1.bf16.xpose.msra.mxu0 0
      %1746 = vmatprep.mubr.bf16.mxu0 0
      %1747 = vmatmul.mubr.bf16.gmra.mrb[0].mxu0 %v1709
      %v1748 = vpop.f32.mrb[0].mxu0
      %v1749 = vadd.f32 0.0, %v1748
      %v1750 = vpop.f32.mrb[0].mxu0
      %v1751 = vpop.f32.mrb[0].mxu0
      %v1752 = vpop.f32.mrb[0].mxu0
      %1753 = vdwg.mxu0
      %v1754 = vsel %vm1224, %v1699, -inf
      %1755 = vmax.xlane.f32.xlu0 %v1754
      %v1756 = vpop.xlane.xlu0 %1755
      %v1757 = vsel %vm1224, %v1749, -inf
      %1758 = vmax.xlane.f32.xlu0 %v1757
      %v1759 = vpop.xlane.xlu0 %1758
      %v1760 = vsub.f32 %v1699, %v1756
      %v1761 = vsub.f32 %v1749, %v1759
      %v1762 = vmul.f32 %v1760, 1.442695
      %v1763 = vpow.pop %v1762
      %v1764 = vmul.f32 %v1761, 1.442695
      %v1765 = vpow.pop %v1764
      %v1766 = vsel %vm1224, %v1763, 0.0
      %1767 = vadd.xlane.f32.xlu0 %v1766
      %v1768 = vpop.xlane.xlu0 %1767
      %v1769 = vsel %vm1224, %v1765, 0.0
      %1770 = vadd.xlane.f32.xlu0 %v1769
      %v1771 = vpop.xlane.xlu0 %1770
      %v1772 = vrcp.pop %v1768
      %v1773 = vrcp.pop %v1771
      %v1774 = vmul.f32 %v1763, %v1772
      %v1775 = vmul.f32 %v1765, %v1773
      %v1776 = vpack.c.bf16 %v1774, %v1774
      %v1777 = vpack.c.bf16 %v1775, %v1775
      %1778 = vrot.lane.b32.xlu0 %v1222, 112
      %v1779 = vpop.permute.xlu0 %1778
      %v1781 = vsel %vm1224, %v1776, 0
      %v1784 = vsel %vm1344, %v1779, 0
      %1786 = vmatprep.subr.bf16.mxu0 0
      %1787 = vmatpush1.bf16.msra.mxu0 %v1784
      %1788 = vmatprep.subr.bf16.mxu0 0
      %1789 = vmatpush1.bf16.msra.mxu0 0
      %1790 = vmatprep.subr.bf16.mxu0 0
      %1791 = vmatpush1.bf16.msra.mxu0 0
      %1792 = vmatprep.subr.bf16.mxu0 0
      %1793 = vmatpush1.bf16.msra.mxu0 0
      %1794 = vmatprep.subr.bf16.mxu0 0
      %1795 = vmatpush1.bf16.msra.mxu0 0
      %1796 = vmatprep.subr.bf16.mxu0 0
      %1797 = vmatpush1.bf16.msra.mxu0 0
      %1798 = vmatprep.subr.bf16.mxu0 0
      %1799 = vmatpush1.bf16.msra.mxu0 0
      %1800 = vmatprep.subr.bf16.mxu0 0
      %1801 = vmatpush1.bf16.msra.mxu0 0
      %1802 = vmatprep.subr.bf16.mxu0 0
      %1803 = vmatpush1.bf16.msra.mxu0 0
      %1804 = vmatprep.subr.bf16.mxu0 0
      %1805 = vmatpush1.bf16.msra.mxu0 0
      %1806 = vmatprep.subr.bf16.mxu0 0
      %1807 = vmatpush1.bf16.msra.mxu0 0
      %1808 = vmatprep.subr.bf16.mxu0 0
      %1809 = vmatpush1.bf16.msra.mxu0 0
      %1810 = vmatprep.subr.bf16.mxu0 0
      %1811 = vmatpush1.bf16.msra.mxu0 0
      %1812 = vmatprep.subr.bf16.mxu0 0
      %1813 = vmatpush1.bf16.msra.mxu0 0
      %1814 = vmatprep.subr.bf16.mxu0 0
      %1815 = vmatpush1.bf16.msra.mxu0 0
      %1816 = vmatprep.subr.bf16.mxu0 0
      %1817 = vmatpush1.bf16.msra.mxu0 0
      %1818 = vmatprep.mubr.bf16.mxu0 0
      %1819 = vmatmul.mubr.bf16.gmra.mrb[0].mxu0 %v1781
      %v1820 = vpop.f32.mrb[0].mxu0
      %v1821 = vadd.f32 0.0, %v1820
      %v1822 = vpop.f32.mrb[0].mxu0
      %v1823 = vpop.f32.mrb[0].mxu0
      %v1824 = vpop.f32.mrb[0].mxu0
      %1825 = vdwg.mxu0
      %1826 = vrot.lane.b32.xlu0 %v1223, 112
      %v1827 = vpop.permute.xlu0 %1826
      %v1829 = vsel %vm1224, %v1777, 0
      %v1832 = vsel %vm1344, %v1827, 0
      %1834 = vmatprep.subr.bf16.mxu0 0
      %1835 = vmatpush1.bf16.msra.mxu0 %v1832
      %1836 = vmatprep.subr.bf16.mxu0 0
      %1837 = vmatpush1.bf16.msra.mxu0 0
      %1838 = vmatprep.subr.bf16.mxu0 0
      %1839 = vmatpush1.bf16.msra.mxu0 0
      %1840 = vmatprep.subr.bf16.mxu0 0
      %1841 = vmatpush1.bf16.msra.mxu0 0
      %1842 = vmatprep.subr.bf16.mxu0 0
      %1843 = vmatpush1.bf16.msra.mxu0 0
      %1844 = vmatprep.subr.bf16.mxu0 0
      %1845 = vmatpush1.bf16.msra.mxu0 0
      %1846 = vmatprep.subr.bf16.mxu0 0
      %1847 = vmatpush1.bf16.msra.mxu0 0
      %1848 = vmatprep.subr.bf16.mxu0 0
      %1849 = vmatpush1.bf16.msra.mxu0 0
      %1850 = vmatprep.subr.bf16.mxu0 0
      %1851 = vmatpush1.bf16.msra.mxu0 0
      %1852 = vmatprep.subr.bf16.mxu0 0
      %1853 = vmatpush1.bf16.msra.mxu0 0
      %1854 = vmatprep.subr.bf16.mxu0 0
      %1855 = vmatpush1.bf16.msra.mxu0 0
      %1856 = vmatprep.subr.bf16.mxu0 0
      %1857 = vmatpush1.bf16.msra.mxu0 0
      %1858 = vmatprep.subr.bf16.mxu0 0
      %1859 = vmatpush1.bf16.msra.mxu0 0
      %1860 = vmatprep.subr.bf16.mxu0 0
      %1861 = vmatpush1.bf16.msra.mxu0 0
      %1862 = vmatprep.subr.bf16.mxu0 0
      %1863 = vmatpush1.bf16.msra.mxu0 0
      %1864 = vmatprep.subr.bf16.mxu0 0
      %1865 = vmatpush1.bf16.msra.mxu0 0
      %1866 = vmatprep.mubr.bf16.mxu0 0
      %1867 = vmatmul.mubr.bf16.gmra.mrb[0].mxu0 %v1829
      %v1868 = vpop.f32.mrb[0].mxu0
      %v1869 = vadd.f32 0.0, %v1868
      %v1870 = vpop.f32.mrb[0].mxu0
      %v1871 = vpop.f32.mrb[0].mxu0
      %v1872 = vpop.f32.mrb[0].mxu0
      %1873 = vdwg.mxu0
      %1874 = vrot.lane.b32.xlu0 %v1210, 104
      %v1875 = vpop.permute.xlu0 %1874
      %1876 = vrot.lane.b32.xlu0 %v1216, 104
      %v1877 = vpop.permute.xlu0 %1876
      %v1879 = vsel %vm1224, %v1875, 0
      %v1882 = vsel %vm1224, %v1877, 0
      %1884 = vmatprep.subr.bf16.mxu0 0
      %1885 = vmatpush1.bf16.xpose.msra.mxu0 %v1882
      %1886 = vmatprep.subr.bf16.mxu0 0
      %1887 = vmatpush1.bf16.xpose.msra.mxu0 0
      %1888 = vmatprep.subr.bf16.mxu0 0
      %1889 = vmatpush1.bf16.xpose.msra.mxu0 0
      %1890 = vmatprep.subr.bf16.mxu0 0
      %1891 = vmatpush1.bf16.xpose.msra.mxu0 0
      %1892 = vmatprep.subr.bf16.mxu0 0
      %1893 = vmatpush1.bf16.xpose.msra.mxu0 0
      %1894 = vmatprep.subr.bf16.mxu0 0
      %1895 = vmatpush1.bf16.xpose.msra.mxu0 0
      %1896 = vmatprep.subr.bf16.mxu0 0
      %1897 = vmatpush1.bf16.xpose.msra.mxu0 0
      %1898 = vmatprep.subr.bf16.mxu0 0
      %1899 = vmatpush1.bf16.xpose.msra.mxu0 0
      %1900 = vmatprep.subr.bf16.mxu0 0
      %1901 = vmatpush1.bf16.xpose.msra.mxu0 0
      %1902 = vmatprep.subr.bf16.mxu0 0
      %1903 = vmatpush1.bf16.xpose.msra.mxu0 0
      %1904 = vmatprep.subr.bf16.mxu0 0
      %1905 = vmatpush1.bf16.xpose.msra.mxu0 0
      %1906 = vmatprep.subr.bf16.mxu0 0
      %1907 = vmatpush1.bf16.xpose.msra.mxu0 0
      %1908 = vmatprep.subr.bf16.mxu0 0
      %1909 = vmatpush1.bf16.xpose.msra.mxu0 0
      %1910 = vmatprep.subr.bf16.mxu0 0
      %1911 = vmatpush1.bf16.xpose.msra.mxu0 0
      %1912 = vmatprep.subr.bf16.mxu0 0
      %1913 = vmatpush1.bf16.xpose.msra.mxu0 0
      %1914 = vmatprep.subr.bf16.mxu0 0
      %1915 = vmatpush1.bf16.xpose.msra.mxu0 0
      %1916 = vmatprep.mubr.bf16.mxu0 0
      %1917 = vmatmul.mubr.bf16.gmra.mrb[0].mxu0 %v1879
      %v1918 = vpop.f32.mrb[0].mxu0
      %v1919 = vadd.f32 0.0, %v1918
      %v1920 = vpop.f32.mrb[0].mxu0
      %v1921 = vpop.f32.mrb[0].mxu0
      %v1922 = vpop.f32.mrb[0].mxu0
      %1923 = vdwg.mxu0
      %1924 = vrot.lane.b32.xlu0 %v1211, 104
      %v1925 = vpop.permute.xlu0 %1924
      %1926 = vrot.lane.b32.xlu0 %v1217, 104
      %v1927 = vpop.permute.xlu0 %1926
      %v1929 = vsel %vm1224, %v1925, 0
      %v1932 = vsel %vm1224, %v1927, 0
      %1934 = vmatprep.subr.bf16.mxu0 0
      %1935 = vmatpush1.bf16.xpose.msra.mxu0 %v1932
      %1936 = vmatprep.subr.bf16.mxu0 0
      %1937 = vmatpush1.bf16.xpose.msra.mxu0 0
      %1938 = vmatprep.subr.bf16.mxu0 0
      %1939 = vmatpush1.bf16.xpose.msra.mxu0 0
      %1940 = vmatprep.subr.bf16.mxu0 0
      %1941 = vmatpush1.bf16.xpose.msra.mxu0 0
      %1942 = vmatprep.subr.bf16.mxu0 0
      %1943 = vmatpush1.bf16.xpose.msra.mxu0 0
      %1944 = vmatprep.subr.bf16.mxu0 0
      %1945 = vmatpush1.bf16.xpose.msra.mxu0 0
      %1946 = vmatprep.subr.bf16.mxu0 0
      %1947 = vmatpush1.bf16.xpose.msra.mxu0 0
      %1948 = vmatprep.subr.bf16.mxu0 0
      %1949 = vmatpush1.bf16.xpose.msra.mxu0 0
      %1950 = vmatprep.subr.bf16.mxu0 0
      %1951 = vmatpush1.bf16.xpose.msra.mxu0 0
      %1952 = vmatprep.subr.bf16.mxu0 0
      %1953 = vmatpush1.bf16.xpose.msra.mxu0 0
      %1954 = vmatprep.subr.bf16.mxu0 0
      %1955 = vmatpush1.bf16.xpose.msra.mxu0 0
      %1956 = vmatprep.subr.bf16.mxu0 0
      %1957 = vmatpush1.bf16.xpose.msra.mxu0 0
      %1958 = vmatprep.subr.bf16.mxu0 0
      %1959 = vmatpush1.bf16.xpose.msra.mxu0 0
      %1960 = vmatprep.subr.bf16.mxu0 0
      %1961 = vmatpush1.bf16.xpose.msra.mxu0 0
      %1962 = vmatprep.subr.bf16.mxu0 0
      %1963 = vmatpush1.bf16.xpose.msra.mxu0 0
      %1964 = vmatprep.subr.bf16.mxu0 0
      %1965 = vmatpush1.bf16.xpose.msra.mxu0 0
      %1966 = vmatprep.mubr.bf16.mxu0 0
      %1967 = vmatmul.mubr.bf16.gmra.mrb[0].mxu0 %v1929
      %v1968 = vpop.f32.mrb[0].mxu0
      %v1969 = vadd.f32 0.0, %v1968
      %v1970 = vpop.f32.mrb[0].mxu0
      %v1971 = vpop.f32.mrb[0].mxu0
      %v1972 = vpop.f32.mrb[0].mxu0
      %1973 = vdwg.mxu0
      %v1974 = vsel %vm1224, %v1919, -inf
      %1975 = vmax.xlane.f32.xlu0 %v1974
      %v1976 = vpop.xlane.xlu0 %1975
      %v1977 = vsel %vm1224, %v1969, -inf
      %1978 = vmax.xlane.f32.xlu0 %v1977
      %v1979 = vpop.xlane.xlu0 %1978
      %v1980 = vsub.f32 %v1919, %v1976
      %v1981 = vsub.f32 %v1969, %v1979
      %v1982 = vmul.f32 %v1980, 1.442695
      %v1983 = vpow.pop %v1982
      %v1984 = vmul.f32 %v1981, 1.442695
      %v1985 = vpow.pop %v1984
      %v1986 = vsel %vm1224, %v1983, 0.0
      %1987 = vadd.xlane.f32.xlu0 %v1986
      %v1988 = vpop.xlane.xlu0 %1987
      %v1989 = vsel %vm1224, %v1985, 0.0
      %1990 = vadd.xlane.f32.xlu0 %v1989
      %v1991 = vpop.xlane.xlu0 %1990
      %v1992 = vrcp.pop %v1988
      %v1993 = vrcp.pop %v1991
      %v1994 = vmul.f32 %v1983, %v1992
      %v1995 = vmul.f32 %v1985, %v1993
      %v1996 = vpack.c.bf16 %v1994, %v1994
      %v1997 = vpack.c.bf16 %v1995, %v1995
      %1998 = vrot.lane.b32.xlu0 %v1222, 104
      %v1999 = vpop.permute.xlu0 %1998
      %v2001 = vsel %vm1224, %v1996, 0
      %v2004 = vsel %vm1344, %v1999, 0
      %2006 = vmatprep.subr.bf16.mxu0 0
      %2007 = vmatpush1.bf16.msra.mxu0 %v2004
      %2008 = vmatprep.subr.bf16.mxu0 0
      %2009 = vmatpush1.bf16.msra.mxu0 0
      %2010 = vmatprep.subr.bf16.mxu0 0
      %2011 = vmatpush1.bf16.msra.mxu0 0
      %2012 = vmatprep.subr.bf16.mxu0 0
      %2013 = vmatpush1.bf16.msra.mxu0 0
      %2014 = vmatprep.subr.bf16.mxu0 0
      %2015 = vmatpush1.bf16.msra.mxu0 0
      %2016 = vmatprep.subr.bf16.mxu0 0
      %2017 = vmatpush1.bf16.msra.mxu0 0
      %2018 = vmatprep.subr.bf16.mxu0 0
      %2019 = vmatpush1.bf16.msra.mxu0 0
      %2020 = vmatprep.subr.bf16.mxu0 0
      %2021 = vmatpush1.bf16.msra.mxu0 0
      %2022 = vmatprep.subr.bf16.mxu0 0
      %2023 = vmatpush1.bf16.msra.mxu0 0
      %2024 = vmatprep.subr.bf16.mxu0 0
      %2025 = vmatpush1.bf16.msra.mxu0 0
      %2026 = vmatprep.subr.bf16.mxu0 0
      %2027 = vmatpush1.bf16.msra.mxu0 0
      %2028 = vmatprep.subr.bf16.mxu0 0
      %2029 = vmatpush1.bf16.msra.mxu0 0
      %2030 = vmatprep.subr.bf16.mxu0 0
      %2031 = vmatpush1.bf16.msra.mxu0 0
      %2032 = vmatprep.subr.bf16.mxu0 0
      %2033 = vmatpush1.bf16.msra.mxu0 0
      %2034 = vmatprep.subr.bf16.mxu0 0
      %2035 = vmatpush1.bf16.msra.mxu0 0
      %2036 = vmatprep.subr.bf16.mxu0 0
      %2037 = vmatpush1.bf16.msra.mxu0 0
      %2038 = vmatprep.mubr.bf16.mxu0 0
      %2039 = vmatmul.mubr.bf16.gmra.mrb[0].mxu0 %v2001
      %v2040 = vpop.f32.mrb[0].mxu0
      %v2041 = vadd.f32 0.0, %v2040
      %v2042 = vpop.f32.mrb[0].mxu0
      %v2043 = vpop.f32.mrb[0].mxu0
      %v2044 = vpop.f32.mrb[0].mxu0
      %2045 = vdwg.mxu0
      %2046 = vrot.lane.b32.xlu0 %v1223, 104
      %v2047 = vpop.permute.xlu0 %2046
      %v2049 = vsel %vm1224, %v1997, 0
      %v2052 = vsel %vm1344, %v2047, 0
      %2054 = vmatprep.subr.bf16.mxu0 0
      %2055 = vmatpush1.bf16.msra.mxu0 %v2052
      %2056 = vmatprep.subr.bf16.mxu0 0
      %2057 = vmatpush1.bf16.msra.mxu0 0
      %2058 = vmatprep.subr.bf16.mxu0 0
      %2059 = vmatpush1.bf16.msra.mxu0 0
      %2060 = vmatprep.subr.bf16.mxu0 0
      %2061 = vmatpush1.bf16.msra.mxu0 0
      %2062 = vmatprep.subr.bf16.mxu0 0
      %2063 = vmatpush1.bf16.msra.mxu0 0
      %2064 = vmatprep.subr.bf16.mxu0 0
      %2065 = vmatpush1.bf16.msra.mxu0 0
      %2066 = vmatprep.subr.bf16.mxu0 0
      %2067 = vmatpush1.bf16.msra.mxu0 0
      %2068 = vmatprep.subr.bf16.mxu0 0
      %2069 = vmatpush1.bf16.msra.mxu0 0
      %2070 = vmatprep.subr.bf16.mxu0 0
      %2071 = vmatpush1.bf16.msra.mxu0 0
      %2072 = vmatprep.subr.bf16.mxu0 0
      %2073 = vmatpush1.bf16.msra.mxu0 0
      %2074 = vmatprep.subr.bf16.mxu0 0
      %2075 = vmatpush1.bf16.msra.mxu0 0
      %2076 = vmatprep.subr.bf16.mxu0 0
      %2077 = vmatpush1.bf16.msra.mxu0 0
      %2078 = vmatprep.subr.bf16.mxu0 0
      %2079 = vmatpush1.bf16.msra.mxu0 0
      %2080 = vmatprep.subr.bf16.mxu0 0
      %2081 = vmatpush1.bf16.msra.mxu0 0
      %2082 = vmatprep.subr.bf16.mxu0 0
      %2083 = vmatpush1.bf16.msra.mxu0 0
      %2084 = vmatprep.subr.bf16.mxu0 0
      %2085 = vmatpush1.bf16.msra.mxu0 0
      %2086 = vmatprep.mubr.bf16.mxu0 0
      %2087 = vmatmul.mubr.bf16.gmra.mrb[0].mxu0 %v2049
      %v2088 = vpop.f32.mrb[0].mxu0
      %v2089 = vadd.f32 0.0, %v2088
      %v2090 = vpop.f32.mrb[0].mxu0
      %v2091 = vpop.f32.mrb[0].mxu0
      %v2092 = vpop.f32.mrb[0].mxu0
      %2093 = vdwg.mxu0
      %2096 = vrot.lane.b32.xlu0 %v1601, 8
      %v2097 = vpop.permute.xlu0 %2096
      %2098 = vrot.lane.b32.xlu0 %v1649, 8
      %v2099 = vpop.permute.xlu0 %2098
      %2104 = vrot.lane.b32.xlu0 %v1821, 16
      %v2105 = vpop.permute.xlu0 %2104
      %2106 = vrot.lane.b32.xlu0 %v1869, 16
      %v2107 = vpop.permute.xlu0 %2106
      %2112 = vrot.lane.b32.xlu0 %v2041, 24
      %v2113 = vpop.permute.xlu0 %2112
      %2114 = vrot.lane.b32.xlu0 %v2089, 24
      %v2115 = vpop.permute.xlu0 %2114
      %v2118 = vsel %vm1224, %v1383, %v2097
      %v2119 = vsel %vm1224, %v1429, %v2099
      %vm2120 = vcmask 130048
      %v2121 = vsel %vm2120, %v2118, %v2105
      %v2122 = vsel %vm2120, %v2119, %v2107
      %vm2123 = vcmask 195584
      %v2124 = vsel %vm2123, %v2121, %v2113
      %v2125 = vsel %vm2123, %v2122, %v2115
      %v2126 = vpack.c.bf16 %v2125, %v2124
      %v2131 = vunpack.c.l.b16 %v974
      %v2132 = vunpack.c.l.b16 %v975
      %v2133 = vunpack.c.l.b16 %v976
      %v2134 = vunpack.c.l.b16 %v977
      %v2135 = vpack.c.b16 %v2132, %v2131
      %v2136 = vpack.c.b16 %v2134, %v2133
      %v2140 = vsel %vm1001, %v2126, 0
      %2142 = vmatprep.subr.bf16.mxu0 0
      %2143 = vmatpush1.bf16.msra.mxu0 %v2135
      %2144 = vmatprep.subr.bf16.mxu0 0
      %2145 = vmatpush1.bf16.msra.mxu0 %v2136
      %2146 = vmatprep.subr.bf16.mxu0 0
      %2147 = vmatpush1.bf16.msra.mxu0 0
      %2148 = vmatprep.subr.bf16.mxu0 0
      %2149 = vmatpush1.bf16.msra.mxu0 0
      %2150 = vmatprep.subr.bf16.mxu0 0
      %2151 = vmatpush1.bf16.msra.mxu0 0
      %2152 = vmatprep.subr.bf16.mxu0 0
      %2153 = vmatpush1.bf16.msra.mxu0 0
      %2154 = vmatprep.subr.bf16.mxu0 0
      %2155 = vmatpush1.bf16.msra.mxu0 0
      %2156 = vmatprep.subr.bf16.mxu0 0
      %2157 = vmatpush1.bf16.msra.mxu0 0
      %2158 = vmatprep.subr.bf16.mxu0 0
      %2159 = vmatpush1.bf16.msra.mxu0 0
      %2160 = vmatprep.subr.bf16.mxu0 0
      %2161 = vmatpush1.bf16.msra.mxu0 0
      %2162 = vmatprep.subr.bf16.mxu0 0
      %2163 = vmatpush1.bf16.msra.mxu0 0
      %2164 = vmatprep.subr.bf16.mxu0 0
      %2165 = vmatpush1.bf16.msra.mxu0 0
      %2166 = vmatprep.subr.bf16.mxu0 0
      %2167 = vmatpush1.bf16.msra.mxu0 0
      %2168 = vmatprep.subr.bf16.mxu0 0
      %2169 = vmatpush1.bf16.msra.mxu0 0
      %2170 = vmatprep.subr.bf16.mxu0 0
      %2171 = vmatpush1.bf16.msra.mxu0 0
      %2172 = vmatprep.subr.bf16.mxu0 0
      %2173 = vmatpush1.bf16.msra.mxu0 0
      %2174 = vmatprep.mubr.bf16.mxu0 0
      %2175 = vmatmul.mubr.bf16.gmra.mrb[0].mxu0 %v2140
      %v2176 = vpop.f32.mrb[0].mxu0
      %v2177 = vadd.f32 0.0, %v2176
      %v2178 = vpop.f32.mrb[0].mxu0
      %v2179 = vpop.f32.mrb[0].mxu0
      %v2180 = vadd.f32 0.0, %v2179
      %v2181 = vpop.f32.mrb[0].mxu0
      %2182 = vdwg.mxu0
      %v2183 = vadd.f32 %v959, %v2177
      %v2184 = vadd.f32 %v960, %v2180
      %v2185 = vsel %vm1001, %v2183, 0.0
      %2186 = vadd.xlane.f32.xlu0 %v2185
      %v2187 = vpop.xlane.xlu0 %2186
      %v2188 = vsel %vm1001, %v2184, 0.0
      %2189 = vadd.xlane.f32.xlu0 %v2188
      %v2190 = vpop.xlane.xlu0 %2189
      %v2191 = vmul.f32 %v2187, %v1008
      %v2192 = vmul.f32 %v2190, %v1008
      %v2193 = vsub.f32 %v2183, %v2191
      %v2194 = vsub.f32 %v2184, %v2192
      %v2195 = vmul.f32 %v2193, %v2193
      %v2196 = vmul.f32 %v2194, %v2194
      %v2197 = vsel %vm1001, %v2195, 0.0
      %2198 = vadd.xlane.f32.xlu0 %v2197
      %v2199 = vpop.xlane.xlu0 %2198
      %v2200 = vsel %vm1001, %v2196, 0.0
      %2201 = vadd.xlane.f32.xlu0 %v2200
      %v2202 = vpop.xlane.xlu0 %2201
      %v2203 = vmul.f32 %v2199, %v1008
      %v2204 = vmul.f32 %v2202, %v1008
      %v2205 = vadd.f32 %v2203, 1e-05
      %v2206 = vadd.f32 %v2204, 1e-05
      %v2207 = vrsqrt.pop %v2205
      %v2208 = vrsqrt.pop %v2206
      %v2209 = vmul.f32 %v2193, %v2207
      %v2210 = vmul.f32 %v2194, %v2208
      %v2211 = vlaneseq
      %v2212 = vshrl.u32 %v2211, 7
      %v2213 = vsub.s32 0, %v2212
      %v2214 = vrot.slane %v978, %v2213
      %v2215 = vmul.f32 %v2209, %v2214
      %v2216 = vmul.f32 %v2210, %v2214
      %v2217 = vlaneseq
      %v2218 = vshrl.u32 %v2217, 7
      %v2219 = vsub.s32 1, %v2218
      %v2220 = vrot.slane %v978, %v2219
      %v2221 = vadd.f32 %v2215, %v2220
      %v2222 = vadd.f32 %v2216, %v2220
      %v2223 = vpack.c.bf16 %v2222, %v2221
      %v2225 = vlaneseq
      %v2226 = vshrl.u32 %v2225, 7
      %v2227 = vsub.s32 0, %v2226
      %v2228 = vrot.slane %v983, %v2227
      %v2234 = vunpack.c.l.b16 %v979
      %v2235 = vunpack.c.l.b16 %v980
      %v2236 = vunpack.c.l.b16 %v981
      %v2237 = vunpack.c.l.b16 %v982
      %v2238 = vpack.c.b16 %v2235, %v2234
      %v2239 = vpack.c.b16 %v2237, %v2236
      %v2243 = vsel %vm1001, %v2223, 0
      %2245 = vmatprep.subr.bf16.mxu0 0
      %2246 = vmatpush1.bf16.msra.mxu0 %v2238
      %2247 = vmatprep.subr.bf16.mxu0 0
      %2248 = vmatpush1.bf16.msra.mxu0 %v2239
      %2249 = vmatprep.subr.bf16.mxu0 0
      %2250 = vmatpush1.bf16.msra.mxu0 0
      %2251 = vmatprep.subr.bf16.mxu0 0
      %2252 = vmatpush1.bf16.msra.mxu0 0
      %2253 = vmatprep.subr.bf16.mxu0 0
      %2254 = vmatpush1.bf16.msra.mxu0 0
      %2255 = vmatprep.subr.bf16.mxu0 0
      %2256 = vmatpush1.bf16.msra.mxu0 0
      %2257 = vmatprep.subr.bf16.mxu0 0
      %2258 = vmatpush1.bf16.msra.mxu0 0
      %2259 = vmatprep.subr.bf16.mxu0 0
      %2260 = vmatpush1.bf16.msra.mxu0 0
      %2261 = vmatprep.subr.bf16.mxu0 0
      %2262 = vmatpush1.bf16.msra.mxu0 0
      %2263 = vmatprep.subr.bf16.mxu0 0
      %2264 = vmatpush1.bf16.msra.mxu0 0
      %2265 = vmatprep.subr.bf16.mxu0 0
      %2266 = vmatpush1.bf16.msra.mxu0 0
      %2267 = vmatprep.subr.bf16.mxu0 0
      %2268 = vmatpush1.bf16.msra.mxu0 0
      %2269 = vmatprep.subr.bf16.mxu0 0
      %2270 = vmatpush1.bf16.msra.mxu0 0
      %2271 = vmatprep.subr.bf16.mxu0 0
      %2272 = vmatpush1.bf16.msra.mxu0 0
      %2273 = vmatprep.subr.bf16.mxu0 0
      %2274 = vmatpush1.bf16.msra.mxu0 0
      %2275 = vmatprep.subr.bf16.mxu0 0
      %2276 = vmatpush1.bf16.msra.mxu0 0
      %2277 = vmatprep.mubr.bf16.mxu0 0
      %2278 = vmatmul.mubr.bf16.gmra.mrb[0].mxu0 %v2243
      %v2279 = vpop.f32.mrb[0].mxu0
      %v2280 = vadd.f32 %v2228, %v2279
      %v2281 = vpop.f32.mrb[0].mxu0
      %v2282 = vpop.f32.mrb[0].mxu0
      %v2283 = vadd.f32 %v2228, %v2282
      %v2284 = vpop.f32.mrb[0].mxu0
      %2285 = vdwg.mxu0
      %v2286 = vmul.f32 %v2280, %v2280
      %v2287 = vmul.f32 %v2283, %v2283
      %v2288 = vmul.f32 %v2280, %v2286
      %v2289 = vmul.f32 %v2283, %v2287
      %v2290 = vmul.f32 %v2288, 0.044715
      %v2291 = vmul.f32 %v2289, 0.044715
      %v2292 = vadd.f32 %v2280, %v2290
      %v2293 = vadd.f32 %v2283, %v2291
      %v2294 = vmul.f32 %v2292, 0.7978846
      %v2295 = vmul.f32 %v2293, 0.7978846
      %v2296 = vtanh.pop %v2294
      %v2297 = vtanh.pop %v2295
      %v2298 = vadd.f32 %v2296, 1.0
      %v2299 = vadd.f32 %v2297, 1.0
      %v2300 = vmul.f32 %v2298, 0.5
      %v2301 = vmul.f32 %v2299, 0.5
      %v2302 = vmul.f32 %v2280, %v2300
      %v2303 = vmul.f32 %v2283, %v2301
      %v2304 = vpack.c.bf16 %v2303, %v2302
      %v2306 = vlaneseq
      %v2307 = vshrl.u32 %v2306, 7
      %v2308 = vsub.s32 0, %v2307
      %v2309 = vrot.slane %v1000, %v2308
      %v2327 = vunpack.c.l.b16 %v984
      %v2328 = vunpack.c.l.b16 %v985
      %v2329 = vunpack.c.l.b16 %v986
      %v2330 = vunpack.c.l.b16 %v987
      %v2331 = vunpack.c.l.b16 %v988
      %v2332 = vunpack.c.l.b16 %v989
      %v2333 = vunpack.c.l.b16 %v990
      %v2334 = vunpack.c.l.b16 %v991
      %v2335 = vunpack.c.l.b16 %v992
      %v2336 = vunpack.c.l.b16 %v993
      %v2337 = vunpack.c.l.b16 %v994
      %v2338 = vunpack.c.l.b16 %v995
      %v2339 = vunpack.c.l.b16 %v996
      %v2340 = vunpack.c.l.b16 %v997
      %v2341 = vunpack.c.l.b16 %v998
      %v2342 = vunpack.c.l.b16 %v999
      %v2343 = vpack.c.b16 %v2328, %v2327
      %v2344 = vpack.c.b16 %v2330, %v2329
      %v2345 = vpack.c.b16 %v2332, %v2331
      %v2346 = vpack.c.b16 %v2334, %v2333
      %v2347 = vpack.c.b16 %v2336, %v2335
      %v2348 = vpack.c.b16 %v2338, %v2337
      %v2349 = vpack.c.b16 %v2340, %v2339
      %v2350 = vpack.c.b16 %v2342, %v2341
      %2359 = vmatprep.subr.bf16.mxu0 0
      %2360 = vmatpush1.bf16.msra.mxu0 %v2343
      %2361 = vmatprep.subr.bf16.mxu0 0
      %2362 = vmatpush1.bf16.msra.mxu0 %v2344
      %2363 = vmatprep.subr.bf16.mxu0 0
      %2364 = vmatpush1.bf16.msra.mxu0 %v2345
      %2365 = vmatprep.subr.bf16.mxu0 0
      %2366 = vmatpush1.bf16.msra.mxu0 %v2346
      %2367 = vmatprep.subr.bf16.mxu0 0
      %2368 = vmatpush1.bf16.msra.mxu0 %v2347
      %2369 = vmatprep.subr.bf16.mxu0 0
      %2370 = vmatpush1.bf16.msra.mxu0 %v2348
      %2371 = vmatprep.subr.bf16.mxu0 0
      %2372 = vmatpush1.bf16.msra.mxu0 %v2349
      %2373 = vmatprep.subr.bf16.mxu0 0
      %2374 = vmatpush1.bf16.msra.mxu0 %v2350
      %2375 = vmatprep.subr.bf16.mxu0 0
      %2376 = vmatpush1.bf16.msra.mxu0 0
      %2377 = vmatprep.subr.bf16.mxu0 0
      %2378 = vmatpush1.bf16.msra.mxu0 0
      %2379 = vmatprep.subr.bf16.mxu0 0
      %2380 = vmatpush1.bf16.msra.mxu0 0
      %2381 = vmatprep.subr.bf16.mxu0 0
      %2382 = vmatpush1.bf16.msra.mxu0 0
      %2383 = vmatprep.subr.bf16.mxu0 0
      %2384 = vmatpush1.bf16.msra.mxu0 0
      %2385 = vmatprep.subr.bf16.mxu0 0
      %2386 = vmatpush1.bf16.msra.mxu0 0
      %2387 = vmatprep.subr.bf16.mxu0 0
      %2388 = vmatpush1.bf16.msra.mxu0 0
      %2389 = vmatprep.subr.bf16.mxu0 0
      %2390 = vmatpush1.bf16.msra.mxu0 0
      %2391 = vmatprep.mubr.bf16.mxu0 0
      %2392 = vmatmul.mubr.bf16.gmra.mrb[0].mxu0 %v2304
      %v2393 = vpop.f32.mrb[0].mxu0
      %v2394 = vadd.f32 %v2309, %v2393
      %v2395 = vpop.f32.mrb[0].mxu0
      %v2396 = vpop.f32.mrb[0].mxu0
      %v2397 = vadd.f32 %v2309, %v2396
      %v2398 = vpop.f32.mrb[0].mxu0
      %2399 = vdwg.mxu0
      %v2400 = vadd.f32 %v2183, %v2394
      %v2401 = vadd.f32 %v2184, %v2397
      %2402 = vst.msk [vmem:[#allocation2] sm:$0xff] %vm1001, %v2400
      %2403 = vst.msk [vmem:[#allocation2 + $0x8] sm:$0xff] %vm1001, %v2401
      %v2404 = vld [vmem:[#allocation3] sm:$0xff]
      %v2405 = vld [vmem:[#allocation3 + $0x8] sm:$0xff]
      %v2406 = vld [vmem:[#allocation3 + $0x10] sm:$0xff]
      %v2407 = vld [vmem:[#allocation3 + $0x18] sm:$0xff]
      %v2408 = vld [vmem:[%s824] sm:$0x3]
      %v2409 = vld [vmem:[%s829] sm:$0xf]
      %v2410 = vld [vmem:[%s829 + $0x4] sm:$0xf]
      %v2411 = vld [vmem:[%s829 + $0x8] sm:$0xf]
      %v2412 = vld [vmem:[%s829 + $0xc] sm:$0xf]
      %v2413 = vld [vmem:[%s829 + $0x10] sm:$0xf]
      %v2414 = vld [vmem:[%s829 + $0x14] sm:$0xf]
      %v2415 = vld [vmem:[%s829 + $0x18] sm:$0xf]
      %v2416 = vld [vmem:[%s829 + $0x1c] sm:$0xf]
      %v2417 = vld [vmem:[%s829 + $0x20] sm:$0xf]
      %v2418 = vld [vmem:[%s829 + $0x24] sm:$0xf]
      %v2419 = vld [vmem:[%s829 + $0x28] sm:$0xf]
      %v2420 = vld [vmem:[%s829 + $0x2c] sm:$0xf]
      %v2421 = vld [vmem:[%s834] sm:$0xf]
      %v2422 = vld [vmem:[%s834 + $0x4] sm:$0xf]
      %v2423 = vld [vmem:[%s834 + $0x8] sm:$0xf]
      %v2424 = vld [vmem:[%s834 + $0xc] sm:$0xf]
      %v2425 = vld [vmem:[%s838] sm:$0x3]
      %v2426 = vld [vmem:[%s843] sm:$0xf]
      %v2427 = vld [vmem:[%s843 + $0x4] sm:$0xf]
      %v2428 = vld [vmem:[%s843 + $0x8] sm:$0xf]
      %v2429 = vld [vmem:[%s843 + $0xc] sm:$0xf]
      %v2430 = vld [vmem:[%s846] sm:$0x1]
      %v2431 = vld [vmem:[%s851] sm:$0xf]
      %v2432 = vld [vmem:[%s851 + $0x4] sm:$0xf]
      %v2433 = vld [vmem:[%s851 + $0x8] sm:$0xf]
      %v2434 = vld [vmem:[%s851 + $0xc] sm:$0xf]
      %v2435 = vld [vmem:[%s851 + $0x10] sm:$0xf]
      %v2436 = vld [vmem:[%s851 + $0x14] sm:$0xf]
      %v2437 = vld [vmem:[%s851 + $0x18] sm:$0xf]
      %v2438 = vld [vmem:[%s851 + $0x1c] sm:$0xf]
      %v2439 = vld [vmem:[%s851 + $0x20] sm:$0xf]
      %v2440 = vld [vmem:[%s851 + $0x24] sm:$0xf]
      %v2441 = vld [vmem:[%s851 + $0x28] sm:$0xf]
      %v2442 = vld [vmem:[%s851 + $0x2c] sm:$0xf]
      %v2443 = vld [vmem:[%s851 + $0x30] sm:$0xf]
      %v2444 = vld [vmem:[%s851 + $0x34] sm:$0xf]
      %v2445 = vld [vmem:[%s851 + $0x38] sm:$0xf]
      %v2446 = vld [vmem:[%s851 + $0x3c] sm:$0xf]
      %v2447 = vld [vmem:[%s854] sm:$0x1]
      %v2448 = vsel %vm1001, %v2404, 0.0
      %2449 = vadd.xlane.f32.xlu0 %v2448
      %v2450 = vpop.xlane.xlu0 %2449
      %v2451 = vsel %vm1001, %v2405, 0.0
      %2452 = vadd.xlane.f32.xlu0 %v2451
      %v2453 = vpop.xlane.xlu0 %2452
      %v2454 = vsel %vm1001, %v2406, 0.0
      %2455 = vadd.xlane.f32.xlu0 %v2454
      %v2456 = vpop.xlane.xlu0 %2455
      %v2457 = vsel %vm1001, %v2407, 0.0
      %2458 = vadd.xlane.f32.xlu0 %v2457
      %v2459 = vpop.xlane.xlu0 %2458
      %v2460 = vmul.f32 %v2450, %v1008
      %v2461 = vmul.f32 %v2453, %v1008
      %v2462 = vmul.f32 %v2456, %v1008
      %v2463 = vmul.f32 %v2459, %v1008
      %v2464 = vsub.f32 %v2404, %v2460
      %v2465 = vsub.f32 %v2405, %v2461
      %v2466 = vsub.f32 %v2406, %v2462
      %v2467 = vsub.f32 %v2407, %v2463
      %v2468 = vmul.f32 %v2464, %v2464
      %v2469 = vmul.f32 %v2465, %v2465
      %v2470 = vmul.f32 %v2466, %v2466
      %v2471 = vmul.f32 %v2467, %v2467
      %v2472 = vsel %vm1001, %v2468, 0.0
      %2473 = vadd.xlane.f32.xlu0 %v2472
      %v2474 = vpop.xlane.xlu0 %2473
      %v2475 = vsel %vm1001, %v2469, 0.0
      %2476 = vadd.xlane.f32.xlu0 %v2475
      %v2477 = vpop.xlane.xlu0 %2476
      %v2478 = vsel %vm1001, %v2470, 0.0
      %2479 = vadd.xlane.f32.xlu0 %v2478
      %v2480 = vpop.xlane.xlu0 %2479
      %v2481 = vsel %vm1001, %v2471, 0.0
      %2482 = vadd.xlane.f32.xlu0 %v2481
      %v2483 = vpop.xlane.xlu0 %2482
      %v2484 = vmul.f32 %v2474, %v1008
      %v2485 = vmul.f32 %v2477, %v1008
      %v2486 = vmul.f32 %v2480, %v1008
      %v2487 = vmul.f32 %v2483, %v1008
      %v2488 = vadd.f32 %v2484, 1e-05
      %v2489 = vadd.f32 %v2485, 1e-05
      %v2490 = vadd.f32 %v2486, 1e-05
      %v2491 = vadd.f32 %v2487, 1e-05
      %v2492 = vrsqrt.pop %v2488
      %v2493 = vrsqrt.pop %v2489
      %v2494 = vrsqrt.pop %v2490
      %v2495 = vrsqrt.pop %v2491
      %v2496 = vmul.f32 %v2464, %v2492
      %v2497 = vmul.f32 %v2465, %v2493
      %v2498 = vmul.f32 %v2466, %v2494
      %v2499 = vmul.f32 %v2467, %v2495
      %v2500 = vlaneseq
      %v2501 = vshrl.u32 %v2500, 7
      %v2502 = vsub.s32 0, %v2501
      %v2503 = vrot.slane %v2408, %v2502
      %v2504 = vmul.f32 %v2496, %v2503
      %v2505 = vmul.f32 %v2497, %v2503
      %v2506 = vmul.f32 %v2498, %v2503
      %v2507 = vmul.f32 %v2499, %v2503
      %v2508 = vlaneseq
      %v2509 = vshrl.u32 %v2508, 7
      %v2510 = vsub.s32 1, %v2509
      %v2511 = vrot.slane %v2408, %v2510
      %v2512 = vadd.f32 %v2504, %v2511
      %v2513 = vadd.f32 %v2505, %v2511
      %v2514 = vadd.f32 %v2506, %v2511
      %v2515 = vadd.f32 %v2507, %v2511
      %v2516 = vpack.c.bf16 %v2513, %v2512
      %v2517 = vpack.c.bf16 %v2515, %v2514
      %v2522 = vunpack.c.l.b16 %v2409
      %v2523 = vunpack.c.l.b16 %v2410
      %v2524 = vunpack.c.l.b16 %v2411
      %v2525 = vunpack.c.l.b16 %v2412
      %v2526 = vpack.c.b16 %v2523, %v2522
      %v2527 = vpack.c.b16 %v2525, %v2524
      %v2531 = vsel %vm1001, %v2516, 0
      %v2534 = vsel %vm1001, %v2517, 0
      %2536 = vmatprep.subr.bf16.mxu0 0
      %2537 = vmatpush1.bf16.msra.mxu0 %v2526
      %2538 = vmatprep.subr.bf16.mxu0 0
      %2539 = vmatpush1.bf16.msra.mxu0 %v2527
      %2540 = vmatprep.subr.bf16.mxu0 0
      %2541 = vmatpush1.bf16.msra.mxu0 0
      %2542 = vmatprep.subr.bf16.mxu0 0
      %2543 = vmatpush1.bf16.msra.mxu0 0
      %2544 = vmatprep.subr.bf16.mxu0 0
      %2545 = vmatpush1.bf16.msra.mxu0 0
      %2546 = vmatprep.subr.bf16.mxu0 0
      %2547 = vmatpush1.bf16.msra.mxu0 0
      %2548 = vmatprep.subr.bf16.mxu0 0
      %2549 = vmatpush1.bf16.msra.mxu0 0
      %2550 = vmatprep.subr.bf16.mxu0 0
      %2551 = vmatpush1.bf16.msra.mxu0 0
      %2552 = vmatprep.subr.bf16.mxu0 0
      %2553 = vmatpush1.bf16.msra.mxu0 0
      %2554 = vmatprep.subr.bf16.mxu0 0
      %2555 = vmatpush1.bf16.msra.mxu0 0
      %2556 = vmatprep.subr.bf16.mxu0 0
      %2557 = vmatpush1.bf16.msra.mxu0 0
      %2558 = vmatprep.subr.bf16.mxu0 0
      %2559 = vmatpush1.bf16.msra.mxu0 0
      %2560 = vmatprep.subr.bf16.mxu0 0
      %2561 = vmatpush1.bf16.msra.mxu0 0
      %2562 = vmatprep.subr.bf16.mxu0 0
      %2563 = vmatpush1.bf16.msra.mxu0 0
      %2564 = vmatprep.subr.bf16.mxu0 0
      %2565 = vmatpush1.bf16.msra.mxu0 0
      %2566 = vmatprep.subr.bf16.mxu0 0
      %2567 = vmatpush1.bf16.msra.mxu0 0
      %2568 = vmatprep.mubr.bf16.mxu0 0
      %2569 = vmatmul.mubr.bf16.gmra.mrb[0].mxu0 %v2531
      %v2570 = vpop.f32.mrb[0].mxu0
      %v2571 = vadd.f32 0.0, %v2570
      %v2572 = vpop.f32.mrb[0].mxu0
      %v2573 = vpop.f32.mrb[0].mxu0
      %v2574 = vadd.f32 0.0, %v2573
      %v2575 = vpop.f32.mrb[0].mxu0
      %2576 = vmatprep.mubr.bf16.mxu0 0
      %2577 = vmatmul.mubr.bf16.gmra.mrb[0].mxu0 %v2534
      %v2578 = vpop.f32.mrb[0].mxu0
      %v2579 = vadd.f32 0.0, %v2578
      %v2580 = vpop.f32.mrb[0].mxu0
      %v2581 = vpop.f32.mrb[0].mxu0
      %v2582 = vadd.f32 0.0, %v2581
      %v2583 = vpop.f32.mrb[0].mxu0
      %2584 = vdwg.mxu0
      %v2585 = vmul.f32 %v2571, 0.35355338
      %v2586 = vmul.f32 %v2574, 0.35355338
      %v2587 = vmul.f32 %v2579, 0.35355338
      %v2588 = vmul.f32 %v2582, 0.35355338
      %v2593 = vunpack.c.l.b16 %v2413
      %v2594 = vunpack.c.l.b16 %v2414
      %v2595 = vunpack.c.l.b16 %v2415
      %v2596 = vunpack.c.l.b16 %v2416
      %v2597 = vpack.c.b16 %v2594, %v2593
      %v2598 = vpack.c.b16 %v2596, %v2595
      %2601 = vmatprep.subr.bf16.mxu0 0
      %2602 = vmatpush1.bf16.msra.mxu0 %v2597
      %2603 = vmatprep.subr.bf16.mxu0 0
      %2604 = vmatpush1.bf16.msra.mxu0 %v2598
      %2605 = vmatprep.subr.bf16.mxu0 0
      %2606 = vmatpush1.bf16.msra.mxu0 0
      %2607 = vmatprep.subr.bf16.mxu0 0
      %2608 = vmatpush1.bf16.msra.mxu0 0
      %2609 = vmatprep.subr.bf16.mxu0 0
      %2610 = vmatpush1.bf16.msra.mxu0 0
      %2611 = vmatprep.subr.bf16.mxu0 0
      %2612 = vmatpush1.bf16.msra.mxu0 0
      %2613 = vmatprep.subr.bf16.mxu0 0
      %2614 = vmatpush1.bf16.msra.mxu0 0
      %2615 = vmatprep.subr.bf16.mxu0 0
      %2616 = vmatpush1.bf16.msra.mxu0 0
      %2617 = vmatprep.subr.bf16.mxu0 0
      %2618 = vmatpush1.bf16.msra.mxu0 0
      %2619 = vmatprep.subr.bf16.mxu0 0
      %2620 = vmatpush1.bf16.msra.mxu0 0
      %2621 = vmatprep.subr.bf16.mxu0 0
      %2622 = vmatpush1.bf16.msra.mxu0 0
      %2623 = vmatprep.subr.bf16.mxu0 0
      %2624 = vmatpush1.bf16.msra.mxu0 0
      %2625 = vmatprep.subr.bf16.mxu0 0
      %2626 = vmatpush1.bf16.msra.mxu0 0
      %2627 = vmatprep.subr.bf16.mxu0 0
      %2628 = vmatpush1.bf16.msra.mxu0 0
      %2629 = vmatprep.subr.bf16.mxu0 0
      %2630 = vmatpush1.bf16.msra.mxu0 0
      %2631 = vmatprep.subr.bf16.mxu0 0
      %2632 = vmatpush1.bf16.msra.mxu0 0
      %2633 = vmatprep.mubr.bf16.mxu0 0
      %2634 = vmatmul.mubr.bf16.gmra.mrb[0].mxu0 %v2531
      %v2635 = vpop.f32.mrb[0].mxu0
      %v2636 = vadd.f32 0.0, %v2635
      %v2637 = vpop.f32.mrb[0].mxu0
      %v2638 = vpop.f32.mrb[0].mxu0
      %v2639 = vadd.f32 0.0, %v2638
      %v2640 = vpop.f32.mrb[0].mxu0
      %2641 = vmatprep.mubr.bf16.mxu0 0
      %2642 = vmatmul.mubr.bf16.gmra.mrb[0].mxu0 %v2534
      %v2643 = vpop.f32.mrb[0].mxu0
      %v2644 = vadd.f32 0.0, %v2643
      %v2645 = vpop.f32.mrb[0].mxu0
      %v2646 = vpop.f32.mrb[0].mxu0
      %v2647 = vadd.f32 0.0, %v2646
      %v2648 = vpop.f32.mrb[0].mxu0
      %2649 = vdwg.mxu0
      %v2654 = vunpack.c.l.b16 %v2417
      %v2655 = vunpack.c.l.b16 %v2418
      %v2656 = vunpack.c.l.b16 %v2419
      %v2657 = vunpack.c.l.b16 %v2420
      %v2658 = vpack.c.b16 %v2655, %v2654
      %v2659 = vpack.c.b16 %v2657, %v2656
      %2662 = vmatprep.subr.bf16.mxu0 0
      %2663 = vmatpush1.bf16.msra.mxu0 %v2658
      %2664 = vmatprep.subr.bf16.mxu0 0
      %2665 = vmatpush1.bf16.msra.mxu0 %v2659
      %2666 = vmatprep.subr.bf16.mxu0 0
      %2667 = vmatpush1.bf16.msra.mxu0 0
      %2668 = vmatprep.subr.bf16.mxu0 0
      %2669 = vmatpush1.bf16.msra.mxu0 0
      %2670 = vmatprep.subr.bf16.mxu0 0
      %2671 = vmatpush1.bf16.msra.mxu0 0
      %2672 = vmatprep.subr.bf16.mxu0 0
      %2673 = vmatpush1.bf16.msra.mxu0 0
      %2674 = vmatprep.subr.bf16.mxu0 0
      %2675 = vmatpush1.bf16.msra.mxu0 0
      %2676 = vmatprep.subr.bf16.mxu0 0
      %2677 = vmatpush1.bf16.msra.mxu0 0
      %2678 = vmatprep.subr.bf16.mxu0 0
      %2679 = vmatpush1.bf16.msra.mxu0 0
      %2680 = vmatprep.subr.bf16.mxu0 0
      %2681 = vmatpush1.bf16.msra.mxu0 0
      %2682 = vmatprep.subr.bf16.mxu0 0
      %2683 = vmatpush1.bf16.msra.mxu0 0
      %2684 = vmatprep.subr.bf16.mxu0 0
      %2685 = vmatpush1.bf16.msra.mxu0 0
      %2686 = vmatprep.subr.bf16.mxu0 0
      %2687 = vmatpush1.bf16.msra.mxu0 0
      %2688 = vmatprep.subr.bf16.mxu0 0
      %2689 = vmatpush1.bf16.msra.mxu0 0
      %2690 = vmatprep.subr.bf16.mxu0 0
      %2691 = vmatpush1.bf16.msra.mxu0 0
      %2692 = vmatprep.subr.bf16.mxu0 0
      %2693 = vmatpush1.bf16.msra.mxu0 0
      %2694 = vmatprep.mubr.bf16.mxu0 0
      %2695 = vmatmul.mubr.bf16.gmra.mrb[0].mxu0 %v2531
      %v2696 = vpop.f32.mrb[0].mxu0
      %v2697 = vadd.f32 0.0, %v2696
      %v2698 = vpop.f32.mrb[0].mxu0
      %v2699 = vpop.f32.mrb[0].mxu0
      %v2700 = vadd.f32 0.0, %v2699
      %v2701 = vpop.f32.mrb[0].mxu0
      %2702 = vmatprep.mubr.bf16.mxu0 0
      %2703 = vmatmul.mubr.bf16.gmra.mrb[0].mxu0 %v2534
      %v2704 = vpop.f32.mrb[0].mxu0
      %v2705 = vadd.f32 0.0, %v2704
      %v2706 = vpop.f32.mrb[0].mxu0
      %v2707 = vpop.f32.mrb[0].mxu0
      %v2708 = vadd.f32 0.0, %v2707
      %v2709 = vpop.f32.mrb[0].mxu0
      %2710 = vdwg.mxu0
      %v2711 = vpack.c.bf16 %v2586, %v2585
      %v2712 = vpack.c.bf16 %v2588, %v2587
      %v2713 = vpack.c.bf16 %v2639, %v2636
      %v2714 = vpack.c.bf16 %v2647, %v2644
      %v2715 = vpack.c.bf16 %v2700, %v2697
      %v2716 = vpack.c.bf16 %v2708, %v2705
      %v2718 = vsel %vm1224, %v2711, 0
      %v2721 = vsel %vm1224, %v2713, 0
      %2723 = vmatprep.subr.bf16.mxu0 0
      %2724 = vmatpush1.bf16.xpose.msra.mxu0 %v2721
      %2725 = vmatprep.subr.bf16.mxu0 0
      %2726 = vmatpush1.bf16.xpose.msra.mxu0 0
      %2727 = vmatprep.subr.bf16.mxu0 0
      %2728 = vmatpush1.bf16.xpose.msra.mxu0 0
      %2729 = vmatprep.subr.bf16.mxu0 0
      %2730 = vmatpush1.bf16.xpose.msra.mxu0 0
      %2731 = vmatprep.subr.bf16.mxu0 0
      %2732 = vmatpush1.bf16.xpose.msra.mxu0 0
      %2733 = vmatprep.subr.bf16.mxu0 0
      %2734 = vmatpush1.bf16.xpose.msra.mxu0 0
      %2735 = vmatprep.subr.bf16.mxu0 0
      %2736 = vmatpush1.bf16.xpose.msra.mxu0 0
      %2737 = vmatprep.subr.bf16.mxu0 0
      %2738 = vmatpush1.bf16.xpose.msra.mxu0 0
      %2739 = vmatprep.subr.bf16.mxu0 0
      %2740 = vmatpush1.bf16.xpose.msra.mxu0 0
      %2741 = vmatprep.subr.bf16.mxu0 0
      %2742 = vmatpush1.bf16.xpose.msra.mxu0 0
      %2743 = vmatprep.subr.bf16.mxu0 0
      %2744 = vmatpush1.bf16.xpose.msra.mxu0 0
      %2745 = vmatprep.subr.bf16.mxu0 0
      %2746 = vmatpush1.bf16.xpose.msra.mxu0 0
      %2747 = vmatprep.subr.bf16.mxu0 0
      %2748 = vmatpush1.bf16.xpose.msra.mxu0 0
      %2749 = vmatprep.subr.bf16.mxu0 0
      %2750 = vmatpush1.bf16.xpose.msra.mxu0 0
      %2751 = vmatprep.subr.bf16.mxu0 0
      %2752 = vmatpush1.bf16.xpose.msra.mxu0 0
      %2753 = vmatprep.subr.bf16.mxu0 0
      %2754 = vmatpush1.bf16.xpose.msra.mxu0 0
      %2755 = vmatprep.mubr.bf16.mxu0 0
      %2756 = vmatmul.mubr.bf16.gmra.mrb[0].mxu0 %v2718
      %v2757 = vpop.f32.mrb[0].mxu0
      %v2758 = vadd.f32 0.0, %v2757
      %v2759 = vpop.f32.mrb[0].mxu0
      %v2760 = vpop.f32.mrb[0].mxu0
      %v2761 = vadd.f32 0.0, %v2760
      %v2762 = vpop.f32.mrb[0].mxu0
      %2763 = vdwg.mxu0
      %v2765 = vsel %vm1224, %v2712, 0
      %v2768 = vsel %vm1224, %v2714, 0
      %2770 = vmatprep.subr.bf16.mxu0 0
      %2771 = vmatpush1.bf16.xpose.msra.mxu0 %v2768
      %2772 = vmatprep.subr.bf16.mxu0 0
      %2773 = vmatpush1.bf16.xpose.msra.mxu0 0
      %2774 = vmatprep.subr.bf16.mxu0 0
      %2775 = vmatpush1.bf16.xpose.msra.mxu0 0
      %2776 = vmatprep.subr.bf16.mxu0 0
      %2777 = vmatpush1.bf16.xpose.msra.mxu0 0
      %2778 = vmatprep.subr.bf16.mxu0 0
      %2779 = vmatpush1.bf16.xpose.msra.mxu0 0
      %2780 = vmatprep.subr.bf16.mxu0 0
      %2781 = vmatpush1.bf16.xpose.msra.mxu0 0
      %2782 = vmatprep.subr.bf16.mxu0 0
      %2783 = vmatpush1.bf16.xpose.msra.mxu0 0
      %2784 = vmatprep.subr.bf16.mxu0 0
      %2785 = vmatpush1.bf16.xpose.msra.mxu0 0
      %2786 = vmatprep.subr.bf16.mxu0 0
      %2787 = vmatpush1.bf16.xpose.msra.mxu0 0
      %2788 = vmatprep.subr.bf16.mxu0 0
      %2789 = vmatpush1.bf16.xpose.msra.mxu0 0
      %2790 = vmatprep.subr.bf16.mxu0 0
      %2791 = vmatpush1.bf16.xpose.msra.mxu0 0
      %2792 = vmatprep.subr.bf16.mxu0 0
      %2793 = vmatpush1.bf16.xpose.msra.mxu0 0
      %2794 = vmatprep.subr.bf16.mxu0 0
      %2795 = vmatpush1.bf16.xpose.msra.mxu0 0
      %2796 = vmatprep.subr.bf16.mxu0 0
      %2797 = vmatpush1.bf16.xpose.msra.mxu0 0
      %2798 = vmatprep.subr.bf16.mxu0 0
      %2799 = vmatpush1.bf16.xpose.msra.mxu0 0
      %2800 = vmatprep.subr.bf16.mxu0 0
      %2801 = vmatpush1.bf16.xpose.msra.mxu0 0
      %2802 = vmatprep.mubr.bf16.mxu0 0
      %2803 = vmatmul.mubr.bf16.gmra.mrb[0].mxu0 %v2765
      %v2804 = vpop.f32.mrb[0].mxu0
      %v2805 = vadd.f32 0.0, %v2804
      %v2806 = vpop.f32.mrb[0].mxu0
      %v2807 = vpop.f32.mrb[0].mxu0
      %v2808 = vadd.f32 0.0, %v2807
      %v2809 = vpop.f32.mrb[0].mxu0
      %2810 = vdwg.mxu0
      %v2811 = vsel %vm2120, %v2758, -inf
      %2812 = vmax.xlane.f32.xlu0 %v2811
      %v2813 = vpop.xlane.xlu0 %2812
      %v2814 = vsel %vm2120, %v2761, -inf
      %2815 = vmax.xlane.f32.xlu0 %v2814
      %v2816 = vpop.xlane.xlu0 %2815
      %v2817 = vsel %vm2120, %v2805, -inf
      %2818 = vmax.xlane.f32.xlu0 %v2817
      %v2819 = vpop.xlane.xlu0 %2818
      %v2820 = vsel %vm2120, %v2808, -inf
      %2821 = vmax.xlane.f32.xlu0 %v2820
      %v2822 = vpop.xlane.xlu0 %2821
      %v2823 = vsub.f32 %v2758, %v2813
      %v2824 = vsub.f32 %v2761, %v2816
      %v2825 = vsub.f32 %v2805, %v2819
      %v2826 = vsub.f32 %v2808, %v2822
      %v2827 = vmul.f32 %v2823, 1.442695
      %v2828 = vpow.pop %v2827
      %v2829 = vmul.f32 %v2824, 1.442695
      %v2830 = vpow.pop %v2829
      %v2831 = vmul.f32 %v2825, 1.442695
      %v2832 = vpow.pop %v2831
      %v2833 = vmul.f32 %v2826, 1.442695
      %v2834 = vpow.pop %v2833
      %v2835 = vsel %vm2120, %v2828, 0.0
      %2836 = vadd.xlane.f32.xlu0 %v2835
      %v2837 = vpop.xlane.xlu0 %2836
      %v2838 = vsel %vm2120, %v2830, 0.0
      %2839 = vadd.xlane.f32.xlu0 %v2838
      %v2840 = vpop.xlane.xlu0 %2839
      %v2841 = vsel %vm2120, %v2832, 0.0
      %2842 = vadd.xlane.f32.xlu0 %v2841
      %v2843 = vpop.xlane.xlu0 %2842
      %v2844 = vsel %vm2120, %v2834, 0.0
      %2845 = vadd.xlane.f32.xlu0 %v2844
      %v2846 = vpop.xlane.xlu0 %2845
      %v2847 = vrcp.pop %v2837
      %v2848 = vrcp.pop %v2840
      %v2849 = vrcp.pop %v2843
      %v2850 = vrcp.pop %v2846
      %v2851 = vmul.f32 %v2828, %v2847
      %v2852 = vmul.f32 %v2830, %v2848
      %v2853 = vmul.f32 %v2832, %v2849
      %v2854 = vmul.f32 %v2834, %v2850
      %v2855 = vpack.c.bf16 %v2852, %v2851
      %v2856 = vpack.c.bf16 %v2854, %v2853
      %v2858 = vsel %vm2120, %v2855, 0
      %2860 = vmatprep.subr.bf16.mxu0 0
      %2861 = vmatpush1.bf16.msra.mxu0 %v2715
      %2862 = vmatprep.subr.bf16.mxu0 0
      %2863 = vmatpush1.bf16.msra.mxu0 0
      %2864 = vmatprep.subr.bf16.mxu0 0
      %2865 = vmatpush1.bf16.msra.mxu0 0
      %2866 = vmatprep.subr.bf16.mxu0 0
      %2867 = vmatpush1.bf16.msra.mxu0 0
      %2868 = vmatprep.subr.bf16.mxu0 0
      %2869 = vmatpush1.bf16.msra.mxu0 0
      %2870 = vmatprep.subr.bf16.mxu0 0
      %2871 = vmatpush1.bf16.msra.mxu0 0
      %2872 = vmatprep.subr.bf16.mxu0 0
      %2873 = vmatpush1.bf16.msra.mxu0 0
      %2874 = vmatprep.subr.bf16.mxu0 0
      %2875 = vmatpush1.bf16.msra.mxu0 0
      %2876 = vmatprep.subr.bf16.mxu0 0
      %2877 = vmatpush1.bf16.msra.mxu0 0
      %2878 = vmatprep.subr.bf16.mxu0 0
      %2879 = vmatpush1.bf16.msra.mxu0 0
      %2880 = vmatprep.subr.bf16.mxu0 0
      %2881 = vmatpush1.bf16.msra.mxu0 0
      %2882 = vmatprep.subr.bf16.mxu0 0
      %2883 = vmatpush1.bf16.msra.mxu0 0
      %2884 = vmatprep.subr.bf16.mxu0 0
      %2885 = vmatpush1.bf16.msra.mxu0 0
      %2886 = vmatprep.subr.bf16.mxu0 0
      %2887 = vmatpush1.bf16.msra.mxu0 0
      %2888 = vmatprep.subr.bf16.mxu0 0
      %2889 = vmatpush1.bf16.msra.mxu0 0
      %2890 = vmatprep.subr.bf16.mxu0 0
      %2891 = vmatpush1.bf16.msra.mxu0 0
      %2892 = vmatprep.mubr.bf16.mxu0 0
      %2893 = vmatmul.mubr.bf16.gmra.mrb[0].mxu0 %v2858
      %v2894 = vpop.f32.mrb[0].mxu0
      %v2895 = vadd.f32 0.0, %v2894
      %v2896 = vpop.f32.mrb[0].mxu0
      %v2897 = vpop.f32.mrb[0].mxu0
      %v2898 = vadd.f32 0.0, %v2897
      %v2899 = vpop.f32.mrb[0].mxu0
      %2900 = vdwg.mxu0
      %v2902 = vsel %vm2120, %v2856, 0
      %2904 = vmatprep.subr.bf16.mxu0 0
      %2905 = vmatpush1.bf16.msra.mxu0 %v2716
      %2906 = vmatprep.subr.bf16.mxu0 0
      %2907 = vmatpush1.bf16.msra.mxu0 0
      %2908 = vmatprep.subr.bf16.mxu0 0
      %2909 = vmatpush1.bf16.msra.mxu0 0
      %2910 = vmatprep.subr.bf16.mxu0 0
      %2911 = vmatpush1.bf16.msra.mxu0 0
      %2912 = vmatprep.subr.bf16.mxu0 0
      %2913 = vmatpush1.bf16.msra.mxu0 0
      %2914 = vmatprep.subr.bf16.mxu0 0
      %2915 = vmatpush1.bf16.msra.mxu0 0
      %2916 = vmatprep.subr.bf16.mxu0 0
      %2917 = vmatpush1.bf16.msra.mxu0 0
      %2918 = vmatprep.subr.bf16.mxu0 0
      %2919 = vmatpush1.bf16.msra.mxu0 0
      %2920 = vmatprep.subr.bf16.mxu0 0
      %2921 = vmatpush1.bf16.msra.mxu0 0
      %2922 = vmatprep.subr.bf16.mxu0 0
      %2923 = vmatpush1.bf16.msra.mxu0 0
      %2924 = vmatprep.subr.bf16.mxu0 0
      %2925 = vmatpush1.bf16.msra.mxu0 0
      %2926 = vmatprep.subr.bf16.mxu0 0
      %2927 = vmatpush1.bf16.msra.mxu0 0
      %2928 = vmatprep.subr.bf16.mxu0 0
      %2929 = vmatpush1.bf16.msra.mxu0 0
      %2930 = vmatprep.subr.bf16.mxu0 0
      %2931 = vmatpush1.bf16.msra.mxu0 0
      %2932 = vmatprep.subr.bf16.mxu0 0
      %2933 = vmatpush1.bf16.msra.mxu0 0
      %2934 = vmatprep.subr.bf16.mxu0 0
      %2935 = vmatpush1.bf16.msra.mxu0 0
      %2936 = vmatprep.mubr.bf16.mxu0 0
      %2937 = vmatmul.mubr.bf16.gmra.mrb[0].mxu0 %v2902
      %v2938 = vpop.f32.mrb[0].mxu0
      %v2939 = vadd.f32 0.0, %v2938
      %v2940 = vpop.f32.mrb[0].mxu0
      %v2941 = vpop.f32.mrb[0].mxu0
      %v2942 = vadd.f32 0.0, %v2941
      %v2943 = vpop.f32.mrb[0].mxu0
      %2944 = vdwg.mxu0
      %2946 = vrot.lane.b32.xlu0 %v2711, 120
      %v2947 = vpop.permute.xlu0 %2946
      %2949 = vrot.lane.b32.xlu0 %v2713, 120
      %v2950 = vpop.permute.xlu0 %2949
      %v2952 = vsel %vm1224, %v2947, 0
      %v2955 = vsel %vm1224, %v2950, 0
      %2957 = vmatprep.subr.bf16.mxu0 0
      %2958 = vmatpush1.bf16.xpose.msra.mxu0 %v2955
      %2959 = vmatprep.subr.bf16.mxu0 0
      %2960 = vmatpush1.bf16.xpose.msra.mxu0 0
      %2961 = vmatprep.subr.bf16.mxu0 0
      %2962 = vmatpush1.bf16.xpose.msra.mxu0 0
      %2963 = vmatprep.subr.bf16.mxu0 0
      %2964 = vmatpush1.bf16.xpose.msra.mxu0 0
      %2965 = vmatprep.subr.bf16.mxu0 0
      %2966 = vmatpush1.bf16.xpose.msra.mxu0 0
      %2967 = vmatprep.subr.bf16.mxu0 0
      %2968 = vmatpush1.bf16.xpose.msra.mxu0 0
      %2969 = vmatprep.subr.bf16.mxu0 0
      %2970 = vmatpush1.bf16.xpose.msra.mxu0 0
      %2971 = vmatprep.subr.bf16.mxu0 0
      %2972 = vmatpush1.bf16.xpose.msra.mxu0 0
      %2973 = vmatprep.subr.bf16.mxu0 0
      %2974 = vmatpush1.bf16.xpose.msra.mxu0 0
      %2975 = vmatprep.subr.bf16.mxu0 0
      %2976 = vmatpush1.bf16.xpose.msra.mxu0 0
      %2977 = vmatprep.subr.bf16.mxu0 0
      %2978 = vmatpush1.bf16.xpose.msra.mxu0 0
      %2979 = vmatprep.subr.bf16.mxu0 0
      %2980 = vmatpush1.bf16.xpose.msra.mxu0 0
      %2981 = vmatprep.subr.bf16.mxu0 0
      %2982 = vmatpush1.bf16.xpose.msra.mxu0 0
      %2983 = vmatprep.subr.bf16.mxu0 0
      %2984 = vmatpush1.bf16.xpose.msra.mxu0 0
      %2985 = vmatprep.subr.bf16.mxu0 0
      %2986 = vmatpush1.bf16.xpose.msra.mxu0 0
      %2987 = vmatprep.subr.bf16.mxu0 0
      %2988 = vmatpush1.bf16.xpose.msra.mxu0 0
      %2989 = vmatprep.mubr.bf16.mxu0 0
      %2990 = vmatmul.mubr.bf16.gmra.mrb[0].mxu0 %v2952
      %v2991 = vpop.f32.mrb[0].mxu0
      %v2992 = vadd.f32 0.0, %v2991
      %v2993 = vpop.f32.mrb[0].mxu0
      %v2994 = vpop.f32.mrb[0].mxu0
      %v2995 = vadd.f32 0.0, %v2994
      %v2996 = vpop.f32.mrb[0].mxu0
      %2997 = vdwg.mxu0
      %2999 = vrot.lane.b32.xlu0 %v2712, 120
      %v3000 = vpop.permute.xlu0 %2999
      %3002 = vrot.lane.b32.xlu0 %v2714, 120
      %v3003 = vpop.permute.xlu0 %3002
      %v3005 = vsel %vm1224, %v3000, 0
      %v3008 = vsel %vm1224, %v3003, 0
      %3010 = vmatprep.subr.bf16.mxu0 0
      %3011 = vmatpush1.bf16.xpose.msra.mxu0 %v3008
      %3012 = vmatprep.subr.bf16.mxu0 0
      %3013 = vmatpush1.bf16.xpose.msra.mxu0 0
      %3014 = vmatprep.subr.bf16.mxu0 0
      %3015 = vmatpush1.bf16.xpose.msra.mxu0 0
      %3016 = vmatprep.subr.bf16.mxu0 0
      %3017 = vmatpush1.bf16.xpose.msra.mxu0 0
      %3018 = vmatprep.subr.bf16.mxu0 0
      %3019 = vmatpush1.bf16.xpose.msra.mxu0 0
      %3020 = vmatprep.subr.bf16.mxu0 0
      %3021 = vmatpush1.bf16.xpose.msra.mxu0 0
      %3022 = vmatprep.subr.bf16.mxu0 0
      %3023 = vmatpush1.bf16.xpose.msra.mxu0 0
      %3024 = vmatprep.subr.bf16.mxu0 0
      %3025 = vmatpush1.bf16.xpose.msra.mxu0 0
      %3026 = vmatprep.subr.bf16.mxu0 0
      %3027 = vmatpush1.bf16.xpose.msra.mxu0 0
      %3028 = vmatprep.subr.bf16.mxu0 0
      %3029 = vmatpush1.bf16.xpose.msra.mxu0 0
      %3030 = vmatprep.subr.bf16.mxu0 0
      %3031 = vmatpush1.bf16.xpose.msra.mxu0 0
      %3032 = vmatprep.subr.bf16.mxu0 0
      %3033 = vmatpush1.bf16.xpose.msra.mxu0 0
      %3034 = vmatprep.subr.bf16.mxu0 0
      %3035 = vmatpush1.bf16.xpose.msra.mxu0 0
      %3036 = vmatprep.subr.bf16.mxu0 0
      %3037 = vmatpush1.bf16.xpose.msra.mxu0 0
      %3038 = vmatprep.subr.bf16.mxu0 0
      %3039 = vmatpush1.bf16.xpose.msra.mxu0 0
      %3040 = vmatprep.subr.bf16.mxu0 0
      %3041 = vmatpush1.bf16.xpose.msra.mxu0 0
      %3042 = vmatprep.mubr.bf16.mxu0 0
      %3043 = vmatmul.mubr.bf16.gmra.mrb[0].mxu0 %v3005
      %v3044 = vpop.f32.mrb[0].mxu0
      %v3045 = vadd.f32 0.0, %v3044
      %v3046 = vpop.f32.mrb[0].mxu0
      %v3047 = vpop.f32.mrb[0].mxu0
      %v3048 = vadd.f32 0.0, %v3047
      %v3049 = vpop.f32.mrb[0].mxu0
      %3050 = vdwg.mxu0
      %v3051 = vsel %vm2120, %v2992, -inf
      %3052 = vmax.xlane.f32.xlu0 %v3051
      %v3053 = vpop.xlane.xlu0 %3052
      %v3054 = vsel %vm2120, %v2995, -inf
      %3055 = vmax.xlane.f32.xlu0 %v3054
      %v3056 = vpop.xlane.xlu0 %3055
      %v3057 = vsel %vm2120, %v3045, -inf
      %3058 = vmax.xlane.f32.xlu0 %v3057
      %v3059 = vpop.xlane.xlu0 %3058
      %v3060 = vsel %vm2120, %v3048, -inf
      %3061 = vmax.xlane.f32.xlu0 %v3060
      %v3062 = vpop.xlane.xlu0 %3061
      %v3063 = vsub.f32 %v2992, %v3053
      %v3064 = vsub.f32 %v2995, %v3056
      %v3065 = vsub.f32 %v3045, %v3059
      %v3066 = vsub.f32 %v3048, %v3062
      %v3067 = vmul.f32 %v3063, 1.442695
      %v3068 = vpow.pop %v3067
      %v3069 = vmul.f32 %v3064, 1.442695
      %v3070 = vpow.pop %v3069
      %v3071 = vmul.f32 %v3065, 1.442695
      %v3072 = vpow.pop %v3071
      %v3073 = vmul.f32 %v3066, 1.442695
      %v3074 = vpow.pop %v3073
      %v3075 = vsel %vm2120, %v3068, 0.0
      %3076 = vadd.xlane.f32.xlu0 %v3075
      %v3077 = vpop.xlane.xlu0 %3076
      %v3078 = vsel %vm2120, %v3070, 0.0
      %3079 = vadd.xlane.f32.xlu0 %v3078
      %v3080 = vpop.xlane.xlu0 %3079
      %v3081 = vsel %vm2120, %v3072, 0.0
      %3082 = vadd.xlane.f32.xlu0 %v3081
      %v3083 = vpop.xlane.xlu0 %3082
      %v3084 = vsel %vm2120, %v3074, 0.0
      %3085 = vadd.xlane.f32.xlu0 %v3084
      %v3086 = vpop.xlane.xlu0 %3085
      %v3087 = vrcp.pop %v3077
      %v3088 = vrcp.pop %v3080
      %v3089 = vrcp.pop %v3083
      %v3090 = vrcp.pop %v3086
      %v3091 = vmul.f32 %v3068, %v3087
      %v3092 = vmul.f32 %v3070, %v3088
      %v3093 = vmul.f32 %v3072, %v3089
      %v3094 = vmul.f32 %v3074, %v3090
      %v3095 = vpack.c.bf16 %v3092, %v3091
      %v3096 = vpack.c.bf16 %v3094, %v3093
      %3098 = vrot.lane.b32.xlu0 %v2715, 120
      %v3099 = vpop.permute.xlu0 %3098
      %v3102 = vsel %vm2120, %v3095, 0
      %3104 = vmatprep.subr.bf16.mxu0 0
      %3105 = vmatpush1.bf16.msra.mxu0 %v3099
      %3106 = vmatprep.subr.bf16.mxu0 0
      %3107 = vmatpush1.bf16.msra.mxu0 0
      %3108 = vmatprep.subr.bf16.mxu0 0
      %3109 = vmatpush1.bf16.msra.mxu0 0
      %3110 = vmatprep.subr.bf16.mxu0 0
      %3111 = vmatpush1.bf16.msra.mxu0 0
      %3112 = vmatprep.subr.bf16.mxu0 0
      %3113 = vmatpush1.bf16.msra.mxu0 0
      %3114 = vmatprep.subr.bf16.mxu0 0
      %3115 = vmatpush1.bf16.msra.mxu0 0
      %3116 = vmatprep.subr.bf16.mxu0 0
      %3117 = vmatpush1.bf16.msra.mxu0 0
      %3118 = vmatprep.subr.bf16.mxu0 0
      %3119 = vmatpush1.bf16.msra.mxu0 0
      %3120 = vmatprep.subr.bf16.mxu0 0
      %3121 = vmatpush1.bf16.msra.mxu0 0
      %3122 = vmatprep.subr.bf16.mxu0 0
      %3123 = vmatpush1.bf16.msra.mxu0 0
      %3124 = vmatprep.subr.bf16.mxu0 0
      %3125 = vmatpush1.bf16.msra.mxu0 0
      %3126 = vmatprep.subr.bf16.mxu0 0
      %3127 = vmatpush1.bf16.msra.mxu0 0
      %3128 = vmatprep.subr.bf16.mxu0 0
      %3129 = vmatpush1.bf16.msra.mxu0 0
      %3130 = vmatprep.subr.bf16.mxu0 0
      %3131 = vmatpush1.bf16.msra.mxu0 0
      %3132 = vmatprep.subr.bf16.mxu0 0
      %3133 = vmatpush1.bf16.msra.mxu0 0
      %3134 = vmatprep.subr.bf16.mxu0 0
      %3135 = vmatpush1.bf16.msra.mxu0 0
      %3136 = vmatprep.mubr.bf16.mxu0 0
      %3137 = vmatmul.mubr.bf16.gmra.mrb[0].mxu0 %v3102
      %v3138 = vpop.f32.mrb[0].mxu0
      %v3139 = vadd.f32 0.0, %v3138
      %v3140 = vpop.f32.mrb[0].mxu0
      %v3141 = vpop.f32.mrb[0].mxu0
      %v3142 = vadd.f32 0.0, %v3141
      %v3143 = vpop.f32.mrb[0].mxu0
      %3144 = vdwg.mxu0
      %3146 = vrot.lane.b32.xlu0 %v2716, 120
      %v3147 = vpop.permute.xlu0 %3146
      %v3150 = vsel %vm2120, %v3096, 0
      %3152 = vmatprep.subr.bf16.mxu0 0
      %3153 = vmatpush1.bf16.msra.mxu0 %v3147
      %3154 = vmatprep.subr.bf16.mxu0 0
      %3155 = vmatpush1.bf16.msra.mxu0 0
      %3156 = vmatprep.subr.bf16.mxu0 0
      %3157 = vmatpush1.bf16.msra.mxu0 0
      %3158 = vmatprep.subr.bf16.mxu0 0
      %3159 = vmatpush1.bf16.msra.mxu0 0
      %3160 = vmatprep.subr.bf16.mxu0 0
      %3161 = vmatpush1.bf16.msra.mxu0 0
      %3162 = vmatprep.subr.bf16.mxu0 0
      %3163 = vmatpush1.bf16.msra.mxu0 0
      %3164 = vmatprep.subr.bf16.mxu0 0
      %3165 = vmatpush1.bf16.msra.mxu0 0
      %3166 = vmatprep.subr.bf16.mxu0 0
      %3167 = vmatpush1.bf16.msra.mxu0 0
      %3168 = vmatprep.subr.bf16.mxu0 0
      %3169 = vmatpush1.bf16.msra.mxu0 0
      %3170 = vmatprep.subr.bf16.mxu0 0
      %3171 = vmatpush1.bf16.msra.mxu0 0
      %3172 = vmatprep.subr.bf16.mxu0 0
      %3173 = vmatpush1.bf16.msra.mxu0 0
      %3174 = vmatprep.subr.bf16.mxu0 0
      %3175 = vmatpush1.bf16.msra.mxu0 0
      %3176 = vmatprep.subr.bf16.mxu0 0
      %3177 = vmatpush1.bf16.msra.mxu0 0
      %3178 = vmatprep.subr.bf16.mxu0 0
      %3179 = vmatpush1.bf16.msra.mxu0 0
      %3180 = vmatprep.subr.bf16.mxu0 0
      %3181 = vmatpush1.bf16.msra.mxu0 0
      %3182 = vmatprep.subr.bf16.mxu0 0
      %3183 = vmatpush1.bf16.msra.mxu0 0
      %3184 = vmatprep.mubr.bf16.mxu0 0
      %3185 = vmatmul.mubr.bf16.gmra.mrb[0].mxu0 %v3150
      %v3186 = vpop.f32.mrb[0].mxu0
      %v3187 = vadd.f32 0.0, %v3186
      %v3188 = vpop.f32.mrb[0].mxu0
      %v3189 = vpop.f32.mrb[0].mxu0
      %v3190 = vadd.f32 0.0, %v3189
      %v3191 = vpop.f32.mrb[0].mxu0
      %3192 = vdwg.mxu0
      %3193 = vrot.lane.b32.xlu0 %v2711, 112
      %v3194 = vpop.permute.xlu0 %3193
      %3195 = vrot.lane.b32.xlu0 %v2713, 112
      %v3196 = vpop.permute.xlu0 %3195
      %v3198 = vsel %vm1224, %v3194, 0
      %v3201 = vsel %vm1224, %v3196, 0
      %3203 = vmatprep.subr.bf16.mxu0 0
      %3204 = vmatpush1.bf16.xpose.msra.mxu0 %v3201
      %3205 = vmatprep.subr.bf16.mxu0 0
      %3206 = vmatpush1.bf16.xpose.msra.mxu0 0
      %3207 = vmatprep.subr.bf16.mxu0 0
      %3208 = vmatpush1.bf16.xpose.msra.mxu0 0
      %3209 = vmatprep.subr.bf16.mxu0 0
      %3210 = vmatpush1.bf16.xpose.msra.mxu0 0
      %3211 = vmatprep.subr.bf16.mxu0 0
      %3212 = vmatpush1.bf16.xpose.msra.mxu0 0
      %3213 = vmatprep.subr.bf16.mxu0 0
      %3214 = vmatpush1.bf16.xpose.msra.mxu0 0
      %3215 = vmatprep.subr.bf16.mxu0 0
      %3216 = vmatpush1.bf16.xpose.msra.mxu0 0
      %3217 = vmatprep.subr.bf16.mxu0 0
      %3218 = vmatpush1.bf16.xpose.msra.mxu0 0
      %3219 = vmatprep.subr.bf16.mxu0 0
      %3220 = vmatpush1.bf16.xpose.msra.mxu0 0
      %3221 = vmatprep.subr.bf16.mxu0 0
      %3222 = vmatpush1.bf16.xpose.msra.mxu0 0
      %3223 = vmatprep.subr.bf16.mxu0 0
      %3224 = vmatpush1.bf16.xpose.msra.mxu0 0
      %3225 = vmatprep.subr.bf16.mxu0 0
      %3226 = vmatpush1.bf16.xpose.msra.mxu0 0
      %3227 = vmatprep.subr.bf16.mxu0 0
      %3228 = vmatpush1.bf16.xpose.msra.mxu0 0
      %3229 = vmatprep.subr.bf16.mxu0 0
      %3230 = vmatpush1.bf16.xpose.msra.mxu0 0
      %3231 = vmatprep.subr.bf16.mxu0 0
      %3232 = vmatpush1.bf16.xpose.msra.mxu0 0
      %3233 = vmatprep.subr.bf16.mxu0 0
      %3234 = vmatpush1.bf16.xpose.msra.mxu0 0
      %3235 = vmatprep.mubr.bf16.mxu0 0
      %3236 = vmatmul.mubr.bf16.gmra.mrb[0].mxu0 %v3198
      %v3237 = vpop.f32.mrb[0].mxu0
      %v3238 = vadd.f32 0.0, %v3237
      %v3239 = vpop.f32.mrb[0].mxu0
      %v3240 = vpop.f32.mrb[0].mxu0
      %v3241 = vadd.f32 0.0, %v3240
      %v3242 = vpop.f32.mrb[0].mxu0
      %3243 = vdwg.mxu0
      %3244 = vrot.lane.b32.xlu0 %v2712, 112
      %v3245 = vpop.permute.xlu0 %3244
      %3246 = vrot.lane.b32.xlu0 %v2714, 112
      %v3247 = vpop.permute.xlu0 %3246
      %v3249 = vsel %vm1224, %v3245, 0
      %v3252 = vsel %vm1224, %v3247, 0
      %3254 = vmatprep.subr.bf16.mxu0 0
      %3255 = vmatpush1.bf16.xpose.msra.mxu0 %v3252
      %3256 = vmatprep.subr.bf16.mxu0 0
      %3257 = vmatpush1.bf16.xpose.msra.mxu0 0
      %3258 = vmatprep.subr.bf16.mxu0 0
      %3259 = vmatpush1.bf16.xpose.msra.mxu0 0
      %3260 = vmatprep.subr.bf16.mxu0 0
      %3261 = vmatpush1.bf16.xpose.msra.mxu0 0
      %3262 = vmatprep.subr.bf16.mxu0 0
      %3263 = vmatpush1.bf16.xpose.msra.mxu0 0
      %3264 = vmatprep.subr.bf16.mxu0 0
      %3265 = vmatpush1.bf16.xpose.msra.mxu0 0
      %3266 = vmatprep.subr.bf16.mxu0 0
      %3267 = vmatpush1.bf16.xpose.msra.mxu0 0
      %3268 = vmatprep.subr.bf16.mxu0 0
      %3269 = vmatpush1.bf16.xpose.msra.mxu0 0
      %3270 = vmatprep.subr.bf16.mxu0 0
      %3271 = vmatpush1.bf16.xpose.msra.mxu0 0
      %3272 = vmatprep.subr.bf16.mxu0 0
      %3273 = vmatpush1.bf16.xpose.msra.mxu0 0
      %3274 = vmatprep.subr.bf16.mxu0 0
      %3275 = vmatpush1.bf16.xpose.msra.mxu0 0
      %3276 = vmatprep.subr.bf16.mxu0 0
      %3277 = vmatpush1.bf16.xpose.msra.mxu0 0
      %3278 = vmatprep.subr.bf16.mxu0 0
      %3279 = vmatpush1.bf16.xpose.msra.mxu0 0
      %3280 = vmatprep.subr.bf16.mxu0 0
      %3281 = vmatpush1.bf16.xpose.msra.mxu0 0
      %3282 = vmatprep.subr.bf16.mxu0 0
      %3283 = vmatpush1.bf16.xpose.msra.mxu0 0
      %3284 = vmatprep.subr.bf16.mxu0 0
      %3285 = vmatpush1.bf16.xpose.msra.mxu0 0
      %3286 = vmatprep.mubr.bf16.mxu0 0
      %3287 = vmatmul.mubr.bf16.gmra.mrb[0].mxu0 %v3249
      %v3288 = vpop.f32.mrb[0].mxu0
      %v3289 = vadd.f32 0.0, %v3288
      %v3290 = vpop.f32.mrb[0].mxu0
      %v3291 = vpop.f32.mrb[0].mxu0
      %v3292 = vadd.f32 0.0, %v3291
      %v3293 = vpop.f32.mrb[0].mxu0
      %3294 = vdwg.mxu0
      %v3295 = vsel %vm2120, %v3238, -inf
      %3296 = vmax.xlane.f32.xlu0 %v3295
      %v3297 = vpop.xlane.xlu0 %3296
      %v3298 = vsel %vm2120, %v3241, -inf
      %3299 = vmax.xlane.f32.xlu0 %v3298
      %v3300 = vpop.xlane.xlu0 %3299
      %v3301 = vsel %vm2120, %v3289, -inf
      %3302 = vmax.xlane.f32.xlu0 %v3301
      %v3303 = vpop.xlane.xlu0 %3302
      %v3304 = vsel %vm2120, %v3292, -inf
      %3305 = vmax.xlane.f32.xlu0 %v3304
      %v3306 = vpop.xlane.xlu0 %3305
      %v3307 = vsub.f32 %v3238, %v3297
      %v3308 = vsub.f32 %v3241, %v3300
      %v3309 = vsub.f32 %v3289, %v3303
      %v3310 = vsub.f32 %v3292, %v3306
      %v3311 = vmul.f32 %v3307, 1.442695
      %v3312 = vpow.pop %v3311
      %v3313 = vmul.f32 %v3308, 1.442695
      %v3314 = vpow.pop %v3313
      %v3315 = vmul.f32 %v3309, 1.442695
      %v3316 = vpow.pop %v3315
      %v3317 = vmul.f32 %v3310, 1.442695
      %v3318 = vpow.pop %v3317
      %v3319 = vsel %vm2120, %v3312, 0.0
      %3320 = vadd.xlane.f32.xlu0 %v3319
      %v3321 = vpop.xlane.xlu0 %3320
      %v3322 = vsel %vm2120, %v3314, 0.0
      %3323 = vadd.xlane.f32.xlu0 %v3322
      %v3324 = vpop.xlane.xlu0 %3323
      %v3325 = vsel %vm2120, %v3316, 0.0
      %3326 = vadd.xlane.f32.xlu0 %v3325
      %v3327 = vpop.xlane.xlu0 %3326
      %v3328 = vsel %vm2120, %v3318, 0.0
      %3329 = vadd.xlane.f32.xlu0 %v3328
      %v3330 = vpop.xlane.xlu0 %3329
      %v3331 = vrcp.pop %v3321
      %v3332 = vrcp.pop %v3324
      %v3333 = vrcp.pop %v3327
      %v3334 = vrcp.pop %v3330
      %v3335 = vmul.f32 %v3312, %v3331
      %v3336 = vmul.f32 %v3314, %v3332
      %v3337 = vmul.f32 %v3316, %v3333
      %v3338 = vmul.f32 %v3318, %v3334
      %v3339 = vpack.c.bf16 %v3336, %v3335
      %v3340 = vpack.c.bf16 %v3338, %v3337
      %3341 = vrot.lane.b32.xlu0 %v2715, 112
      %v3342 = vpop.permute.xlu0 %3341
      %v3345 = vsel %vm2120, %v3339, 0
      %3347 = vmatprep.subr.bf16.mxu0 0
      %3348 = vmatpush1.bf16.msra.mxu0 %v3342
      %3349 = vmatprep.subr.bf16.mxu0 0
      %3350 = vmatpush1.bf16.msra.mxu0 0
      %3351 = vmatprep.subr.bf16.mxu0 0
      %3352 = vmatpush1.bf16.msra.mxu0 0
      %3353 = vmatprep.subr.bf16.mxu0 0
      %3354 = vmatpush1.bf16.msra.mxu0 0
      %3355 = vmatprep.subr.bf16.mxu0 0
      %3356 = vmatpush1.bf16.msra.mxu0 0
      %3357 = vmatprep.subr.bf16.mxu0 0
      %3358 = vmatpush1.bf16.msra.mxu0 0
      %3359 = vmatprep.subr.bf16.mxu0 0
      %3360 = vmatpush1.bf16.msra.mxu0 0
      %3361 = vmatprep.subr.bf16.mxu0 0
      %3362 = vmatpush1.bf16.msra.mxu0 0
      %3363 = vmatprep.subr.bf16.mxu0 0
      %3364 = vmatpush1.bf16.msra.mxu0 0
      %3365 = vmatprep.subr.bf16.mxu0 0
      %3366 = vmatpush1.bf16.msra.mxu0 0
      %3367 = vmatprep.subr.bf16.mxu0 0
      %3368 = vmatpush1.bf16.msra.mxu0 0
      %3369 = vmatprep.subr.bf16.mxu0 0
      %3370 = vmatpush1.bf16.msra.mxu0 0
      %3371 = vmatprep.subr.bf16.mxu0 0
      %3372 = vmatpush1.bf16.msra.mxu0 0
      %3373 = vmatprep.subr.bf16.mxu0 0
      %3374 = vmatpush1.bf16.msra.mxu0 0
      %3375 = vmatprep.subr.bf16.mxu0 0
      %3376 = vmatpush1.bf16.msra.mxu0 0
      %3377 = vmatprep.subr.bf16.mxu0 0
      %3378 = vmatpush1.bf16.msra.mxu0 0
      %3379 = vmatprep.mubr.bf16.mxu0 0
      %3380 = vmatmul.mubr.bf16.gmra.mrb[0].mxu0 %v3345
      %v3381 = vpop.f32.mrb[0].mxu0
      %v3382 = vadd.f32 0.0, %v3381
      %v3383 = vpop.f32.mrb[0].mxu0
      %v3384 = vpop.f32.mrb[0].mxu0
      %v3385 = vadd.f32 0.0, %v3384
      %v3386 = vpop.f32.mrb[0].mxu0
      %3387 = vdwg.mxu0
      %3388 = vrot.lane.b32.xlu0 %v2716, 112
      %v3389 = vpop.permute.xlu0 %3388
      %v3392 = vsel %vm2120, %v3340, 0
      %3394 = vmatprep.subr.bf16.mxu0 0
      %3395 = vmatpush1.bf16.msra.mxu0 %v3389
      %3396 = vmatprep.subr.bf16.mxu0 0
      %3397 = vmatpush1.bf16.msra.mxu0 0
      %3398 = vmatprep.subr.bf16.mxu0 0
      %3399 = vmatpush1.bf16.msra.mxu0 0
      %3400 = vmatprep.subr.bf16.mxu0 0
      %3401 = vmatpush1.bf16.msra.mxu0 0
      %3402 = vmatprep.subr.bf16.mxu0 0
      %3403 = vmatpush1.bf16.msra.mxu0 0
      %3404 = vmatprep.subr.bf16.mxu0 0
      %3405 = vmatpush1.bf16.msra.mxu0 0
      %3406 = vmatprep.subr.bf16.mxu0 0
      %3407 = vmatpush1.bf16.msra.mxu0 0
      %3408 = vmatprep.subr.bf16.mxu0 0
      %3409 = vmatpush1.bf16.msra.mxu0 0
      %3410 = vmatprep.subr.bf16.mxu0 0
      %3411 = vmatpush1.bf16.msra.mxu0 0
      %3412 = vmatprep.subr.bf16.mxu0 0
      %3413 = vmatpush1.bf16.msra.mxu0 0
      %3414 = vmatprep.subr.bf16.mxu0 0
      %3415 = vmatpush1.bf16.msra.mxu0 0
      %3416 = vmatprep.subr.bf16.mxu0 0
      %3417 = vmatpush1.bf16.msra.mxu0 0
      %3418 = vmatprep.subr.bf16.mxu0 0
      %3419 = vmatpush1.bf16.msra.mxu0 0
      %3420 = vmatprep.subr.bf16.mxu0 0
      %3421 = vmatpush1.bf16.msra.mxu0 0
      %3422 = vmatprep.subr.bf16.mxu0 0
      %3423 = vmatpush1.bf16.msra.mxu0 0
      %3424 = vmatprep.subr.bf16.mxu0 0
      %3425 = vmatpush1.bf16.msra.mxu0 0
      %3426 = vmatprep.mubr.bf16.mxu0 0
      %3427 = vmatmul.mubr.bf16.gmra.mrb[0].mxu0 %v3392
      %v3428 = vpop.f32.mrb[0].mxu0
      %v3429 = vadd.f32 0.0, %v3428
      %v3430 = vpop.f32.mrb[0].mxu0
      %v3431 = vpop.f32.mrb[0].mxu0
      %v3432 = vadd.f32 0.0, %v3431
      %v3433 = vpop.f32.mrb[0].mxu0
      %3434 = vdwg.mxu0
      %3435 = vrot.lane.b32.xlu0 %v2711, 104
      %v3436 = vpop.permute.xlu0 %3435
      %3437 = vrot.lane.b32.xlu0 %v2713, 104
      %v3438 = vpop.permute.xlu0 %3437
      %v3440 = vsel %vm1224, %v3436, 0
      %v3443 = vsel %vm1224, %v3438, 0
      %3445 = vmatprep.subr.bf16.mxu0 0
      %3446 = vmatpush1.bf16.xpose.msra.mxu0 %v3443
      %3447 = vmatprep.subr.bf16.mxu0 0
      %3448 = vmatpush1.bf16.xpose.msra.mxu0 0
      %3449 = vmatprep.subr.bf16.mxu0 0
      %3450 = vmatpush1.bf16.xpose.msra.mxu0 0
      %3451 = vmatprep.subr.bf16.mxu0 0
      %3452 = vmatpush1.bf16.xpose.msra.mxu0 0
      %3453 = vmatprep.subr.bf16.mxu0 0
      %3454 = vmatpush1.bf16.xpose.msra.mxu0 0
      %3455 = vmatprep.subr.bf16.mxu0 0
      %3456 = vmatpush1.bf16.xpose.msra.mxu0 0
      %3457 = vmatprep.subr.bf16.mxu0 0
      %3458 = vmatpush1.bf16.xpose.msra.mxu0 0
      %3459 = vmatprep.subr.bf16.mxu0 0
      %3460 = vmatpush1.bf16.xpose.msra.mxu0 0
      %3461 = vmatprep.subr.bf16.mxu0 0
      %3462 = vmatpush1.bf16.xpose.msra.mxu0 0
      %3463 = vmatprep.subr.bf16.mxu0 0
      %3464 = vmatpush1.bf16.xpose.msra.mxu0 0
      %3465 = vmatprep.subr.bf16.mxu0 0
      %3466 = vmatpush1.bf16.xpose.msra.mxu0 0
      %3467 = vmatprep.subr.bf16.mxu0 0
      %3468 = vmatpush1.bf16.xpose.msra.mxu0 0
      %3469 = vmatprep.subr.bf16.mxu0 0
      %3470 = vmatpush1.bf16.xpose.msra.mxu0 0
      %3471 = vmatprep.subr.bf16.mxu0 0
      %3472 = vmatpush1.bf16.xpose.msra.mxu0 0
      %3473 = vmatprep.subr.bf16.mxu0 0
      %3474 = vmatpush1.bf16.xpose.msra.mxu0 0
      %3475 = vmatprep.subr.bf16.mxu0 0
      %3476 = vmatpush1.bf16.xpose.msra.mxu0 0
      %3477 = vmatprep.mubr.bf16.mxu0 0
      %3478 = vmatmul.mubr.bf16.gmra.mrb[0].mxu0 %v3440
      %v3479 = vpop.f32.mrb[0].mxu0
      %v3480 = vadd.f32 0.0, %v3479
      %v3481 = vpop.f32.mrb[0].mxu0
      %v3482 = vpop.f32.mrb[0].mxu0
      %v3483 = vadd.f32 0.0, %v3482
      %v3484 = vpop.f32.mrb[0].mxu0
      %3485 = vdwg.mxu0
      %3486 = vrot.lane.b32.xlu0 %v2712, 104
      %v3487 = vpop.permute.xlu0 %3486
      %3488 = vrot.lane.b32.xlu0 %v2714, 104
      %v3489 = vpop.permute.xlu0 %3488
      %v3491 = vsel %vm1224, %v3487, 0
      %v3494 = vsel %vm1224, %v3489, 0
      %3496 = vmatprep.subr.bf16.mxu0 0
      %3497 = vmatpush1.bf16.xpose.msra.mxu0 %v3494
      %3498 = vmatprep.subr.bf16.mxu0 0
      %3499 = vmatpush1.bf16.xpose.msra.mxu0 0
      %3500 = vmatprep.subr.bf16.mxu0 0
      %3501 = vmatpush1.bf16.xpose.msra.mxu0 0
      %3502 = vmatprep.subr.bf16.mxu0 0
      %3503 = vmatpush1.bf16.xpose.msra.mxu0 0
      %3504 = vmatprep.subr.bf16.mxu0 0
      %3505 = vmatpush1.bf16.xpose.msra.mxu0 0
      %3506 = vmatprep.subr.bf16.mxu0 0
      %3507 = vmatpush1.bf16.xpose.msra.mxu0 0
      %3508 = vmatprep.subr.bf16.mxu0 0
      %3509 = vmatpush1.bf16.xpose.msra.mxu0 0
      %3510 = vmatprep.subr.bf16.mxu0 0
      %3511 = vmatpush1.bf16.xpose.msra.mxu0 0
      %3512 = vmatprep.subr.bf16.mxu0 0
      %3513 = vmatpush1.bf16.xpose.msra.mxu0 0
      %3514 = vmatprep.subr.bf16.mxu0 0
      %3515 = vmatpush1.bf16.xpose.msra.mxu0 0
      %3516 = vmatprep.subr.bf16.mxu0 0
      %3517 = vmatpush1.bf16.xpose.msra.mxu0 0
      %3518 = vmatprep.subr.bf16.mxu0 0
      %3519 = vmatpush1.bf16.xpose.msra.mxu0 0
      %3520 = vmatprep.subr.bf16.mxu0 0
      %3521 = vmatpush1.bf16.xpose.msra.mxu0 0
      %3522 = vmatprep.subr.bf16.mxu0 0
      %3523 = vmatpush1.bf16.xpose.msra.mxu0 0
      %3524 = vmatprep.subr.bf16.mxu0 0
      %3525 = vmatpush1.bf16.xpose.msra.mxu0 0
      %3526 = vmatprep.subr.bf16.mxu0 0
      %3527 = vmatpush1.bf16.xpose.msra.mxu0 0
      %3528 = vmatprep.mubr.bf16.mxu0 0
      %3529 = vmatmul.mubr.bf16.gmra.mrb[0].mxu0 %v3491
      %v3530 = vpop.f32.mrb[0].mxu0
      %v3531 = vadd.f32 0.0, %v3530
      %v3532 = vpop.f32.mrb[0].mxu0
      %v3533 = vpop.f32.mrb[0].mxu0
      %v3534 = vadd.f32 0.0, %v3533
      %v3535 = vpop.f32.mrb[0].mxu0
      %3536 = vdwg.mxu0
      %v3537 = vsel %vm2120, %v3480, -inf
      %3538 = vmax.xlane.f32.xlu0 %v3537
      %v3539 = vpop.xlane.xlu0 %3538
      %v3540 = vsel %vm2120, %v3483, -inf
      %3541 = vmax.xlane.f32.xlu0 %v3540
      %v3542 = vpop.xlane.xlu0 %3541
      %v3543 = vsel %vm2120, %v3531, -inf
      %3544 = vmax.xlane.f32.xlu0 %v3543
      %v3545 = vpop.xlane.xlu0 %3544
      %v3546 = vsel %vm2120, %v3534, -inf
      %3547 = vmax.xlane.f32.xlu0 %v3546
      %v3548 = vpop.xlane.xlu0 %3547
      %v3549 = vsub.f32 %v3480, %v3539
      %v3550 = vsub.f32 %v3483, %v3542
      %v3551 = vsub.f32 %v3531, %v3545
      %v3552 = vsub.f32 %v3534, %v3548
      %v3553 = vmul.f32 %v3549, 1.442695
      %v3554 = vpow.pop %v3553
      %v3555 = vmul.f32 %v3550, 1.442695
      %v3556 = vpow.pop %v3555
      %v3557 = vmul.f32 %v3551, 1.442695
      %v3558 = vpow.pop %v3557
      %v3559 = vmul.f32 %v3552, 1.442695
      %v3560 = vpow.pop %v3559
      %v3561 = vsel %vm2120, %v3554, 0.0
      %3562 = vadd.xlane.f32.xlu0 %v3561
      %v3563 = vpop.xlane.xlu0 %3562
      %v3564 = vsel %vm2120, %v3556, 0.0
      %3565 = vadd.xlane.f32.xlu0 %v3564
      %v3566 = vpop.xlane.xlu0 %3565
      %v3567 = vsel %vm2120, %v3558, 0.0
      %3568 = vadd.xlane.f32.xlu0 %v3567
      %v3569 = vpop.xlane.xlu0 %3568
      %v3570 = vsel %vm2120, %v3560, 0.0
      %3571 = vadd.xlane.f32.xlu0 %v3570
      %v3572 = vpop.xlane.xlu0 %3571
      %v3573 = vrcp.pop %v3563
      %v3574 = vrcp.pop %v3566
      %v3575 = vrcp.pop %v3569
      %v3576 = vrcp.pop %v3572
      %v3577 = vmul.f32 %v3554, %v3573
      %v3578 = vmul.f32 %v3556, %v3574
      %v3579 = vmul.f32 %v3558, %v3575
      %v3580 = vmul.f32 %v3560, %v3576
      %v3581 = vpack.c.bf16 %v3578, %v3577
      %v3582 = vpack.c.bf16 %v3580, %v3579
      %3583 = vrot.lane.b32.xlu0 %v2715, 104
      %v3584 = vpop.permute.xlu0 %3583
      %v3587 = vsel %vm2120, %v3581, 0
      %3589 = vmatprep.subr.bf16.mxu0 0
      %3590 = vmatpush1.bf16.msra.mxu0 %v3584
      %3591 = vmatprep.subr.bf16.mxu0 0
      %3592 = vmatpush1.bf16.msra.mxu0 0
      %3593 = vmatprep.subr.bf16.mxu0 0
      %3594 = vmatpush1.bf16.msra.mxu0 0
      %3595 = vmatprep.subr.bf16.mxu0 0
      %3596 = vmatpush1.bf16.msra.mxu0 0
      %3597 = vmatprep.subr.bf16.mxu0 0
      %3598 = vmatpush1.bf16.msra.mxu0 0
      %3599 = vmatprep.subr.bf16.mxu0 0
      %3600 = vmatpush1.bf16.msra.mxu0 0
      %3601 = vmatprep.subr.bf16.mxu0 0
      %3602 = vmatpush1.bf16.msra.mxu0 0
      %3603 = vmatprep.subr.bf16.mxu0 0
      %3604 = vmatpush1.bf16.msra.mxu0 0
      %3605 = vmatprep.subr.bf16.mxu0 0
      %3606 = vmatpush1.bf16.msra.mxu0 0
      %3607 = vmatprep.subr.bf16.mxu0 0
      %3608 = vmatpush1.bf16.msra.mxu0 0
      %3609 = vmatprep.subr.bf16.mxu0 0
      %3610 = vmatpush1.bf16.msra.mxu0 0
      %3611 = vmatprep.subr.bf16.mxu0 0
      %3612 = vmatpush1.bf16.msra.mxu0 0
      %3613 = vmatprep.subr.bf16.mxu0 0
      %3614 = vmatpush1.bf16.msra.mxu0 0
      %3615 = vmatprep.subr.bf16.mxu0 0
      %3616 = vmatpush1.bf16.msra.mxu0 0
      %3617 = vmatprep.subr.bf16.mxu0 0
      %3618 = vmatpush1.bf16.msra.mxu0 0
      %3619 = vmatprep.subr.bf16.mxu0 0
      %3620 = vmatpush1.bf16.msra.mxu0 0
      %3621 = vmatprep.mubr.bf16.mxu0 0
      %3622 = vmatmul.mubr.bf16.gmra.mrb[0].mxu0 %v3587
      %v3623 = vpop.f32.mrb[0].mxu0
      %v3624 = vadd.f32 0.0, %v3623
      %v3625 = vpop.f32.mrb[0].mxu0
      %v3626 = vpop.f32.mrb[0].mxu0
      %v3627 = vadd.f32 0.0, %v3626
      %v3628 = vpop.f32.mrb[0].mxu0
      %3629 = vdwg.mxu0
      %3630 = vrot.lane.b32.xlu0 %v2716, 104
      %v3631 = vpop.permute.xlu0 %3630
      %v3634 = vsel %vm2120, %v3582, 0
      %3636 = vmatprep.subr.bf16.mxu0 0
      %3637 = vmatpush1.bf16.msra.mxu0 %v3631
      %3638 = vmatprep.subr.bf16.mxu0 0
      %3639 = vmatpush1.bf16.msra.mxu0 0
      %3640 = vmatprep.subr.bf16.mxu0 0
      %3641 = vmatpush1.bf16.msra.mxu0 0
      %3642 = vmatprep.subr.bf16.mxu0 0
      %3643 = vmatpush1.bf16.msra.mxu0 0
      %3644 = vmatprep.subr.bf16.mxu0 0
      %3645 = vmatpush1.bf16.msra.mxu0 0
      %3646 = vmatprep.subr.bf16.mxu0 0
      %3647 = vmatpush1.bf16.msra.mxu0 0
      %3648 = vmatprep.subr.bf16.mxu0 0
      %3649 = vmatpush1.bf16.msra.mxu0 0
      %3650 = vmatprep.subr.bf16.mxu0 0
      %3651 = vmatpush1.bf16.msra.mxu0 0
      %3652 = vmatprep.subr.bf16.mxu0 0
      %3653 = vmatpush1.bf16.msra.mxu0 0
      %3654 = vmatprep.subr.bf16.mxu0 0
      %3655 = vmatpush1.bf16.msra.mxu0 0
      %3656 = vmatprep.subr.bf16.mxu0 0
      %3657 = vmatpush1.bf16.msra.mxu0 0
      %3658 = vmatprep.subr.bf16.mxu0 0
      %3659 = vmatpush1.bf16.msra.mxu0 0
      %3660 = vmatprep.subr.bf16.mxu0 0
      %3661 = vmatpush1.bf16.msra.mxu0 0
      %3662 = vmatprep.subr.bf16.mxu0 0
      %3663 = vmatpush1.bf16.msra.mxu0 0
      %3664 = vmatprep.subr.bf16.mxu0 0
      %3665 = vmatpush1.bf16.msra.mxu0 0
      %3666 = vmatprep.subr.bf16.mxu0 0
      %3667 = vmatpush1.bf16.msra.mxu0 0
      %3668 = vmatprep.mubr.bf16.mxu0 0
      %3669 = vmatmul.mubr.bf16.gmra.mrb[0].mxu0 %v3634
      %v3670 = vpop.f32.mrb[0].mxu0
      %v3671 = vadd.f32 0.0, %v3670
      %v3672 = vpop.f32.mrb[0].mxu0
      %v3673 = vpop.f32.mrb[0].mxu0
      %v3674 = vadd.f32 0.0, %v3673
      %v3675 = vpop.f32.mrb[0].mxu0
      %3676 = vdwg.mxu0
      %3681 = vrot.lane.b32.xlu0 %v3139, 8
      %v3682 = vpop.permute.xlu0 %3681
      %3683 = vrot.lane.b32.xlu0 %v3142, 8
      %v3684 = vpop.permute.xlu0 %3683
      %3685 = vrot.lane.b32.xlu0 %v3187, 8
      %v3686 = vpop.permute.xlu0 %3685
      %3687 = vrot.lane.b32.xlu0 %v3190, 8
      %v3688 = vpop.permute.xlu0 %3687
      %3697 = vrot.lane.b32.xlu0 %v3382, 16
      %v3698 = vpop.permute.xlu0 %3697
      %3699 = vrot.lane.b32.xlu0 %v3385, 16
      %v3700 = vpop.permute.xlu0 %3699
      %3701 = vrot.lane.b32.xlu0 %v3429, 16
      %v3702 = vpop.permute.xlu0 %3701
      %3703 = vrot.lane.b32.xlu0 %v3432, 16
      %v3704 = vpop.permute.xlu0 %3703
      %3713 = vrot.lane.b32.xlu0 %v3624, 24
      %v3714 = vpop.permute.xlu0 %3713
      %3715 = vrot.lane.b32.xlu0 %v3627, 24
      %v3716 = vpop.permute.xlu0 %3715
      %3717 = vrot.lane.b32.xlu0 %v3671, 24
      %v3718 = vpop.permute.xlu0 %3717
      %3719 = vrot.lane.b32.xlu0 %v3674, 24
      %v3720 = vpop.permute.xlu0 %3719
      %v3725 = vsel %vm1224, %v2895, %v3682
      %v3726 = vsel %vm1224, %v2898, %v3684
      %v3727 = vsel %vm1224, %v2939, %v3686
      %v3728 = vsel %vm1224, %v2942, %v3688
      %v3729 = vsel %vm2120, %v3725, %v3698
      %v3730 = vsel %vm2120, %v3726, %v3700
      %v3731 = vsel %vm2120, %v3727, %v3702
      %v3732 = vsel %vm2120, %v3728, %v3704
      %v3733 = vsel %vm2123, %v3729, %v3714
      %v3734 = vsel %vm2123, %v3730, %v3716
      %v3735 = vsel %vm2123, %v3731, %v3718
      %v3736 = vsel %vm2123, %v3732, %v3720
      %v3737 = vpack.c.bf16 %v3734, %v3733
      %v3738 = vpack.c.bf16 %v3736, %v3735
      %v3743 = vunpack.c.l.b16 %v2421
      %v3744 = vunpack.c.l.b16 %v2422
      %v3745 = vunpack.c.l.b16 %v2423
      %v3746 = vunpack.c.l.b16 %v2424
      %v3747 = vpack.c.b16 %v3744, %v3743
      %v3748 = vpack.c.b16 %v3746, %v3745
      %v3752 = vsel %vm1001, %v3737, 0
      %v3755 = vsel %vm1001, %v3738, 0
      %3757 = vmatprep.subr.bf16.mxu0 0
      %3758 = vmatpush1.bf16.msra.mxu0 %v3747
      %3759 = vmatprep.subr.bf16.mxu0 0
      %3760 = vmatpush1.bf16.msra.mxu0 %v3748
      %3761 = vmatprep.subr.bf16.mxu0 0
      %3762 = vmatpush1.bf16.msra.mxu0 0
      %3763 = vmatprep.subr.bf16.mxu0 0
      %3764 = vmatpush1.bf16.msra.mxu0 0
      %3765 = vmatprep.subr.bf16.mxu0 0
      %3766 = vmatpush1.bf16.msra.mxu0 0
      %3767 = vmatprep.subr.bf16.mxu0 0
      %3768 = vmatpush1.bf16.msra.mxu0 0
      %3769 = vmatprep.subr.bf16.mxu0 0
      %3770 = vmatpush1.bf16.msra.mxu0 0
      %3771 = vmatprep.subr.bf16.mxu0 0
      %3772 = vmatpush1.bf16.msra.mxu0 0
      %3773 = vmatprep.subr.bf16.mxu0 0
      %3774 = vmatpush1.bf16.msra.mxu0 0
      %3775 = vmatprep.subr.bf16.mxu0 0
      %3776 = vmatpush1.bf16.msra.mxu0 0
      %3777 = vmatprep.subr.bf16.mxu0 0
      %3778 = vmatpush1.bf16.msra.mxu0 0
      %3779 = vmatprep.subr.bf16.mxu0 0
      %3780 = vmatpush1.bf16.msra.mxu0 0
      %3781 = vmatprep.subr.bf16.mxu0 0
      %3782 = vmatpush1.bf16.msra.mxu0 0
      %3783 = vmatprep.subr.bf16.mxu0 0
      %3784 = vmatpush1.bf16.msra.mxu0 0
      %3785 = vmatprep.subr.bf16.mxu0 0
      %3786 = vmatpush1.bf16.msra.mxu0 0
      %3787 = vmatprep.subr.bf16.mxu0 0
      %3788 = vmatpush1.bf16.msra.mxu0 0
      %3789 = vmatprep.mubr.bf16.mxu0 0
      %3790 = vmatmul.mubr.bf16.gmra.mrb[0].mxu0 %v3752
      %v3791 = vpop.f32.mrb[0].mxu0
      %v3792 = vadd.f32 0.0, %v3791
      %v3793 = vpop.f32.mrb[0].mxu0
      %v3794 = vpop.f32.mrb[0].mxu0
      %v3795 = vadd.f32 0.0, %v3794
      %v3796 = vpop.f32.mrb[0].mxu0
      %3797 = vmatprep.mubr.bf16.mxu0 0
      %3798 = vmatmul.mubr.bf16.gmra.mrb[0].mxu0 %v3755
      %v3799 = vpop.f32.mrb[0].mxu0
      %v3800 = vadd.f32 0.0, %v3799
      %v3801 = vpop.f32.mrb[0].mxu0
      %v3802 = vpop.f32.mrb[0].mxu0
      %v3803 = vadd.f32 0.0, %v3802
      %v3804 = vpop.f32.mrb[0].mxu0
      %3805 = vdwg.mxu0
      %v3806 = vadd.f32 %v2404, %v3792
      %v3807 = vadd.f32 %v2405, %v3795
      %v3808 = vadd.f32 %v2406, %v3800
      %v3809 = vadd.f32 %v2407, %v3803
      %v3810 = vsel %vm1001, %v3806, 0.0
      %3811 = vadd.xlane.f32.xlu0 %v3810
      %v3812 = vpop.xlane.xlu0 %3811
      %v3813 = vsel %vm1001, %v3807, 0.0
      %3814 = vadd.xlane.f32.xlu0 %v3813
      %v3815 = vpop.xlane.xlu0 %3814
      %v3816 = vsel %vm1001, %v3808, 0.0
      %3817 = vadd.xlane.f32.xlu0 %v3816
      %v3818 = vpop.xlane.xlu0 %3817
      %v3819 = vsel %vm1001, %v3809, 0.0
      %3820 = vadd.xlane.f32.xlu0 %v3819
      %v3821 = vpop.xlane.xlu0 %3820
      %v3822 = vmul.f32 %v3812, %v1008
      %v3823 = vmul.f32 %v3815, %v1008
      %v3824 = vmul.f32 %v3818, %v1008
      %v3825 = vmul.f32 %v3821, %v1008
      %v3826 = vsub.f32 %v3806, %v3822
      %v3827 = vsub.f32 %v3807, %v3823
      %v3828 = vsub.f32 %v3808, %v3824
      %v3829 = vsub.f32 %v3809, %v3825
      %v3830 = vmul.f32 %v3826, %v3826
      %v3831 = vmul.f32 %v3827, %v3827
      %v3832 = vmul.f32 %v3828, %v3828
      %v3833 = vmul.f32 %v3829, %v3829
      %v3834 = vsel %vm1001, %v3830, 0.0
      %3835 = vadd.xlane.f32.xlu0 %v3834
      %v3836 = vpop.xlane.xlu0 %3835
      %v3837 = vsel %vm1001, %v3831, 0.0
      %3838 = vadd.xlane.f32.xlu0 %v3837
      %v3839 = vpop.xlane.xlu0 %3838
      %v3840 = vsel %vm1001, %v3832, 0.0
      %3841 = vadd.xlane.f32.xlu0 %v3840
      %v3842 = vpop.xlane.xlu0 %3841
      %v3843 = vsel %vm1001, %v3833, 0.0
      %3844 = vadd.xlane.f32.xlu0 %v3843
      %v3845 = vpop.xlane.xlu0 %3844
      %v3846 = vmul.f32 %v3836, %v1008
      %v3847 = vmul.f32 %v3839, %v1008
      %v3848 = vmul.f32 %v3842, %v1008
      %v3849 = vmul.f32 %v3845, %v1008
      %v3850 = vadd.f32 %v3846, 1e-05
      %v3851 = vadd.f32 %v3847, 1e-05
      %v3852 = vadd.f32 %v3848, 1e-05
      %v3853 = vadd.f32 %v3849, 1e-05
      %v3854 = vrsqrt.pop %v3850
      %v3855 = vrsqrt.pop %v3851
      %v3856 = vrsqrt.pop %v3852
      %v3857 = vrsqrt.pop %v3853
      %v3858 = vmul.f32 %v3826, %v3854
      %v3859 = vmul.f32 %v3827, %v3855
      %v3860 = vmul.f32 %v3828, %v3856
      %v3861 = vmul.f32 %v3829, %v3857
      %v3862 = vlaneseq
      %v3863 = vshrl.u32 %v3862, 7
      %v3864 = vsub.s32 0, %v3863
      %v3865 = vrot.slane %v2425, %v3864
      %v3866 = vmul.f32 %v3858, %v3865
      %v3867 = vmul.f32 %v3859, %v3865
      %v3868 = vmul.f32 %v3860, %v3865
      %v3869 = vmul.f32 %v3861, %v3865
      %v3870 = vlaneseq
      %v3871 = vshrl.u32 %v3870, 7
      %v3872 = vsub.s32 1, %v3871
      %v3873 = vrot.slane %v2425, %v3872
      %v3874 = vadd.f32 %v3866, %v3873
      %v3875 = vadd.f32 %v3867, %v3873
      %v3876 = vadd.f32 %v3868, %v3873
      %v3877 = vadd.f32 %v3869, %v3873
      %v3878 = vpack.c.bf16 %v3875, %v3874
      %v3879 = vpack.c.bf16 %v3877, %v3876
      %v3881 = vlaneseq
      %v3882 = vshrl.u32 %v3881, 7
      %v3883 = vsub.s32 0, %v3882
      %v3884 = vrot.slane %v2430, %v3883
      %v3890 = vunpack.c.l.b16 %v2426
      %v3891 = vunpack.c.l.b16 %v2427
      %v3892 = vunpack.c.l.b16 %v2428
      %v3893 = vunpack.c.l.b16 %v2429
      %v3894 = vpack.c.b16 %v3891, %v3890
      %v3895 = vpack.c.b16 %v3893, %v3892
      %v3899 = vsel %vm1001, %v3878, 0
      %v3902 = vsel %vm1001, %v3879, 0
      %3904 = vmatprep.subr.bf16.mxu0 0
      %3905 = vmatpush1.bf16.msra.mxu0 %v3894
      %3906 = vmatprep.subr.bf16.mxu0 0
      %3907 = vmatpush1.bf16.msra.mxu0 %v3895
      %3908 = vmatprep.subr.bf16.mxu0 0
      %3909 = vmatpush1.bf16.msra.mxu0 0
      %3910 = vmatprep.subr.bf16.mxu0 0
      %3911 = vmatpush1.bf16.msra.mxu0 0
      %3912 = vmatprep.subr.bf16.mxu0 0
      %3913 = vmatpush1.bf16.msra.mxu0 0
      %3914 = vmatprep.subr.bf16.mxu0 0
      %3915 = vmatpush1.bf16.msra.mxu0 0
      %3916 = vmatprep.subr.bf16.mxu0 0
      %3917 = vmatpush1.bf16.msra.mxu0 0
      %3918 = vmatprep.subr.bf16.mxu0 0
      %3919 = vmatpush1.bf16.msra.mxu0 0
      %3920 = vmatprep.subr.bf16.mxu0 0
      %3921 = vmatpush1.bf16.msra.mxu0 0
      %3922 = vmatprep.subr.bf16.mxu0 0
      %3923 = vmatpush1.bf16.msra.mxu0 0
      %3924 = vmatprep.subr.bf16.mxu0 0
      %3925 = vmatpush1.bf16.msra.mxu0 0
      %3926 = vmatprep.subr.bf16.mxu0 0
      %3927 = vmatpush1.bf16.msra.mxu0 0
      %3928 = vmatprep.subr.bf16.mxu0 0
      %3929 = vmatpush1.bf16.msra.mxu0 0
      %3930 = vmatprep.subr.bf16.mxu0 0
      %3931 = vmatpush1.bf16.msra.mxu0 0
      %3932 = vmatprep.subr.bf16.mxu0 0
      %3933 = vmatpush1.bf16.msra.mxu0 0
      %3934 = vmatprep.subr.bf16.mxu0 0
      %3935 = vmatpush1.bf16.msra.mxu0 0
      %3936 = vmatprep.mubr.bf16.mxu0 0
      %3937 = vmatmul.mubr.bf16.gmra.mrb[0].mxu0 %v3899
      %v3938 = vpop.f32.mrb[0].mxu0
      %v3939 = vadd.f32 %v3884, %v3938
      %v3940 = vpop.f32.mrb[0].mxu0
      %v3941 = vpop.f32.mrb[0].mxu0
      %v3942 = vadd.f32 %v3884, %v3941
      %v3943 = vpop.f32.mrb[0].mxu0
      %3944 = vmatprep.mubr.bf16.mxu0 0
      %3945 = vmatmul.mubr.bf16.gmra.mrb[0].mxu0 %v3902
      %v3946 = vpop.f32.mrb[0].mxu0
      %v3947 = vadd.f32 %v3884, %v3946
      %v3948 = vpop.f32.mrb[0].mxu0
      %v3949 = vpop.f32.mrb[0].mxu0
      %v3950 = vadd.f32 %v3884, %v3949
      %v3951 = vpop.f32.mrb[0].mxu0
      %3952 = vdwg.mxu0
      %v3953 = vmul.f32 %v3939, %v3939
      %v3954 = vmul.f32 %v3942, %v3942
      %v3955 = vmul.f32 %v3947, %v3947
      %v3956 = vmul.f32 %v3950, %v3950
      %v3957 = vmul.f32 %v3939, %v3953
      %v3958 = vmul.f32 %v3942, %v3954
      %v3959 = vmul.f32 %v3947, %v3955
      %v3960 = vmul.f32 %v3950, %v3956
      %v3961 = vmul.f32 %v3957, 0.044715
      %v3962 = vmul.f32 %v3958, 0.044715
      %v3963 = vmul.f32 %v3959, 0.044715
      %v3964 = vmul.f32 %v3960, 0.044715
      %v3965 = vadd.f32 %v3939, %v3961
      %v3966 = vadd.f32 %v3942, %v3962
      %v3967 = vadd.f32 %v3947, %v3963
      %v3968 = vadd.f32 %v3950, %v3964
      %v3969 = vmul.f32 %v3965, 0.7978846
      %v3970 = vmul.f32 %v3966, 0.7978846
      %v3971 = vmul.f32 %v3967, 0.7978846
      %v3972 = vmul.f32 %v3968, 0.7978846
      %v3973 = vtanh.pop %v3969
      %v3974 = vtanh.pop %v3970
      %v3975 = vtanh.pop %v3971
      %v3976 = vtanh.pop %v3972
      %v3977 = vadd.f32 %v3973, 1.0
      %v3978 = vadd.f32 %v3974, 1.0
      %v3979 = vadd.f32 %v3975, 1.0
      %v3980 = vadd.f32 %v3976, 1.0
      %v3981 = vmul.f32 %v3977, 0.5
      %v3982 = vmul.f32 %v3978, 0.5
      %v3983 = vmul.f32 %v3979, 0.5
      %v3984 = vmul.f32 %v3980, 0.5
      %v3985 = vmul.f32 %v3939, %v3981
      %v3986 = vmul.f32 %v3942, %v3982
      %v3987 = vmul.f32 %v3947, %v3983
      %v3988 = vmul.f32 %v3950, %v3984
      %v3989 = vpack.c.bf16 %v3986, %v3985
      %v3990 = vpack.c.bf16 %v3988, %v3987
      %v3992 = vlaneseq
      %v3993 = vshrl.u32 %v3992, 7
      %v3994 = vsub.s32 0, %v3993
      %v3995 = vrot.slane %v2447, %v3994
      %v4013 = vunpack.c.l.b16 %v2431
      %v4014 = vunpack.c.l.b16 %v2432
      %v4015 = vunpack.c.l.b16 %v2433
      %v4016 = vunpack.c.l.b16 %v2434
      %v4017 = vunpack.c.l.b16 %v2435
      %v4018 = vunpack.c.l.b16 %v2436
      %v4019 = vunpack.c.l.b16 %v2437
      %v4020 = vunpack.c.l.b16 %v2438
      %v4021 = vunpack.c.l.b16 %v2439
      %v4022 = vunpack.c.l.b16 %v2440
      %v4023 = vunpack.c.l.b16 %v2441
      %v4024 = vunpack.c.l.b16 %v2442
      %v4025 = vunpack.c.l.b16 %v2443
      %v4026 = vunpack.c.l.b16 %v2444
      %v4027 = vunpack.c.l.b16 %v2445
      %v4028 = vunpack.c.l.b16 %v2446
      %v4029 = vpack.c.b16 %v4014, %v4013
      %v4030 = vpack.c.b16 %v4016, %v4015
      %v4031 = vpack.c.b16 %v4018, %v4017
      %v4032 = vpack.c.b16 %v4020, %v4019
      %v4033 = vpack.c.b16 %v4022, %v4021
      %v4034 = vpack.c.b16 %v4024, %v4023
      %v4035 = vpack.c.b16 %v4026, %v4025
      %v4036 = vpack.c.b16 %v4028, %v4027
      %4045 = vmatprep.subr.bf16.mxu0 0
      %4046 = vmatpush1.bf16.msra.mxu0 %v4029
      %4047 = vmatprep.subr.bf16.mxu0 0
      %4048 = vmatpush1.bf16.msra.mxu0 %v4030
      %4049 = vmatprep.subr.bf16.mxu0 0
      %4050 = vmatpush1.bf16.msra.mxu0 %v4031
      %4051 = vmatprep.subr.bf16.mxu0 0
      %4052 = vmatpush1.bf16.msra.mxu0 %v4032
      %4053 = vmatprep.subr.bf16.mxu0 0
      %4054 = vmatpush1.bf16.msra.mxu0 %v4033
      %4055 = vmatprep.subr.bf16.mxu0 0
      %4056 = vmatpush1.bf16.msra.mxu0 %v4034
      %4057 = vmatprep.subr.bf16.mxu0 0
      %4058 = vmatpush1.bf16.msra.mxu0 %v4035
      %4059 = vmatprep.subr.bf16.mxu0 0
      %4060 = vmatpush1.bf16.msra.mxu0 %v4036
      %4061 = vmatprep.subr.bf16.mxu0 0
      %4062 = vmatpush1.bf16.msra.mxu0 0
      %4063 = vmatprep.subr.bf16.mxu0 0
      %4064 = vmatpush1.bf16.msra.mxu0 0
      %4065 = vmatprep.subr.bf16.mxu0 0
      %4066 = vmatpush1.bf16.msra.mxu0 0
      %4067 = vmatprep.subr.bf16.mxu0 0
      %4068 = vmatpush1.bf16.msra.mxu0 0
      %4069 = vmatprep.subr.bf16.mxu0 0
      %4070 = vmatpush1.bf16.msra.mxu0 0
      %4071 = vmatprep.subr.bf16.mxu0 0
      %4072 = vmatpush1.bf16.msra.mxu0 0
      %4073 = vmatprep.subr.bf16.mxu0 0
      %4074 = vmatpush1.bf16.msra.mxu0 0
      %4075 = vmatprep.subr.bf16.mxu0 0
      %4076 = vmatpush1.bf16.msra.mxu0 0
      %4077 = vmatprep.mubr.bf16.mxu0 0
      %4078 = vmatmul.mubr.bf16.gmra.mrb[0].mxu0 %v3989
      %v4079 = vpop.f32.mrb[0].mxu0
      %v4080 = vadd.f32 %v3995, %v4079
      %v4081 = vpop.f32.mrb[0].mxu0
      %v4082 = vpop.f32.mrb[0].mxu0
      %v4083 = vadd.f32 %v3995, %v4082
      %v4084 = vpop.f32.mrb[0].mxu0
      %4085 = vmatprep.mubr.bf16.mxu0 0
      %4086 = vmatmul.mubr.bf16.gmra.mrb[0].mxu0 %v3990
      %v4087 = vpop.f32.mrb[0].mxu0
      %v4088 = vadd.f32 %v3995, %v4087
      %v4089 = vpop.f32.mrb[0].mxu0
      %v4090 = vpop.f32.mrb[0].mxu0
      %v4091 = vadd.f32 %v3995, %v4090
      %v4092 = vpop.f32.mrb[0].mxu0
      %4093 = vdwg.mxu0
      %v4094 = vadd.f32 %v3806, %v4080
      %v4095 = vadd.f32 %v3807, %v4083
      %v4096 = vadd.f32 %v3808, %v4088
      %v4097 = vadd.f32 %v3809, %v4091
      %4098 = vst.msk [vmem:[#allocation3] sm:$0xff] %vm1001, %v4094
      %4099 = vst.msk [vmem:[#allocation3 + $0x8] sm:$0xff] %vm1001, %v4095
      %4100 = vst.msk [vmem:[#allocation3 + $0x10] sm:$0xff] %vm1001, %v4096
      %4101 = vst.msk [vmem:[#allocation3 + $0x18] sm:$0xff] %vm1001, %v4097
      %p4102 = scmp.eq.s32.totalorder %s33, 1
      // Predicated region
      $region169: #{voiceclip_forward.1} parent=95 // pred_check
        %p4103 = pneg %p4102
      $region170: #{voiceclip_forward.1} parent=95 // pred_check_branch
        %4105 = sbr.rel (%p4103) target = $region172
      $region171: #{voiceclip_forward.1} parent=95 // pred_region
        %v4106 = vld [vmem:[#allocation2] sm:$0xff]
        %v4107 = vld [vmem:[#allocation2 + $0x8] sm:$0xff]
        %v4108 = vsel %vm1001, %v4106, 0.0
        %v4109 = vrot.slane %v4108, 4
        %v4110 = vadd.f32 %v4108, %v4109
        %v4111 = vrot.slane %v4110, 2
        %v4112 = vadd.f32 %v4110, %v4111
        %v4113 = vrot.slane %v4112, 1
        %v4114 = vadd.f32 %v4112, %v4113
        %v4115 = vsel %vm1001, %v4107, 0.0
        %v4116 = vrot.slane %v4115, 4
        %v4117 = vadd.f32 %v4115, %v4116
        %v4118 = vrot.slane %v4117, 2
        %v4119 = vadd.f32 %v4117, %v4118
        %v4120 = vrot.slane %v4119, 1
        %v4121 = vadd.f32 %v4119, %v4120
        %v4122 = vrcp.pop 8.0
        %v4123 = vmul.f32 %v4114, %v4122
        %v4124 = vmul.f32 %v4121, %v4122
        %v4125 = vld [vmem:[#allocation3] sm:$0xff]
        %v4126 = vld [vmem:[#allocation3 + $0x8] sm:$0xff]
        %v4127 = vld [vmem:[#allocation3 + $0x10] sm:$0xff]
        %v4128 = vld [vmem:[#allocation3 + $0x18] sm:$0xff]
        %v4129 = vsel %vm1001, %v4125, 0.0
        %v4130 = vsel %vm1001, %v4126, 0.0
        %v4131 = vadd.f32 %v4129, %v4130
        %v4132 = vrot.slane %v4131, 4
        %v4133 = vadd.f32 %v4131, %v4132
        %v4134 = vrot.slane %v4133, 2
        %v4135 = vadd.f32 %v4133, %v4134
        %v4136 = vrot.slane %v4135, 1
        %v4137 = vadd.f32 %v4135, %v4136
        %v4138 = vsel %vm1001, %v4127, 0.0
        %v4139 = vsel %vm1001, %v4128, 0.0
        %v4140 = vadd.f32 %v4138, %v4139
        %v4141 = vrot.slane %v4140, 4
        %v4142 = vadd.f32 %v4140, %v4141
        %v4143 = vrot.slane %v4142, 2
        %v4144 = vadd.f32 %v4142, %v4143
        %v4145 = vrot.slane %v4144, 1
        %v4146 = vadd.f32 %v4144, %v4145
        %v4147 = vrcp.pop 16.0
        %v4148 = vmul.f32 %v4137, %v4147
        %v4149 = vmul.f32 %v4146, %v4147
        %v4150 = vpack.c.bf16 %v4123, %v4123
        %v4151 = vpack.c.bf16 %v4124, %v4124
        %v4152 = vld [vmem:[%s18] sm:$0xf]
        %v4153 = vld [vmem:[%s18 + $0x4] sm:$0xf]
        %v4154 = vld [vmem:[%s18 + $0x8] sm:$0xf]
        %v4155 = vld [vmem:[%s18 + $0xc] sm:$0xf]
        %v4158 = vunpack.c.l.b16 %v4150
        %v4159 = vunpack.c.l.b16 %v4151
        %vm4160 = vcmask 1041409
        %v4161 = vsel %vm4160, %v4159, %v4158
        %v4162 = vpack.c.b16 %v4161, %v4161
        %v4167 = vunpack.c.l.b16 %v4152
        %v4168 = vunpack.c.l.b16 %v4153
        %v4169 = vunpack.c.l.b16 %v4154
        %v4170 = vunpack.c.l.b16 %v4155
        %v4171 = vpack.c.b16 %v4168, %v4167
        %v4172 = vpack.c.b16 %v4170, %v4169
        %v4176 = vsel %vm1001, %v4162, 0
        %4178 = vmatprep.subr.bf16.mxu0 0
        %4179 = vmatpush1.bf16.msra.mxu0 %v4171
        %4180 = vmatprep.subr.bf16.mxu0 0
        %4181 = vmatpush1.bf16.msra.mxu0 %v4172
        %4182 = vmatprep.subr.bf16.mxu0 0
        %4183 = vmatpush1.bf16.msra.mxu0 0
        %4184 = vmatprep.subr.bf16.mxu0 0
        %4185 = vmatpush1.bf16.msra.mxu0 0
        %4186 = vmatprep.subr.bf16.mxu0 0
        %4187 = vmatpush1.bf16.msra.mxu0 0
        %4188 = vmatprep.subr.bf16.mxu0 0
        %4189 = vmatpush1.bf16.msra.mxu0 0
        %4190 = vmatprep.subr.bf16.mxu0 0
        %4191 = vmatpush1.bf16.msra.mxu0 0
        %4192 = vmatprep.subr.bf16.mxu0 0
        %4193 = vmatpush1.bf16.msra.mxu0 0
        %4194 = vmatprep.subr.bf16.mxu0 0
        %4195 = vmatpush1.bf16.msra.mxu0 0
        %4196 = vmatprep.subr.bf16.mxu0 0
        %4197 = vmatpush1.bf16.msra.mxu0 0
        %4198 = vmatprep.subr.bf16.mxu0 0
        %4199 = vmatpush1.bf16.msra.mxu0 0
        %4200 = vmatprep.subr.bf16.mxu0 0
        %4201 = vmatpush1.bf16.msra.mxu0 0
        %4202 = vmatprep.subr.bf16.mxu0 0
        %4203 = vmatpush1.bf16.msra.mxu0 0
        %4204 = vmatprep.subr.bf16.mxu0 0
        %4205 = vmatpush1.bf16.msra.mxu0 0
        %4206 = vmatprep.subr.bf16.mxu0 0
        %4207 = vmatpush1.bf16.msra.mxu0 0
        %4208 = vmatprep.subr.bf16.mxu0 0
        %4209 = vmatpush1.bf16.msra.mxu0 0
        %4210 = vmatprep.mubr.bf16.mxu0 0
        %4211 = vmatmul.mubr.bf16.gmra.mrb[0].mxu0 %v4176
        %v4212 = vpop.f32.mrb[0].mxu0
        %v4213 = vadd.f32 0.0, %v4212
        %v4214 = vpop.f32.mrb[0].mxu0
        %v4215 = vpop.f32.mrb[0].mxu0
        %v4216 = vpop.f32.mrb[0].mxu0
        %4217 = vdwg.mxu0
        %v4218 = vpack.c.bf16 %v4148, %v4148
        %v4219 = vpack.c.bf16 %v4149, %v4149
        %v4220 = vld [vmem:[%s19] sm:$0xf]
        %v4221 = vld [vmem:[%s19 + $0x4] sm:$0xf]
        %v4222 = vld [vmem:[%s19 + $0x8] sm:$0xf]
        %v4223 = vld [vmem:[%s19 + $0xc] sm:$0xf]
        %v4226 = vunpack.c.l.b16 %v4218
        %v4227 = vunpack.c.l.b16 %v4219
        %v4228 = vsel %vm4160, %v4227, %v4226
        %v4229 = vpack.c.b16 %v4228, %v4228
        %v4234 = vunpack.c.l.b16 %v4220
        %v4235 = vunpack.c.l.b16 %v4221
        %v4236 = vunpack.c.l.b16 %v4222
        %v4237 = vunpack.c.l.b16 %v4223
        %v4238 = vpack.c.b16 %v4235, %v4234
        %v4239 = vpack.c.b16 %v4237, %v4236
        %v4243 = vsel %vm1001, %v4229, 0
        %4245 = vmatprep.subr.bf16.mxu0 0
        %4246 = vmatpush1.bf16.msra.mxu0 %v4238
        %4247 = vmatprep.subr.bf16.mxu0 0
        %4248 = vmatpush1.bf16.msra.mxu0 %v4239
        %4249 = vmatprep.subr.bf16.mxu0 0
        %4250 = vmatpush1.bf16.msra.mxu0 0
        %4251 = vmatprep.subr.bf16.mxu0 0
        %4252 = vmatpush1.bf16.msra.mxu0 0
        %4253 = vmatprep.subr.bf16.mxu0 0
        %4254 = vmatpush1.bf16.msra.mxu0 0
        %4255 = vmatprep.subr.bf16.mxu0 0
        %4256 = vmatpush1.bf16.msra.mxu0 0
        %4257 = vmatprep.subr.bf16.mxu0 0
        %4258 = vmatpush1.bf16.msra.mxu0 0
        %4259 = vmatprep.subr.bf16.mxu0 0
        %4260 = vmatpush1.bf16.msra.mxu0 0
        %4261 = vmatprep.subr.bf16.mxu0 0
        %4262 = vmatpush1.bf16.msra.mxu0 0
        %4263 = vmatprep.subr.bf16.mxu0 0
        %4264 = vmatpush1.bf16.msra.mxu0 0
        %4265 = vmatprep.subr.bf16.mxu0 0
        %4266 = vmatpush1.bf16.msra.mxu0 0
        %4267 = vmatprep.subr.bf16.mxu0 0
        %4268 = vmatpush1.bf16.msra.mxu0 0
        %4269 = vmatprep.subr.bf16.mxu0 0
        %4270 = vmatpush1.bf16.msra.mxu0 0
        %4271 = vmatprep.subr.bf16.mxu0 0
        %4272 = vmatpush1.bf16.msra.mxu0 0
        %4273 = vmatprep.subr.bf16.mxu0 0
        %4274 = vmatpush1.bf16.msra.mxu0 0
        %4275 = vmatprep.subr.bf16.mxu0 0
        %4276 = vmatpush1.bf16.msra.mxu0 0
        %4277 = vmatprep.mubr.bf16.mxu0 0
        %4278 = vmatmul.mubr.bf16.gmra.mrb[0].mxu0 %v4243
        %v4279 = vpop.f32.mrb[0].mxu0
        %v4280 = vadd.f32 0.0, %v4279
        %v4281 = vpop.f32.mrb[0].mxu0
        %v4282 = vpop.f32.mrb[0].mxu0
        %v4283 = vpop.f32.mrb[0].mxu0
        %4284 = vdwg.mxu0
        %v4285 = vmul.f32 %v4213, %v4213
        %vm4286 = vcmask 254976
        %v4287 = vsel %vm4286, %v4285, 0.0
        %4288 = vadd.xlane.f32.xlu0 %v4287
        %v4289 = vpop.xlane.xlu0 %4288
        %v4290 = vmax.f32 %v4289, 1e-24
        %v4291 = vrsqrt.pop %v4290
        %v4292 = vmul.f32 %v4213, %v4291
        %v4293 = vmul.f32 %v4280, %v4280
        %v4294 = vsel %vm4286, %v4293, 0.0
        %4295 = vadd.xlane.f32.xlu0 %v4294
        %v4296 = vpop.xlane.xlu0 %4295
        %v4297 = vmax.f32 %v4296, 1e-24
        %v4298 = vrsqrt.pop %v4297
        %v4299 = vmul.f32 %v4280, %v4298
        %v4300 = vmul.f32 %v4292, %v4299
        %v4301 = vsel %vm4286, %v4300, 0.0
        %4302 = vadd.xlane.f32.xlu0 %v4301
        %v4303 = vpop.xlane.xlu0 %4302
        %s4304 = sld [smem:[#allocation5]]
        %v4305 = vstv %s4304
        %v4306 = vmul.f32 %v4305, 1.442695
        %v4307 = vpow.pop %v4306
        %s4308 = vtos %v4307
        %v4309 = vstv %s4308
        %v4310 = vmul.f32 %v4303, %v4309
        %vm4311 = vcmask 1024
        %4312 = vst.msk [vmem:[%s21] sm:$0x3] %vm4311, %v4310
      $region172: #{voiceclip_forward.1} parent=95 // pred_fallthru
        _
      // Predicated region
      $region173: #{voiceclip_forward.1} parent=95 // pred_check
        %p4313 = pneg %p525
      $region174: #{voiceclip_forward.1} parent=95 // pred_check_branch
        %4315 = sbr.rel (%p4313) target = $region176
      $region175: #{voiceclip_forward.1} parent=95 // pred_region
        _
      $region176: #{voiceclip_forward.1} parent=95 // pred_fallthru
        _
      // Predicated region
      $region177: #{voiceclip_forward.1} parent=95 // pred_check
        %p4316 = pneg %p525
      $region178: #{voiceclip_forward.1} parent=95 // pred_check_branch
        %4318 = sbr.rel (%p4316) target = $region180
      $region179: #{voiceclip_forward.1} parent=95 // pred_region
        _
      $region180: #{voiceclip_forward.1} parent=95 // pred_fallthru
        _
    $region96: #{voiceclip_forward.1} parent=5 // pred_fallthru
      _
    %p4319 = scmp.le.s32.totalorder 2, %s28
    // Predicated region
    $region181: #{voiceclip_forward.1} parent=5 // pred_check
      %p4320 = pneg %p4319
    $region182: #{voiceclip_forward.1} parent=5 // pred_check_branch
      %4322 = sbr.rel (%p4320) target = $region184
    $region183: #{voiceclip_forward.1} parent=5 // pred_region
      %s4323 = ssub.s32 %s28, 2
    $region184: #{voiceclip_forward.1} parent=5 // pred_fallthru
      _
  $region6: #{voiceclip_forward.1} parent=0 // loop_footer
    %s32 = sadd.s32 1, %s28
  $region7: #{voiceclip_forward.1} parent=0 // loop_footer_branch
    %27 = sbr.rel target = $region3
  $region8: #{voiceclip_forward.1} parent=0 // loop_exit
    _
  %4324 = vsyncmov [#allocation4]
  %s4325 = vpop.sfrf %4324
  %p4326 = scmp.eq.s32.totalorder %s4325, 0
  %p4327 = pneg %p4326
  %4329 = shalt.err (%p4327)
  %s4330 = scalar_lea.sflag [#allocation4], 1
  %4331 = vsyncmov %s4330
  %s4332 = vpop.sfrf %4331
  %p4333 = scmp.eq.s32.totalorder %s4332, 0
  %p4334 = pneg %p4333
  %4336 = shalt.err (%p4334)

</llo_original>
